<compile_context>
chip_gen: v7x
topology: tpu7x:2x2x1
jax: 0.10.0
libtpu: 0.0.40
codegen_flags: <defaults>
</compile_context>

<pallas_src>
import functools

import jax
import jax.numpy as jnp
import numpy as np
from jax import lax
from jax.experimental import pallas as pl
from jax.experimental.pallas import tpu as pltpu


def _round_up(x, m):
    return ((x + m - 1) // m) * m


def _bottleneck_kernel(x_ref, w1_ref, b1_ref, w2_ref, b2_ref, w3_ref, b3_ref,
                       o_ref, h1pad_ref, *, H, W, KH, KW):
    """One batch element per grid step.

    x_ref    : (1, H*W, Cin_p)     bf16  input, channel-padded to 128 multiple
    w1_ref   : (Cin_p, P_p)        bf16  conv1 1x1 weights, BN1 scale folded
    b1_ref   : (1, P_p)            f32   BN1 bias
    w2_ref   : (KH*KW, P_p, P_p)   bf16  conv2 weights, one (P_p,P_p) slab per tap
    b2_ref   : (1, P_p)            f32   BN2 bias
    w3_ref   : (P_p, C4_p)         bf16  conv3 1x1 weights, BN3 scale folded
    b3_ref   : (1, C4_p)           f32   BN3 bias
    o_ref    : (1, H*W, C4_p)      bf16  lane-dense output block
    h1pad_ref: (H+2, Wp, P_p)      bf16  VMEM halo scratch, Wp = round_up(W+2, 8)
    """
    Pp = w1_ref.shape[-1]
    Wp = h1pad_ref.shape[1]

    x = x_ref[0]                                              # (H*W, Cin_p) bf16

    # ---- conv1 (1x1) + BN1 + ReLU ------------------------------------------
    a1 = jnp.dot(x, w1_ref[...], preferred_element_type=jnp.float32)
    h1 = jnp.maximum(a1 + b1_ref[...], 0.0).astype(jnp.bfloat16)   # (H*W, Pp)

    # ---- conv2 (3x3, stride 1, pad 1) + BN2 + ReLU -------------------------
    # Re-zero only the thin halo border the taps actually read; the interior
    # is fully overwritten every step (no full-scratch zeroing per step).
    zrow = jnp.zeros((1, Wp, Pp), jnp.bfloat16)
    h1pad_ref[0:1, :, :] = zrow
    h1pad_ref[H + 1:H + 2, :, :] = zrow
    zcol = jnp.zeros((H, 1, Pp), jnp.bfloat16)
    h1pad_ref[1:H + 1, 0:1, :] = zcol
    h1pad_ref[1:H + 1, W + 1:W + 2, :] = zcol
    h1pad_ref[1:H + 1, 1:W + 1, :] = h1.reshape(H, W, Pp)

    # Per-tap accumulation: KH*KW matmuls with K = Pp, accumulated in f32.
    # No (H*W, 9*Pp) im2col patch is ever materialized.
    acc = jnp.zeros((H * W, Pp), jnp.float32)
    for kh in range(KH):
        for kw in range(KW):
            tap = h1pad_ref[kh:kh + H, kw:kw + W, :].reshape(H * W, Pp)
            acc = acc + jnp.dot(tap, w2_ref[kh * KW + kw],
                                preferred_element_type=jnp.float32)
    h2 = jnp.maximum(acc + b2_ref[...], 0.0).astype(jnp.bfloat16)  # (H*W, Pp)

    # ---- conv3 (1x1) + BN3 + residual + ReLU -------------------------------
    a3 = jnp.dot(h2, w3_ref[...], preferred_element_type=jnp.float32)
    y = a3 + b3_ref[...] + x.astype(jnp.float32)              # identity residual
    o_ref[0] = jnp.maximum(y, 0.0).astype(o_ref.dtype)


def bottleneck_forward(x_nchw, params, *, eps=1e-5):
    """Bottleneck forward (stride=1, downsample=None).

    x_nchw: (N, Cin, H, W) f32.  Returns (N, 4*planes, H, W) bf16.
    """
    conv1_w = params["conv1_w"]        # (P, Cin, 1, 1)
    conv2_w = params["conv2_w"]        # (P, P, 3, 3)
    conv3_w = params["conv3_w"]        # (4P, P, 1, 1)

    N, Cin, H, W = x_nchw.shape
    P = conv1_w.shape[0]
    C4 = conv3_w.shape[0]
    KH, KW = conv2_w.shape[2], conv2_w.shape[3]
    assert C4 == 4 * P and Cin == C4, "identity residual requires inplanes == 4*planes"

    LANES = 128
    Cin_p = _round_up(Cin, LANES)
    P_p = _round_up(P, LANES)
    C4_p = _round_up(C4, LANES)
    Wp = _round_up(W + 2, 8)           # sublane-aligned halo-scratch width

    f32, bf16 = jnp.float32, jnp.bfloat16

    # ---- glue (plain JAX): layout, channel padding, BN folding --------------
    x_flat = jnp.transpose(x_nchw, (0, 2, 3, 1)).reshape(N, H * W, Cin).astype(f32)
    if Cin_p != Cin:
        x_flat = jnp.pad(x_flat, ((0, 0), (0, 0), (0, Cin_p - Cin)))
    x_p = x_flat.astype(bf16)

    def fold(gamma, beta, mean, var):
        scale = gamma.astype(f32) / jnp.sqrt(var.astype(f32) + eps)
        bias = beta.astype(f32) - mean.astype(f32) * scale
        return scale, bias

    s1, b1 = fold(params["bn1_g"], params["bn1_b"], params["bn1_m"], params["bn1_v"])
    s2, b2 = fold(params["bn2_g"], params["bn2_b"], params["bn2_m"], params["bn2_v"])
    s3, b3 = fold(params["bn3_g"], params["bn3_b"], params["bn3_m"], params["bn3_v"])

    # conv1: (P, Cin, 1, 1) -> fold scale (f32) -> (Cin_p, P_p) bf16
    w1 = (conv1_w[:, :, 0, 0].astype(f32) * s1[:, None]).T            # (Cin, P)
    w1p = jnp.zeros((Cin_p, P_p), f32).at[:Cin, :P].set(w1).astype(bf16)
    b1p = jnp.zeros((1, P_p), f32).at[0, :P].set(b1)

    # conv2: OIHW -> (KH, KW, I, O), fold scale, zero-pad, one slab per tap.
    w2 = conv2_w.astype(f32) * s2[:, None, None, None]                # (P, P, 3, 3)
    w2 = jnp.transpose(w2, (2, 3, 1, 0))                              # (KH, KW, P, P)
    w2p = jnp.zeros((KH, KW, P_p, P_p), f32).at[:, :, :P, :P].set(w2)
    w2p = w2p.reshape(KH * KW, P_p, P_p).astype(bf16)
    b2p = jnp.zeros((1, P_p), f32).at[0, :P].set(b2)

    # conv3: (4P, P, 1, 1) -> fold scale -> (P_p, C4_p) bf16
    w3 = (conv3_w[:, :, 0, 0].astype(f32) * s3[:, None]).T            # (P, 4P)
    w3p = jnp.zeros((P_p, C4_p), f32).at[:P, :C4].set(w3).astype(bf16)
    b3p = jnp.zeros((1, C4_p), f32).at[0, :C4].set(b3)

    kernel = functools.partial(_bottleneck_kernel, H=H, W=W, KH=KH, KW=KW)

    # VMEM budget derived from the per-step footprint, clamped so the same
    # blocking is safe on v5e/v6e (128 MiB physical) and v7x (64 MiB physical).
    per_step = (
        2 * H * W * Cin_p * 2                                   # x block (bf16, 2x buffered)
        + 2 * H * W * C4_p * 2                                  # out block (bf16, 2x buffered)
        + (Cin_p * P_p + KH * KW * P_p * P_p + P_p * C4_p) * 2  # weights (single copy)
        + (2 * P_p + C4_p) * 4                                  # biases
        + (H + 2) * Wp * P_p * 2                                # halo scratch
        + H * W * (2 * P_p + C4_p) * 4                          # live f32 intermediates
    )
    vmem_limit = int(min(max(2 * per_step, 32 * 1024 * 1024), 64 * 1024 * 1024))

    def vmem_full():
        # Whole-array VMEM operand: copied once, no per-step double buffering.
        return pl.BlockSpec(memory_space=pltpu.MemorySpace.VMEM)

    out_flat = pl.pallas_call(
        kernel,
        out_shape=jax.ShapeDtypeStruct((N, H * W, C4_p), bf16),
        grid_spec=pltpu.PrefetchScalarGridSpec(
            num_scalar_prefetch=0,
            grid=(N,),
            in_specs=[
                pl.BlockSpec((1, H * W, Cin_p), lambda n: (n, 0, 0)),
                vmem_full(),   # w1
                vmem_full(),   # b1
                vmem_full(),   # w2
                vmem_full(),   # b2
                vmem_full(),   # w3
                vmem_full(),   # b3
            ],
            out_specs=pl.BlockSpec((1, H * W, C4_p), lambda n: (n, 0, 0)),
            scratch_shapes=[pltpu.VMEM((H + 2, Wp, P_p), bf16)],
        ),
        compiler_params=pltpu.CompilerParams(
            dimension_semantics=("parallel",),
            vmem_limit_bytes=vmem_limit),
    )(x_p, w1p, b1p, w2p, b2p, w3p, b3p)

    # Slice off padded channels only if padding was added; back to NCHW (bf16).
    if C4_p != C4:
        out_flat = out_flat[:, :, :C4]
    out = out_flat.reshape(N, H, W, C4)
    return jnp.transpose(out, (0, 3, 1, 2))


def _reference(x, p, *, eps=1e-5):
    dn = ("NCHW", "OIHW", "NCHW")

    def bn(y, g, b, m, v):
        inv = 1.0 / jnp.sqrt(v + eps)
        return ((y - m[None, :, None, None]) * inv[None, :, None, None]
                * g[None, :, None, None] + b[None, :, None, None])

    y = lax.conv_general_dilated(x, p["conv1_w"], (1, 1), ((0, 0), (0, 0)),
                                 dimension_numbers=dn)
    y = jnp.maximum(bn(y, p["bn1_g"], p["bn1_b"], p["bn1_m"], p["bn1_v"]), 0.0)
    y = lax.conv_general_dilated(y, p["conv2_w"], (1, 1), ((1, 1), (1, 1)),
                                 dimension_numbers=dn)
    y = jnp.maximum(bn(y, p["bn2_g"], p["bn2_b"], p["bn2_m"], p["bn2_v"]), 0.0)
    y = lax.conv_general_dilated(y, p["conv3_w"], (1, 1), ((0, 0), (0, 0)),
                                 dimension_numbers=dn)
    y = bn(y, p["bn3_g"], p["bn3_b"], p["bn3_m"], p["bn3_v"])
    return jnp.maximum(y + x, 0.0)


if __name__ == "__main__":
    key = jax.random.PRNGKey(0)
    ks = jax.random.split(key, 20)

    N, planes, H, W = 2, 4, 16, 16
    inplanes = planes * 4          # identity residual (downsample=None)
    C4 = planes * 4

    x = jax.random.normal(ks[0], (N, inplanes, H, W), dtype=jnp.float32)

    def mk_bn(kg, kb, km, kv, c):
        return (1.0 + 0.1 * jax.random.normal(kg, (c,), jnp.float32),
                0.1 * jax.random.normal(kb, (c,), jnp.float32),
                0.1 * jax.random.normal(km, (c,), jnp.float32),
                jnp.abs(1.0 + 0.1 * jax.random.normal(kv, (c,), jnp.float32)))

    g1, b1, m1, v1 = mk_bn(ks[4], ks[5], ks[6], ks[7], planes)
    g2, b2, m2, v2 = mk_bn(ks[8], ks[9], ks[10], ks[11], planes)
    g3, b3, m3, v3 = mk_bn(ks[12], ks[13], ks[14], ks[15], C4)

    params = dict(
        conv1_w=0.1 * jax.random.normal(ks[1], (planes, inplanes, 1, 1), jnp.float32),
        conv2_w=0.1 * jax.random.normal(ks[2], (planes, planes, 3, 3), jnp.float32),
        conv3_w=0.1 * jax.random.normal(ks[3], (C4, planes, 1, 1), jnp.float32),
        bn1_g=g1, bn1_b=b1, bn1_m=m1, bn1_v=v1,
        bn2_g=g2, bn2_b=b2, bn2_m=m2, bn2_v=v2,
        bn3_g=g3, bn3_b=b3, bn3_m=m3, bn3_v=v3,
    )

    out = bottleneck_forward(x, params)
    out = jax.block_until_ready(out)

    ref = _reference(x, params)
    np.testing.assert_allclose(np.asarray(out.astype(jnp.float32)),
                               np.asarray(ref), rtol=4e-2, atol=4e-2)

    print("KERNEL_OK")
</pallas_src>

<mosaic_0001>
module attributes {stable_mosaic.version = 11 : i64} {
  func.func @_bottleneck_kernel(%arg0: i32, %arg1: memref<1x256x128xbf16, #tpu.memory_space<vmem>>, %arg2: memref<128x128xbf16, #tpu.memory_space<vmem>>, %arg3: memref<1x128xf32, #tpu.memory_space<vmem>>, %arg4: memref<9x128x128xbf16, #tpu.memory_space<vmem>>, %arg5: memref<1x128xf32, #tpu.memory_space<vmem>>, %arg6: memref<128x128xbf16, #tpu.memory_space<vmem>>, %arg7: memref<1x128xf32, #tpu.memory_space<vmem>>, %arg8: memref<1x256x128xbf16, #tpu.memory_space<vmem>>, %arg9: memref<18x24x128xbf16, #tpu.memory_space<vmem>>) attributes {dimension_semantics = [#tpu.dimension_semantics<parallel>], iteration_bounds = array<i64: 2>, scalar_prefetch = 0 : i64, scratch_operands = 1 : i64, tpu.core_type = #tpu.core_type<tc>, window_params = [{transform_indices = @transform_0, window_bounds = array<i64: 1, 256, 128>}, {pipeline_mode = #tpu.pipeline_mode<synchronous>, transform_indices = @transform_1, window_bounds = array<i64: 128, 128>}, {pipeline_mode = #tpu.pipeline_mode<synchronous>, transform_indices = @transform_2, window_bounds = array<i64: 1, 128>}, {pipeline_mode = #tpu.pipeline_mode<synchronous>, transform_indices = @transform_3, window_bounds = array<i64: 9, 128, 128>}, {pipeline_mode = #tpu.pipeline_mode<synchronous>, transform_indices = @transform_4, window_bounds = array<i64: 1, 128>}, {pipeline_mode = #tpu.pipeline_mode<synchronous>, transform_indices = @transform_5, window_bounds = array<i64: 128, 128>}, {pipeline_mode = #tpu.pipeline_mode<synchronous>, transform_indices = @transform_6, window_bounds = array<i64: 1, 128>}, {transform_indices = @transform_7, window_bounds = array<i64: 1, 256, 128>}]} {
    %c0 = arith.constant 0 : index
    %c0_0 = arith.constant 0 : index
    %c0_1 = arith.constant 0 : index
    %0 = vector.load %arg1[%c0, %c0_0, %c0_1] : memref<1x256x128xbf16, #tpu.memory_space<vmem>>, vector<1x256x128xbf16>
    %1 = vector.shape_cast %0 : vector<1x256x128xbf16> to vector<256x128xbf16>
    %c0_2 = arith.constant 0 : index
    %c0_3 = arith.constant 0 : index
    %2 = vector.load %arg2[%c0_2, %c0_3] : memref<128x128xbf16, #tpu.memory_space<vmem>>, vector<128x128xbf16>
    %cst = arith.constant dense<0.000000e+00> : vector<256x128xf32>
    %3 = tpu.matmul %1, %2, %cst {dimension_numbers = #tpu.dot_dimension_numbers<[1], [0], [0], [1], [0, 0, 1, 1], [], []>} : vector<256x128xbf16>, vector<128x128xbf16>, vector<256x128xf32> -> vector<256x128xf32>
    %c0_4 = arith.constant 0 : index
    %c0_5 = arith.constant 0 : index
    %4 = vector.load %arg3[%c0_4, %c0_5] : memref<1x128xf32, #tpu.memory_space<vmem>>, vector<1x128xf32>
    %5 = vector.broadcast %4 : vector<1x128xf32> to vector<256x128xf32>
    %6 = arith.addf %3, %5 : vector<256x128xf32>
    %cst_6 = arith.constant 0.000000e+00 : f32
    %7 = vector.broadcast %cst_6 : f32 to vector<256x128xf32>
    %8 = arith.maximumf %6, %7 : vector<256x128xf32>
    %9 = arith.truncf %8 : vector<256x128xf32> to vector<256x128xbf16>
    %cst_7 = arith.constant 0.000000e+00 : bf16
    %10 = vector.broadcast %cst_7 : bf16 to vector<1x24x128xbf16>
    %c0_8 = arith.constant 0 : index
    %c0_9 = arith.constant 0 : index
    %c0_10 = arith.constant 0 : index
    %11 = vector.load %arg9[%c0_8, %c0_9, %c0_10] : memref<18x24x128xbf16, #tpu.memory_space<vmem>>, vector<1x24x128xbf16>
    tpu.vector_store %arg9[%c0_8, %c0_9, %c0_10], %10 {strides = array<i32>} : memref<18x24x128xbf16, #tpu.memory_space<vmem>>, vector<1x24x128xbf16>,
    %c17 = arith.constant 17 : index
    %c0_11 = arith.constant 0 : index
    %c0_12 = arith.constant 0 : index
    %12 = vector.load %arg9[%c17, %c0_11, %c0_12] : memref<18x24x128xbf16, #tpu.memory_space<vmem>>, vector<1x24x128xbf16>
    tpu.vector_store %arg9[%c17, %c0_11, %c0_12], %10 {strides = array<i32>} : memref<18x24x128xbf16, #tpu.memory_space<vmem>>, vector<1x24x128xbf16>,
    %cst_13 = arith.constant 0.000000e+00 : bf16
    %13 = vector.broadcast %cst_13 : bf16 to vector<16x1x128xbf16>
    %c1 = arith.constant 1 : index
    %c0_14 = arith.constant 0 : index
    %c0_15 = arith.constant 0 : index
    %14 = vector.load %arg9[%c1, %c0_14, %c0_15] : memref<18x24x128xbf16, #tpu.memory_space<vmem>>, vector<16x1x128xbf16>
    tpu.vector_store %arg9[%c1, %c0_14, %c0_15], %13 {strides = array<i32>} : memref<18x24x128xbf16, #tpu.memory_space<vmem>>, vector<16x1x128xbf16>,
    %c1_16 = arith.constant 1 : index
    %c17_17 = arith.constant 17 : index
    %c0_18 = arith.constant 0 : index
    %15 = vector.load %arg9[%c1_16, %c17_17, %c0_18] : memref<18x24x128xbf16, #tpu.memory_space<vmem>>, vector<16x1x128xbf16>
    tpu.vector_store %arg9[%c1_16, %c17_17, %c0_18], %13 {strides = array<i32>} : memref<18x24x128xbf16, #tpu.memory_space<vmem>>, vector<16x1x128xbf16>,
    %16 = vector.shape_cast %9 : vector<256x128xbf16> to vector<16x16x128xbf16>
    %c1_19 = arith.constant 1 : index
    %c1_20 = arith.constant 1 : index
    %c0_21 = arith.constant 0 : index
    %17 = vector.load %arg9[%c1_19, %c1_20, %c0_21] : memref<18x24x128xbf16, #tpu.memory_space<vmem>>, vector<16x16x128xbf16>
    tpu.vector_store %arg9[%c1_19, %c1_20, %c0_21], %16 {strides = array<i32>} : memref<18x24x128xbf16, #tpu.memory_space<vmem>>, vector<16x16x128xbf16>,
    %cst_22 = arith.constant 0.000000e+00 : f32
    %18 = vector.broadcast %cst_22 : f32 to vector<256x128xf32>
    %c0_23 = arith.constant 0 : index
    %c0_24 = arith.constant 0 : index
    %c0_25 = arith.constant 0 : index
    %19 = vector.load %arg9[%c0_23, %c0_24, %c0_25] : memref<18x24x128xbf16, #tpu.memory_space<vmem>>, vector<16x16x128xbf16>
    %20 = vector.shape_cast %19 : vector<16x16x128xbf16> to vector<256x128xbf16>
    %c0_26 = arith.constant 0 : index
    %c0_27 = arith.constant 0 : index
    %c0_28 = arith.constant 0 : index
    %21 = vector.load %arg4[%c0_26, %c0_27, %c0_28] : memref<9x128x128xbf16, #tpu.memory_space<vmem>>, vector<1x128x128xbf16>
    %22 = vector.shape_cast %21 : vector<1x128x128xbf16> to vector<128x128xbf16>
    %cst_29 = arith.constant dense<0.000000e+00> : vector<256x128xf32>
    %23 = tpu.matmul %20, %22, %cst_29 {dimension_numbers = #tpu.dot_dimension_numbers<[1], [0], [0], [1], [0, 0, 1, 1], [], []>} : vector<256x128xbf16>, vector<128x128xbf16>, vector<256x128xf32> -> vector<256x128xf32>
    %24 = arith.addf %18, %23 : vector<256x128xf32>
    %c0_30 = arith.constant 0 : index
    %c1_31 = arith.constant 1 : index
    %c0_32 = arith.constant 0 : index
    %25 = vector.load %arg9[%c0_30, %c1_31, %c0_32] : memref<18x24x128xbf16, #tpu.memory_space<vmem>>, vector<16x16x128xbf16>
    %26 = vector.shape_cast %25 : vector<16x16x128xbf16> to vector<256x128xbf16>
    %c1_33 = arith.constant 1 : index
    %c0_34 = arith.constant 0 : index
    %c0_35 = arith.constant 0 : index
    %27 = vector.load %arg4[%c1_33, %c0_34, %c0_35] : memref<9x128x128xbf16, #tpu.memory_space<vmem>>, vector<1x128x128xbf16>
    %28 = vector.shape_cast %27 : vector<1x128x128xbf16> to vector<128x128xbf16>
    %cst_36 = arith.constant dense<0.000000e+00> : vector<256x128xf32>
    %29 = tpu.matmul %26, %28, %cst_36 {dimension_numbers = #tpu.dot_dimension_numbers<[1], [0], [0], [1], [0, 0, 1, 1], [], []>} : vector<256x128xbf16>, vector<128x128xbf16>, vector<256x128xf32> -> vector<256x128xf32>
    %30 = arith.addf %24, %29 : vector<256x128xf32>
    %c0_37 = arith.constant 0 : index
    %c2 = arith.constant 2 : index
    %c0_38 = arith.constant 0 : index
    %31 = vector.load %arg9[%c0_37, %c2, %c0_38] : memref<18x24x128xbf16, #tpu.memory_space<vmem>>, vector<16x16x128xbf16>
    %32 = vector.shape_cast %31 : vector<16x16x128xbf16> to vector<256x128xbf16>
    %c2_39 = arith.constant 2 : index
    %c0_40 = arith.constant 0 : index
    %c0_41 = arith.constant 0 : index
    %33 = vector.load %arg4[%c2_39, %c0_40, %c0_41] : memref<9x128x128xbf16, #tpu.memory_space<vmem>>, vector<1x128x128xbf16>
    %34 = vector.shape_cast %33 : vector<1x128x128xbf16> to vector<128x128xbf16>
    %cst_42 = arith.constant dense<0.000000e+00> : vector<256x128xf32>
    %35 = tpu.matmul %32, %34, %cst_42 {dimension_numbers = #tpu.dot_dimension_numbers<[1], [0], [0], [1], [0, 0, 1, 1], [], []>} : vector<256x128xbf16>, vector<128x128xbf16>, vector<256x128xf32> -> vector<256x128xf32>
    %36 = arith.addf %30, %35 : vector<256x128xf32>
    %c1_43 = arith.constant 1 : index
    %c0_44 = arith.constant 0 : index
    %c0_45 = arith.constant 0 : index
    %37 = vector.load %arg9[%c1_43, %c0_44, %c0_45] : memref<18x24x128xbf16, #tpu.memory_space<vmem>>, vector<16x16x128xbf16>
    %38 = vector.shape_cast %37 : vector<16x16x128xbf16> to vector<256x128xbf16>
    %c3 = arith.constant 3 : index
    %c0_46 = arith.constant 0 : index
    %c0_47 = arith.constant 0 : index
    %39 = vector.load %arg4[%c3, %c0_46, %c0_47] : memref<9x128x128xbf16, #tpu.memory_space<vmem>>, vector<1x128x128xbf16>
    %40 = vector.shape_cast %39 : vector<1x128x128xbf16> to vector<128x128xbf16>
    %cst_48 = arith.constant dense<0.000000e+00> : vector<256x128xf32>
    %41 = tpu.matmul %38, %40, %cst_48 {dimension_numbers = #tpu.dot_dimension_numbers<[1], [0], [0], [1], [0, 0, 1, 1], [], []>} : vector<256x128xbf16>, vector<128x128xbf16>, vector<256x128xf32> -> vector<256x128xf32>
    %42 = arith.addf %36, %41 : vector<256x128xf32>
    %c1_49 = arith.constant 1 : index
    %c1_50 = arith.constant 1 : index
    %c0_51 = arith.constant 0 : index
    %43 = vector.load %arg9[%c1_49, %c1_50, %c0_51] : memref<18x24x128xbf16, #tpu.memory_space<vmem>>, vector<16x16x128xbf16>
    %44 = vector.shape_cast %43 : vector<16x16x128xbf16> to vector<256x128xbf16>
    %c4 = arith.constant 4 : index
    %c0_52 = arith.constant 0 : index
    %c0_53 = arith.constant 0 : index
    %45 = vector.load %arg4[%c4, %c0_52, %c0_53] : memref<9x128x128xbf16, #tpu.memory_space<vmem>>, vector<1x128x128xbf16>
    %46 = vector.shape_cast %45 : vector<1x128x128xbf16> to vector<128x128xbf16>
    %cst_54 = arith.constant dense<0.000000e+00> : vector<256x128xf32>
    %47 = tpu.matmul %44, %46, %cst_54 {dimension_numbers = #tpu.dot_dimension_numbers<[1], [0], [0], [1], [0, 0, 1, 1], [], []>} : vector<256x128xbf16>, vector<128x128xbf16>, vector<256x128xf32> -> vector<256x128xf32>
    %48 = arith.addf %42, %47 : vector<256x128xf32>
    %c1_55 = arith.constant 1 : index
    %c2_56 = arith.constant 2 : index
    %c0_57 = arith.constant 0 : index
    %49 = vector.load %arg9[%c1_55, %c2_56, %c0_57] : memref<18x24x128xbf16, #tpu.memory_space<vmem>>, vector<16x16x128xbf16>
    %50 = vector.shape_cast %49 : vector<16x16x128xbf16> to vector<256x128xbf16>
    %c5 = arith.constant 5 : index
    %c0_58 = arith.constant 0 : index
    %c0_59 = arith.constant 0 : index
    %51 = vector.load %arg4[%c5, %c0_58, %c0_59] : memref<9x128x128xbf16, #tpu.memory_space<vmem>>, vector<1x128x128xbf16>
    %52 = vector.shape_cast %51 : vector<1x128x128xbf16> to vector<128x128xbf16>
    %cst_60 = arith.constant dense<0.000000e+00> : vector<256x128xf32>
    %53 = tpu.matmul %50, %52, %cst_60 {dimension_numbers = #tpu.dot_dimension_numbers<[1], [0], [0], [1], [0, 0, 1, 1], [], []>} : vector<256x128xbf16>, vector<128x128xbf16>, vector<256x128xf32> -> vector<256x128xf32>
    %54 = arith.addf %48, %53 : vector<256x128xf32>
    %c2_61 = arith.constant 2 : index
    %c0_62 = arith.constant 0 : index
    %c0_63 = arith.constant 0 : index
    %55 = vector.load %arg9[%c2_61, %c0_62, %c0_63] : memref<18x24x128xbf16, #tpu.memory_space<vmem>>, vector<16x16x128xbf16>
    %56 = vector.shape_cast %55 : vector<16x16x128xbf16> to vector<256x128xbf16>
    %c6 = arith.constant 6 : index
    %c0_64 = arith.constant 0 : index
    %c0_65 = arith.constant 0 : index
    %57 = vector.load %arg4[%c6, %c0_64, %c0_65] : memref<9x128x128xbf16, #tpu.memory_space<vmem>>, vector<1x128x128xbf16>
    %58 = vector.shape_cast %57 : vector<1x128x128xbf16> to vector<128x128xbf16>
    %cst_66 = arith.constant dense<0.000000e+00> : vector<256x128xf32>
    %59 = tpu.matmul %56, %58, %cst_66 {dimension_numbers = #tpu.dot_dimension_numbers<[1], [0], [0], [1], [0, 0, 1, 1], [], []>} : vector<256x128xbf16>, vector<128x128xbf16>, vector<256x128xf32> -> vector<256x128xf32>
    %60 = arith.addf %54, %59 : vector<256x128xf32>
    %c2_67 = arith.constant 2 : index
    %c1_68 = arith.constant 1 : index
    %c0_69 = arith.constant 0 : index
    %61 = vector.load %arg9[%c2_67, %c1_68, %c0_69] : memref<18x24x128xbf16, #tpu.memory_space<vmem>>, vector<16x16x128xbf16>
    %62 = vector.shape_cast %61 : vector<16x16x128xbf16> to vector<256x128xbf16>
    %c7 = arith.constant 7 : index
    %c0_70 = arith.constant 0 : index
    %c0_71 = arith.constant 0 : index
    %63 = vector.load %arg4[%c7, %c0_70, %c0_71] : memref<9x128x128xbf16, #tpu.memory_space<vmem>>, vector<1x128x128xbf16>
    %64 = vector.shape_cast %63 : vector<1x128x128xbf16> to vector<128x128xbf16>
    %cst_72 = arith.constant dense<0.000000e+00> : vector<256x128xf32>
    %65 = tpu.matmul %62, %64, %cst_72 {dimension_numbers = #tpu.dot_dimension_numbers<[1], [0], [0], [1], [0, 0, 1, 1], [], []>} : vector<256x128xbf16>, vector<128x128xbf16>, vector<256x128xf32> -> vector<256x128xf32>
    %66 = arith.addf %60, %65 : vector<256x128xf32>
    %c2_73 = arith.constant 2 : index
    %c2_74 = arith.constant 2 : index
    %c0_75 = arith.constant 0 : index
    %67 = vector.load %arg9[%c2_73, %c2_74, %c0_75] : memref<18x24x128xbf16, #tpu.memory_space<vmem>>, vector<16x16x128xbf16>
    %68 = vector.shape_cast %67 : vector<16x16x128xbf16> to vector<256x128xbf16>
    %c8 = arith.constant 8 : index
    %c0_76 = arith.constant 0 : index
    %c0_77 = arith.constant 0 : index
    %69 = vector.load %arg4[%c8, %c0_76, %c0_77] : memref<9x128x128xbf16, #tpu.memory_space<vmem>>, vector<1x128x128xbf16>
    %70 = vector.shape_cast %69 : vector<1x128x128xbf16> to vector<128x128xbf16>
    %cst_78 = arith.constant dense<0.000000e+00> : vector<256x128xf32>
    %71 = tpu.matmul %68, %70, %cst_78 {dimension_numbers = #tpu.dot_dimension_numbers<[1], [0], [0], [1], [0, 0, 1, 1], [], []>} : vector<256x128xbf16>, vector<128x128xbf16>, vector<256x128xf32> -> vector<256x128xf32>
    %72 = arith.addf %66, %71 : vector<256x128xf32>
    %c0_79 = arith.constant 0 : index
    %c0_80 = arith.constant 0 : index
    %73 = vector.load %arg5[%c0_79, %c0_80] : memref<1x128xf32, #tpu.memory_space<vmem>>, vector<1x128xf32>
    %74 = vector.broadcast %73 : vector<1x128xf32> to vector<256x128xf32>
    %75 = arith.addf %72, %74 : vector<256x128xf32>
    %cst_81 = arith.constant 0.000000e+00 : f32
    %76 = vector.broadcast %cst_81 : f32 to vector<256x128xf32>
    %77 = arith.maximumf %75, %76 : vector<256x128xf32>
    %78 = arith.truncf %77 : vector<256x128xf32> to vector<256x128xbf16>
    %c0_82 = arith.constant 0 : index
    %c0_83 = arith.constant 0 : index
    %79 = vector.load %arg6[%c0_82, %c0_83] : memref<128x128xbf16, #tpu.memory_space<vmem>>, vector<128x128xbf16>
    %cst_84 = arith.constant dense<0.000000e+00> : vector<256x128xf32>
    %80 = tpu.matmul %78, %79, %cst_84 {dimension_numbers = #tpu.dot_dimension_numbers<[1], [0], [0], [1], [0, 0, 1, 1], [], []>} : vector<256x128xbf16>, vector<128x128xbf16>, vector<256x128xf32> -> vector<256x128xf32>
    %c0_85 = arith.constant 0 : index
    %c0_86 = arith.constant 0 : index
    %81 = vector.load %arg7[%c0_85, %c0_86] : memref<1x128xf32, #tpu.memory_space<vmem>>, vector<1x128xf32>
    %82 = vector.broadcast %81 : vector<1x128xf32> to vector<256x128xf32>
    %83 = arith.addf %80, %82 : vector<256x128xf32>
    %84 = arith.extf %1 : vector<256x128xbf16> to vector<256x128xf32>
    %85 = arith.addf %83, %84 : vector<256x128xf32>
    %cst_87 = arith.constant 0.000000e+00 : f32
    %86 = vector.broadcast %cst_87 : f32 to vector<256x128xf32>
    %87 = arith.maximumf %85, %86 : vector<256x128xf32>
    %88 = arith.truncf %87 : vector<256x128xf32> to vector<256x128xbf16>
    %c0_88 = arith.constant 0 : index
    %c0_89 = arith.constant 0 : index
    %c0_90 = arith.constant 0 : index
    %89 = vector.load %arg8[%c0_88, %c0_89, %c0_90] : memref<1x256x128xbf16, #tpu.memory_space<vmem>>, vector<1x256x128xbf16>
    %90 = vector.shape_cast %89 : vector<1x256x128xbf16> to vector<256x128xbf16>
    %91 = vector.shape_cast %88 : vector<256x128xbf16> to vector<1x256x128xbf16>
    tpu.vector_store %arg8[%c0_88, %c0_89, %c0_90], %91 {strides = array<i32>} : memref<1x256x128xbf16, #tpu.memory_space<vmem>>, vector<1x256x128xbf16>,
    return
  }
  func.func @transform_0(%arg0: i32) -> (i32, i32, i32) {
    %c0_i32 = arith.constant 0 : i32
    %c0_i32_0 = arith.constant 0 : i32
    %c0_i32_1 = arith.constant 0 : i32
    return %arg0, %c0_i32, %c0_i32_0 : i32, i32, i32
  }
  func.func @transform_1(%arg0: i32) -> (i32, i32) {
    %c0_i32 = arith.constant 0 : i32
    %c0_i32_0 = arith.constant 0 : i32
    %c0_i32_1 = arith.constant 0 : i32
    return %c0_i32, %c0_i32_0 : i32, i32
  }
  func.func @transform_2(%arg0: i32) -> (i32, i32) {
    %c0_i32 = arith.constant 0 : i32
    %c0_i32_0 = arith.constant 0 : i32
    %c0_i32_1 = arith.constant 0 : i32
    return %c0_i32, %c0_i32_0 : i32, i32
  }
  func.func @transform_3(%arg0: i32) -> (i32, i32, i32) {
    %c0_i32 = arith.constant 0 : i32
    %c0_i32_0 = arith.constant 0 : i32
    %c0_i32_1 = arith.constant 0 : i32
    %c0_i32_2 = arith.constant 0 : i32
    return %c0_i32, %c0_i32_0, %c0_i32_1 : i32, i32, i32
  }
  func.func @transform_4(%arg0: i32) -> (i32, i32) {
    %c0_i32 = arith.constant 0 : i32
    %c0_i32_0 = arith.constant 0 : i32
    %c0_i32_1 = arith.constant 0 : i32
    return %c0_i32, %c0_i32_0 : i32, i32
  }
  func.func @transform_5(%arg0: i32) -> (i32, i32) {
    %c0_i32 = arith.constant 0 : i32
    %c0_i32_0 = arith.constant 0 : i32
    %c0_i32_1 = arith.constant 0 : i32
    return %c0_i32, %c0_i32_0 : i32, i32
  }
  func.func @transform_6(%arg0: i32) -> (i32, i32) {
    %c0_i32 = arith.constant 0 : i32
    %c0_i32_0 = arith.constant 0 : i32
    %c0_i32_1 = arith.constant 0 : i32
    return %c0_i32, %c0_i32_0 : i32, i32
  }
  func.func @transform_7(%arg0: i32) -> (i32, i32, i32) {
    %c0_i32 = arith.constant 0 : i32
    %c0_i32_0 = arith.constant 0 : i32
    %c0_i32_1 = arith.constant 0 : i32
    return %arg0, %c0_i32, %c0_i32_0 : i32, i32, i32
  }
}

</mosaic_0001>

<llo_original>
// kernel: tpu_custom_call.1
$region0: #{tpu_custom_call.1}
  #allocation0 [shape = 'u32[]', space=smem, size = 0x4, offset = 0x4, fixed_abs, tag = 'smem constant byte address 0x4 - core index']
  #allocation1 [shape = 'u32[144,128]{1,0:T(1,128)}', space=vmem, size = 0x12000, scoped, tag = 'internal scratch']
  #allocation2 [shape = 'bf16[18,24,128]{2,1,0:T(8,128)(2,1)}', space=vmem, size = 0x1b000, scoped, tag = 'scratch operand']
  %s0 = inlined_call_operand.hbm [shape: bf16[2,256,128], index: 0, kind: input, shape index: {}]
  %s1 = inlined_call_operand.hbm [shape: bf16[128,128], index: 1, kind: input, shape index: {}]
  %s2 = inlined_call_operand.vmem [shape: f32[1,128], index: 2, kind: input, shape index: {}]
  %s3 = inlined_call_operand.hbm [shape: bf16[9,128,128], index: 3, kind: input, shape index: {}]
  %s4 = inlined_call_operand.vmem [shape: f32[1,128], index: 4, kind: input, shape index: {}]
  %s5 = inlined_call_operand.hbm [shape: bf16[128,128], index: 5, kind: input, shape index: {}]
  %s6 = inlined_call_operand.vmem [shape: f32[1,128], index: 6, kind: input, shape index: {}]
  %s7 = inlined_call_operand.hbm [shape: bf16[2,256,128], index: 7, kind: output, shape index: {}]
  %s8 = sld [smem:[#allocation0]]
  $region77: #{tpu_custom_call.1} parent=0
    _
  %s10 = ssub.s32 1, %s8
  %s11 = scalar_select 0, %s10, %s8
  $region1: #{tpu_custom_call.1} parent=0
    #allocation3 [shape = 'u8[131072]{0}', space=vmem, size = 0x20000, scoped, tag = 'input window, operand 0']
    #allocation4 [shape = 's32[2]{0}', space=sflag, size = 0x8, scoped, tag = 'scoped memory for tpu_custom_call.1']
    #allocation5 [shape = 's32[2]{0}', space=sflag, size = 0x8, scoped, tag = 'scoped memory for tpu_custom_call.1']
    #allocation6 [shape = 'u8[32768]{0}', space=vmem, size = 0x8000, scoped, tag = 'input window, operand 1, single buffered']
    #allocation7 [shape = 's32[1]{0}', space=sflag, size = 0x4, scoped, tag = 'scoped memory for tpu_custom_call.1']
    #allocation8 [shape = 'u8[294912]{0}', space=vmem, size = 0x48000, scoped, tag = 'input window, operand 3, single buffered']
    #allocation9 [shape = 'u8[32768]{0}', space=vmem, size = 0x8000, scoped, tag = 'input window, operand 5, single buffered']
    #allocation10 [shape = 's32[1]{0}', space=sflag, size = 0x4, scoped, tag = 'scoped memory for tpu_custom_call.1']
    #allocation11 [shape = 'u8[131072]{0}', space=vmem, size = 0x20000, scoped, tag = 'output window, operand 0']
    %12 = vsyncpa [#allocation4], 0
    %s13 = scalar_lea.sflag [#allocation4], 1
    %14 = vsyncpa %s13, 0
    %15 = vsyncpa [#allocation7], 0
    %16 = vsyncpa [#allocation10], 0
    %17 = vsyncpa [#allocation5], 0
    %s18 = scalar_lea.sflag [#allocation5], 1
    %19 = vsyncpa %s18, 0
    loop: start=0, step=1, limit=4
    $region2: #{tpu_custom_call.1} parent=1 // loop_pre_header
      _
    $region3: #{tpu_custom_call.1} parent=1 // loop_header
      %s21 = sphi 0, %s25
      %p22 = scmp.ge.s32.totalorder %s21, 4
      %s31 = sphi 0, %s33
      %s34 = sphi 0, %s31
      %s35 = sphi 0, %s34
      %s51 = sphi 0, %s35
      %s55 = sphi 0, %s55
      %s57 = sphi 0, %s55
      %s58 = sphi 0, %s57
      %s72 = sphi 0, %s58
      %s76 = sphi 0, %s76
      %s78 = sphi 0, %s76
      %s79 = sphi 0, %s78
      %s93 = sphi 0, %s79
      %s97 = sphi 0, %s97
      %s99 = sphi 0, %s97
      %s100 = sphi 0, %s99
      %s114 = sphi 0, %s100
      %s118 = sphi 0, %s118
      %s120 = sphi 0, %s118
      %s121 = sphi 0, %s120
      %s135 = sphi 0, %s121
      %s139 = sphi 0, %s139
      %s141 = sphi 0, %s139
      %s142 = sphi 0, %s141
      %s156 = sphi 0, %s142
      %s160 = sphi 0, %s160
      %s162 = sphi 0, %s160
      %s163 = sphi 0, %s162
      %s177 = sphi 0, %s163
      %s183 = sphi 0, %s185
      %s186 = sphi 0, %s183
      %s187 = sphi 0, %s186
      %s203 = sphi 0, %s187
    $region4: #{tpu_custom_call.1} parent=1 // loop_header_branch
      %24 = sbr.rel (%p22) target = $region8
    $region5: #{tpu_custom_call.1} parent=1 // loop_body
      %s26 = ssub.s32 %s21, 1
      %s27 = ssub.s32 %s21, 2
      %s28 = sadd.s32 %s21, 1
      %s29 = ssub.s32 %s21, %s28
      %p30 = scmp.eq.s32.totalorder %s29, 0
      %s32 = sadd.s32 %s31, 1
      %s33 = scalar_select %p30, %s31, %s32
      %p36 = pneg %p30
      %p37 = scmp.eq.s32.totalorder %s21, 1
      %p38 = por %p36, %p37
      %p39 = scmp.ne.s32.totalorder %s31, %s34
      %p40 = scmp.eq.s32.totalorder %s21, 0
      %p41 = por %p39, %p40
      %p42 = scmp.ne.s32.totalorder %s31, %s34
      %p43 = scmp.eq.s32.totalorder %s26, 1
      %p44 = por %p42, %p43
      %p45 = scmp.ne.s32.totalorder %s34, %s35
      %p46 = scmp.eq.s32.totalorder %s26, 0
      %p47 = por %p45, %p46
      %p48 = scmp.ne.s32.totalorder %s34, %s35
      %p49 = scmp.eq.s32.totalorder %s27, 1
      %p50 = por %p48, %p49
      %p52 = scmp.ne.s32.totalorder %s35, %s51
      %p53 = scmp.eq.s32.totalorder %s27, 0
      %p54 = por %p52, %p53
      %s56 = sadd.s32 %s55, 1
      %p59 = scmp.eq.s32.totalorder %s21, 1
      %p60 = scmp.ne.s32.totalorder %s55, %s57
      %p61 = scmp.eq.s32.totalorder %s21, 0
      %p62 = por %p60, %p61
      %p63 = scmp.ne.s32.totalorder %s55, %s57
      %p64 = scmp.eq.s32.totalorder %s26, 1
      %p65 = por %p63, %p64
      %p66 = scmp.ne.s32.totalorder %s57, %s58
      %p67 = scmp.eq.s32.totalorder %s26, 0
      %p68 = por %p66, %p67
      %p69 = scmp.ne.s32.totalorder %s57, %s58
      %p70 = scmp.eq.s32.totalorder %s27, 1
      %p71 = por %p69, %p70
      %p73 = scmp.ne.s32.totalorder %s58, %s72
      %p74 = scmp.eq.s32.totalorder %s27, 0
      %p75 = por %p73, %p74
      %s77 = sadd.s32 %s76, 1
      %p80 = scmp.eq.s32.totalorder %s21, 1
      %p81 = scmp.ne.s32.totalorder %s76, %s78
      %p82 = scmp.eq.s32.totalorder %s21, 0
      %p83 = por %p81, %p82
      %p84 = scmp.ne.s32.totalorder %s76, %s78
      %p85 = scmp.eq.s32.totalorder %s26, 1
      %p86 = por %p84, %p85
      %p87 = scmp.ne.s32.totalorder %s78, %s79
      %p88 = scmp.eq.s32.totalorder %s26, 0
      %p89 = por %p87, %p88
      %p90 = scmp.ne.s32.totalorder %s78, %s79
      %p91 = scmp.eq.s32.totalorder %s27, 1
      %p92 = por %p90, %p91
      %p94 = scmp.ne.s32.totalorder %s79, %s93
      %p95 = scmp.eq.s32.totalorder %s27, 0
      %p96 = por %p94, %p95
      %s98 = sadd.s32 %s97, 1
      %p101 = scmp.eq.s32.totalorder %s21, 1
      %p102 = scmp.ne.s32.totalorder %s97, %s99
      %p103 = scmp.eq.s32.totalorder %s21, 0
      %p104 = por %p102, %p103
      %p105 = scmp.ne.s32.totalorder %s97, %s99
      %p106 = scmp.eq.s32.totalorder %s26, 1
      %p107 = por %p105, %p106
      %p108 = scmp.ne.s32.totalorder %s99, %s100
      %p109 = scmp.eq.s32.totalorder %s26, 0
      %p110 = por %p108, %p109
      %p111 = scmp.ne.s32.totalorder %s99, %s100
      %p112 = scmp.eq.s32.totalorder %s27, 1
      %p113 = por %p111, %p112
      %p115 = scmp.ne.s32.totalorder %s100, %s114
      %p116 = scmp.eq.s32.totalorder %s27, 0
      %p117 = por %p115, %p116
      %s119 = sadd.s32 %s118, 1
      %p122 = scmp.eq.s32.totalorder %s21, 1
      %p123 = scmp.ne.s32.totalorder %s118, %s120
      %p124 = scmp.eq.s32.totalorder %s21, 0
      %p125 = por %p123, %p124
      %p126 = scmp.ne.s32.totalorder %s118, %s120
      %p127 = scmp.eq.s32.totalorder %s26, 1
      %p128 = por %p126, %p127
      %p129 = scmp.ne.s32.totalorder %s120, %s121
      %p130 = scmp.eq.s32.totalorder %s26, 0
      %p131 = por %p129, %p130
      %p132 = scmp.ne.s32.totalorder %s120, %s121
      %p133 = scmp.eq.s32.totalorder %s27, 1
      %p134 = por %p132, %p133
      %p136 = scmp.ne.s32.totalorder %s121, %s135
      %p137 = scmp.eq.s32.totalorder %s27, 0
      %p138 = por %p136, %p137
      %s140 = sadd.s32 %s139, 1
      %p143 = scmp.eq.s32.totalorder %s21, 1
      %p144 = scmp.ne.s32.totalorder %s139, %s141
      %p145 = scmp.eq.s32.totalorder %s21, 0
      %p146 = por %p144, %p145
      %p147 = scmp.ne.s32.totalorder %s139, %s141
      %p148 = scmp.eq.s32.totalorder %s26, 1
      %p149 = por %p147, %p148
      %p150 = scmp.ne.s32.totalorder %s141, %s142
      %p151 = scmp.eq.s32.totalorder %s26, 0
      %p152 = por %p150, %p151
      %p153 = scmp.ne.s32.totalorder %s141, %s142
      %p154 = scmp.eq.s32.totalorder %s27, 1
      %p155 = por %p153, %p154
      %p157 = scmp.ne.s32.totalorder %s142, %s156
      %p158 = scmp.eq.s32.totalorder %s27, 0
      %p159 = por %p157, %p158
      %s161 = sadd.s32 %s160, 1
      %p164 = scmp.eq.s32.totalorder %s21, 1
      %p165 = scmp.ne.s32.totalorder %s160, %s162
      %p166 = scmp.eq.s32.totalorder %s21, 0
      %p167 = por %p165, %p166
      %p168 = scmp.ne.s32.totalorder %s160, %s162
      %p169 = scmp.eq.s32.totalorder %s26, 1
      %p170 = por %p168, %p169
      %p171 = scmp.ne.s32.totalorder %s162, %s163
      %p172 = scmp.eq.s32.totalorder %s26, 0
      %p173 = por %p171, %p172
      %p174 = scmp.ne.s32.totalorder %s162, %s163
      %p175 = scmp.eq.s32.totalorder %s27, 1
      %p176 = por %p174, %p175
      %p178 = scmp.ne.s32.totalorder %s163, %s177
      %p179 = scmp.eq.s32.totalorder %s27, 0
      %p180 = por %p178, %p179
      %s181 = ssub.s32 %s21, %s28
      %p182 = scmp.eq.s32.totalorder %s181, 0
      %s184 = sadd.s32 %s183, 1
      %s185 = scalar_select %p182, %s183, %s184
      %p188 = pneg %p182
      %p189 = scmp.eq.s32.totalorder %s21, 1
      %p190 = por %p188, %p189
      %p191 = scmp.ne.s32.totalorder %s183, %s186
      %p192 = scmp.eq.s32.totalorder %s21, 0
      %p193 = por %p191, %p192
      %p194 = scmp.ne.s32.totalorder %s183, %s186
      %p195 = scmp.eq.s32.totalorder %s26, 1
      %p196 = por %p194, %p195
      %p197 = scmp.ne.s32.totalorder %s186, %s187
      %p198 = scmp.eq.s32.totalorder %s26, 0
      %p199 = por %p197, %p198
      %p200 = scmp.ne.s32.totalorder %s186, %s187
      %p201 = scmp.eq.s32.totalorder %s27, 1
      %p202 = por %p200, %p201
      %p204 = scmp.ne.s32.totalorder %s187, %s203
      %p205 = scmp.eq.s32.totalorder %s27, 0
      %p206 = por %p204, %p205
      %p207 = scmp.le.s32.totalorder 1, %s21
      %p208 = scmp.lt.s32.totalorder %s21, 3
      %p209 = pnand %p207, %p208
      %p210 = pneg %p209
      // Predicated region
      $region9: #{tpu_custom_call.1} parent=5 // pred_check
        _
      $region10: #{tpu_custom_call.1} parent=5 // pred_check_branch
        %212 = sbr.rel (%p209) target = $region12
      $region11: #{tpu_custom_call.1} parent=5 // pred_region
        %s213 = ssub.s32 %s21, 1
        // Predicated region
        $region13: #{tpu_custom_call.1} parent=11 // pred_check
          %p214 = pneg %p68
        $region14: #{tpu_custom_call.1} parent=11 // pred_check_branch
          %216 = sbr.rel (%p214) target = $region16
        $region15: #{tpu_custom_call.1} parent=11 // pred_region
          %s218 = ssub.s32 1024, 1024
          %219 = vsyncadd [#allocation7], %s218
          %s220 = sshll.u32 [#allocation6], 4
          %s221 = int_to_ptr.vmem [resolvable:$true] %s220
          %226 = dma.hbm_to_vmem [thread:$0]  %s1, 1024, %s221, [#allocation7], 64, 64, 4
        $region16: #{tpu_custom_call.1} parent=11 // pred_fallthru
          _
        // Predicated region
        $region17: #{tpu_custom_call.1} parent=11 // pred_check
          %p227 = pneg %p89
        $region18: #{tpu_custom_call.1} parent=11 // pred_check_branch
          %229 = sbr.rel (%p227) target = $region20
        $region19: #{tpu_custom_call.1} parent=11 // pred_region
          _
        $region20: #{tpu_custom_call.1} parent=11 // pred_fallthru
          _
        // Predicated region
        $region21: #{tpu_custom_call.1} parent=11 // pred_check
          %p230 = pneg %p110
        $region22: #{tpu_custom_call.1} parent=11 // pred_check_branch
          %232 = sbr.rel (%p230) target = $region24
        $region23: #{tpu_custom_call.1} parent=11 // pred_region
          %s234 = ssub.s32 9216, 9216
          %235 = vsyncadd [#allocation7], %s234
          %s236 = sshll.u32 [#allocation8], 4
          %s237 = int_to_ptr.vmem [resolvable:$true] %s236
          %242 = dma.hbm_to_vmem [thread:$0]  %s3, 9216, %s237, [#allocation7], 64, 64, 4
        $region24: #{tpu_custom_call.1} parent=11 // pred_fallthru
          _
        // Predicated region
        $region25: #{tpu_custom_call.1} parent=11 // pred_check
          %p243 = pneg %p131
        $region26: #{tpu_custom_call.1} parent=11 // pred_check_branch
          %245 = sbr.rel (%p243) target = $region28
        $region27: #{tpu_custom_call.1} parent=11 // pred_region
          _
        $region28: #{tpu_custom_call.1} parent=11 // pred_fallthru
          _
        // Predicated region
        $region29: #{tpu_custom_call.1} parent=11 // pred_check
          %p246 = pneg %p152
        $region30: #{tpu_custom_call.1} parent=11 // pred_check_branch
          %248 = sbr.rel (%p246) target = $region32
        $region31: #{tpu_custom_call.1} parent=11 // pred_region
          %s250 = ssub.s32 1024, 1024
          %251 = vsyncadd [#allocation10], %s250
          %s252 = sshll.u32 [#allocation9], 4
          %s253 = int_to_ptr.vmem [resolvable:$true] %s252
          %258 = dma.hbm_to_vmem [thread:$0]  %s5, 1024, %s253, [#allocation10], 64, 64, 4
        $region32: #{tpu_custom_call.1} parent=11 // pred_fallthru
          _
        // Predicated region
        $region33: #{tpu_custom_call.1} parent=11 // pred_check
          %p259 = pneg %p173
        $region34: #{tpu_custom_call.1} parent=11 // pred_check_branch
          %261 = sbr.rel (%p259) target = $region36
        $region35: #{tpu_custom_call.1} parent=11 // pred_region
          _
        $region36: #{tpu_custom_call.1} parent=11 // pred_fallthru
          _
      $region12: #{tpu_custom_call.1} parent=5 // pred_fallthru
        _
      %p262 = scmp.lt.s32.totalorder %s21, 2
      // Predicated region
      $region37: #{tpu_custom_call.1} parent=5 // pred_check
        %p263 = pneg %p262
      $region38: #{tpu_custom_call.1} parent=5 // pred_check_branch
        %265 = sbr.rel (%p263) target = $region40
      $region39: #{tpu_custom_call.1} parent=5 // pred_region
        // Predicated region
        $region41: #{tpu_custom_call.1} parent=39 // pred_check
          %p266 = pneg %p41
        $region42: #{tpu_custom_call.1} parent=39 // pred_check_branch
          %268 = sbr.rel (%p266) target = $region44
        $region43: #{tpu_custom_call.1} parent=39 // pred_region
          %s269 = sand.u32 %s31, 1
          %s270 = scalar_lea.sflag [#allocation4], %s269
          %s271 = sand.u32 %s31, 1
          %s272 = smul.addr %s271, 128
          %s273 = scalar_lea.vmem [#allocation3], %s272
          %s275 = ssub.s32 2048, 2048
          %276 = vsyncadd %s270, %s275
          %s277 = smul.addr %s21, 32
          %s278 = smul.addr %s277, 64
          %s279 = scalar_lea.hbm %s0, %s278
          %s280 = sshll.u32 %s273, 4
          %s281 = int_to_ptr.vmem [resolvable:$true] %s280
          %286 = dma.hbm_to_vmem [thread:$0]  %s279, 2048, %s281, %s270, 64, 64, 4
        $region44: #{tpu_custom_call.1} parent=39 // pred_fallthru
          _
      $region40: #{tpu_custom_call.1} parent=5 // pred_fallthru
        _
      %p287 = scmp.le.s32.totalorder 1, %s21
      %p288 = scmp.lt.s32.totalorder %s21, 3
      %p289 = pnand %p287, %p288
      %p290 = pneg %p289
      // Predicated region
      $region45: #{tpu_custom_call.1} parent=5 // pred_check
        _
      $region46: #{tpu_custom_call.1} parent=5 // pred_check_branch
        %292 = sbr.rel (%p289) target = $region48
      $region47: #{tpu_custom_call.1} parent=5 // pred_region
        %s293 = ssub.s32 %s21, 1
        %s294 = sand.u32 %s34, 1
        %s295 = scalar_lea.sflag [#allocation4], %s294
        %s296 = sand.u32 %s34, 1
        %s297 = smul.addr %s296, 128
        %s298 = scalar_lea.vmem [#allocation3], %s297
        // Predicated region
        $region49: #{tpu_custom_call.1} parent=47 // pred_check
          %p299 = pneg %p47
        $region50: #{tpu_custom_call.1} parent=47 // pred_check_branch
          %301 = sbr.rel (%p299) target = $region52
        $region51: #{tpu_custom_call.1} parent=47 // pred_region
          %302 = dma.done %s295, 2048
        $region52: #{tpu_custom_call.1} parent=47 // pred_fallthru
          _
        // Predicated region
        $region53: #{tpu_custom_call.1} parent=47 // pred_check
          %p303 = pneg %p68
        $region54: #{tpu_custom_call.1} parent=47 // pred_check_branch
          %305 = sbr.rel (%p303) target = $region56
        $region55: #{tpu_custom_call.1} parent=47 // pred_region
          %306 = dma.done [#allocation7], 1024
        $region56: #{tpu_custom_call.1} parent=47 // pred_fallthru
          _
        // Predicated region
        $region57: #{tpu_custom_call.1} parent=47 // pred_check
          %p307 = pneg %p110
        $region58: #{tpu_custom_call.1} parent=47 // pred_check_branch
          %309 = sbr.rel (%p307) target = $region60
        $region59: #{tpu_custom_call.1} parent=47 // pred_region
          %310 = dma.done [#allocation7], 9216
        $region60: #{tpu_custom_call.1} parent=47 // pred_fallthru
          _
        // Predicated region
        $region61: #{tpu_custom_call.1} parent=47 // pred_check
          %p311 = pneg %p152
        $region62: #{tpu_custom_call.1} parent=47 // pred_check_branch
          %313 = sbr.rel (%p311) target = $region64
        $region63: #{tpu_custom_call.1} parent=47 // pred_region
          %314 = dma.done [#allocation10], 1024
        $region64: #{tpu_custom_call.1} parent=47 // pred_fallthru
          _
        %s315 = sand.u32 %s34, 1
        %s316 = scalar_lea.sflag [#allocation4], %s315
        %s317 = sand.u32 %s34, 1
        %s318 = smul.addr %s317, 128
        %s319 = scalar_lea.vmem [#allocation3], %s318
        %p320 = pneg %p47
        %p321 = pneg %p44
        %p322 = pneg %p68
        %p323 = pneg %p65
        %p324 = pneg %p89
        %p325 = pneg %p86
        %p326 = pneg %p110
        %p327 = pneg %p107
        %p328 = pneg %p131
        %p329 = pneg %p128
        %p330 = pneg %p152
        %p331 = pneg %p149
        %p332 = pneg %p173
        %p333 = pneg %p170
        %p334 = pneg %p199
        %p335 = pneg %p196
        %s336 = sand.u32 %s186, 1
        %s337 = scalar_lea.sflag [#allocation5], %s336
        %s338 = sand.u32 %s186, 1
        %s339 = smul.addr %s338, 128
        %s340 = scalar_lea.vmem [#allocation11], %s339
        %v342 = vld [vmem:[%s298] sm:$0xf]
        %v343 = vld [vmem:[%s298 + $0x4] sm:$0xf]
        %v344 = vld [vmem:[%s298 + $0x8] sm:$0xf]
        %v345 = vld [vmem:[%s298 + $0xc] sm:$0xf]
        %v346 = vld [vmem:[%s298 + $0x10] sm:$0xf]
        %v347 = vld [vmem:[%s298 + $0x14] sm:$0xf]
        %v348 = vld [vmem:[%s298 + $0x18] sm:$0xf]
        %v349 = vld [vmem:[%s298 + $0x1c] sm:$0xf]
        %v350 = vld [vmem:[%s298 + $0x20] sm:$0xf]
        %v351 = vld [vmem:[%s298 + $0x24] sm:$0xf]
        %v352 = vld [vmem:[%s298 + $0x28] sm:$0xf]
        %v353 = vld [vmem:[%s298 + $0x2c] sm:$0xf]
        %v354 = vld [vmem:[%s298 + $0x30] sm:$0xf]
        %v355 = vld [vmem:[%s298 + $0x34] sm:$0xf]
        %v356 = vld [vmem:[%s298 + $0x38] sm:$0xf]
        %v357 = vld [vmem:[%s298 + $0x3c] sm:$0xf]
        %v358 = vld [vmem:[%s298 + $0x40] sm:$0xf]
        %v359 = vld [vmem:[%s298 + $0x44] sm:$0xf]
        %v360 = vld [vmem:[%s298 + $0x48] sm:$0xf]
        %v361 = vld [vmem:[%s298 + $0x4c] sm:$0xf]
        %v362 = vld [vmem:[%s298 + $0x50] sm:$0xf]
        %v363 = vld [vmem:[%s298 + $0x54] sm:$0xf]
        %v364 = vld [vmem:[%s298 + $0x58] sm:$0xf]
        %v365 = vld [vmem:[%s298 + $0x5c] sm:$0xf]
        %v366 = vld [vmem:[%s298 + $0x60] sm:$0xf]
        %v367 = vld [vmem:[%s298 + $0x64] sm:$0xf]
        %v368 = vld [vmem:[%s298 + $0x68] sm:$0xf]
        %v369 = vld [vmem:[%s298 + $0x6c] sm:$0xf]
        %v370 = vld [vmem:[%s298 + $0x70] sm:$0xf]
        %v371 = vld [vmem:[%s298 + $0x74] sm:$0xf]
        %v372 = vld [vmem:[%s298 + $0x78] sm:$0xf]
        %v373 = vld [vmem:[%s298 + $0x7c] sm:$0xf]
        %v374 = vld [vmem:[#allocation6] sm:$0xf]
        %v375 = vld [vmem:[#allocation6 + $0x4] sm:$0xf]
        %v376 = vld [vmem:[#allocation6 + $0x8] sm:$0xf]
        %v377 = vld [vmem:[#allocation6 + $0xc] sm:$0xf]
        %v378 = vld [vmem:[#allocation6 + $0x10] sm:$0xf]
        %v379 = vld [vmem:[#allocation6 + $0x14] sm:$0xf]
        %v380 = vld [vmem:[#allocation6 + $0x18] sm:$0xf]
        %v381 = vld [vmem:[#allocation6 + $0x1c] sm:$0xf]
        %v382 = vld [vmem:[#allocation6 + $0x20] sm:$0xf]
        %v383 = vld [vmem:[#allocation6 + $0x24] sm:$0xf]
        %v384 = vld [vmem:[#allocation6 + $0x28] sm:$0xf]
        %v385 = vld [vmem:[#allocation6 + $0x2c] sm:$0xf]
        %v386 = vld [vmem:[#allocation6 + $0x30] sm:$0xf]
        %v387 = vld [vmem:[#allocation6 + $0x34] sm:$0xf]
        %v388 = vld [vmem:[#allocation6 + $0x38] sm:$0xf]
        %v389 = vld [vmem:[#allocation6 + $0x3c] sm:$0xf]
        %v390 = vld [vmem:[%s2] sm:$0x1]
        %v392 = vlaneseq
        %v393 = vshrl.u32 %v392, 7
        %v394 = vsub.s32 0, %v393
        %v395 = vrot.slane %v390, %v394
        %v429 = vunpack.c.l.b16 %v342
        %v430 = vunpack.c.l.b16 %v343
        %v431 = vunpack.c.l.b16 %v344
        %v432 = vunpack.c.l.b16 %v345
        %v433 = vunpack.c.l.b16 %v346
        %v434 = vunpack.c.l.b16 %v347
        %v435 = vunpack.c.l.b16 %v348
        %v436 = vunpack.c.l.b16 %v349
        %v437 = vunpack.c.l.b16 %v350
        %v438 = vunpack.c.l.b16 %v351
        %v439 = vunpack.c.l.b16 %v352
        %v440 = vunpack.c.l.b16 %v353
        %v441 = vunpack.c.l.b16 %v354
        %v442 = vunpack.c.l.b16 %v355
        %v443 = vunpack.c.l.b16 %v356
        %v444 = vunpack.c.l.b16 %v357
        %v445 = vunpack.c.l.b16 %v358
        %v446 = vunpack.c.l.b16 %v359
        %v447 = vunpack.c.l.b16 %v360
        %v448 = vunpack.c.l.b16 %v361
        %v449 = vunpack.c.l.b16 %v362
        %v450 = vunpack.c.l.b16 %v363
        %v451 = vunpack.c.l.b16 %v364
        %v452 = vunpack.c.l.b16 %v365
        %v453 = vunpack.c.l.b16 %v366
        %v454 = vunpack.c.l.b16 %v367
        %v455 = vunpack.c.l.b16 %v368
        %v456 = vunpack.c.l.b16 %v369
        %v457 = vunpack.c.l.b16 %v370
        %v458 = vunpack.c.l.b16 %v371
        %v459 = vunpack.c.l.b16 %v372
        %v460 = vunpack.c.l.b16 %v373
        %v461 = vpack.c.b16 %v430, %v429
        %v462 = vpack.c.b16 %v432, %v431
        %v463 = vpack.c.b16 %v434, %v433
        %v464 = vpack.c.b16 %v436, %v435
        %v465 = vpack.c.b16 %v438, %v437
        %v466 = vpack.c.b16 %v440, %v439
        %v467 = vpack.c.b16 %v442, %v441
        %v468 = vpack.c.b16 %v444, %v443
        %v469 = vpack.c.b16 %v446, %v445
        %v470 = vpack.c.b16 %v448, %v447
        %v471 = vpack.c.b16 %v450, %v449
        %v472 = vpack.c.b16 %v452, %v451
        %v473 = vpack.c.b16 %v454, %v453
        %v474 = vpack.c.b16 %v456, %v455
        %v475 = vpack.c.b16 %v458, %v457
        %v476 = vpack.c.b16 %v460, %v459
        %v509 = vunpack.c.l.b16 %v374
        %v510 = vunpack.c.l.b16 %v375
        %v511 = vunpack.c.l.b16 %v376
        %v512 = vunpack.c.l.b16 %v377
        %v513 = vunpack.c.l.b16 %v378
        %v514 = vunpack.c.l.b16 %v379
        %v515 = vunpack.c.l.b16 %v380
        %v516 = vunpack.c.l.b16 %v381
        %v517 = vunpack.c.l.b16 %v382
        %v518 = vunpack.c.l.b16 %v383
        %v519 = vunpack.c.l.b16 %v384
        %v520 = vunpack.c.l.b16 %v385
        %v521 = vunpack.c.l.b16 %v386
        %v522 = vunpack.c.l.b16 %v387
        %v523 = vunpack.c.l.b16 %v388
        %v524 = vunpack.c.l.b16 %v389
        %v525 = vpack.c.b16 %v510, %v509
        %v526 = vpack.c.b16 %v512, %v511
        %v527 = vpack.c.b16 %v514, %v513
        %v528 = vpack.c.b16 %v516, %v515
        %v529 = vpack.c.b16 %v518, %v517
        %v530 = vpack.c.b16 %v520, %v519
        %v531 = vpack.c.b16 %v522, %v521
        %v532 = vpack.c.b16 %v524, %v523
        %541 = vmatprep.subr.bf16.mxu0 0
        %542 = vmatpush1.bf16.msra.mxu0 %v525
        %543 = vmatprep.subr.bf16.mxu0 0
        %544 = vmatpush1.bf16.msra.mxu0 %v526
        %545 = vmatprep.subr.bf16.mxu0 0
        %546 = vmatpush1.bf16.msra.mxu0 %v527
        %547 = vmatprep.subr.bf16.mxu0 0
        %548 = vmatpush1.bf16.msra.mxu0 %v528
        %549 = vmatprep.subr.bf16.mxu0 0
        %550 = vmatpush1.bf16.msra.mxu0 %v529
        %551 = vmatprep.subr.bf16.mxu0 0
        %552 = vmatpush1.bf16.msra.mxu0 %v530
        %553 = vmatprep.subr.bf16.mxu0 0
        %554 = vmatpush1.bf16.msra.mxu0 %v531
        %555 = vmatprep.subr.bf16.mxu0 0
        %556 = vmatpush1.bf16.msra.mxu0 %v532
        %557 = vmatprep.subr.bf16.mxu0 0
        %558 = vmatpush1.bf16.msra.mxu0 0
        %559 = vmatprep.subr.bf16.mxu0 0
        %560 = vmatpush1.bf16.msra.mxu0 0
        %561 = vmatprep.subr.bf16.mxu0 0
        %562 = vmatpush1.bf16.msra.mxu0 0
        %563 = vmatprep.subr.bf16.mxu0 0
        %564 = vmatpush1.bf16.msra.mxu0 0
        %565 = vmatprep.subr.bf16.mxu0 0
        %566 = vmatpush1.bf16.msra.mxu0 0
        %567 = vmatprep.subr.bf16.mxu0 0
        %568 = vmatpush1.bf16.msra.mxu0 0
        %569 = vmatprep.subr.bf16.mxu0 0
        %570 = vmatpush1.bf16.msra.mxu0 0
        %571 = vmatprep.subr.bf16.mxu0 0
        %572 = vmatpush1.bf16.msra.mxu0 0
        %573 = vmatprep.mubr.bf16.mxu0 0
        %574 = vmatmul.mubr.bf16.gmra.mrb[0].mxu0 %v461
        %v575 = vpop.f32.mrb[0].mxu0
        %v576 = vadd.f32 %v395, %v575
        %v577 = vpop.f32.mrb[0].mxu0
        %v578 = vpop.f32.mrb[0].mxu0
        %v579 = vadd.f32 %v395, %v578
        %v580 = vpop.f32.mrb[0].mxu0
        %581 = vmatprep.mubr.bf16.mxu0 0
        %582 = vmatmul.mubr.bf16.gmra.mrb[0].mxu0 %v462
        %v583 = vpop.f32.mrb[0].mxu0
        %v584 = vadd.f32 %v395, %v583
        %v585 = vpop.f32.mrb[0].mxu0
        %v586 = vpop.f32.mrb[0].mxu0
        %v587 = vadd.f32 %v395, %v586
        %v588 = vpop.f32.mrb[0].mxu0
        %589 = vmatprep.mubr.bf16.mxu0 0
        %590 = vmatmul.mubr.bf16.gmra.mrb[0].mxu0 %v463
        %v591 = vpop.f32.mrb[0].mxu0
        %v592 = vadd.f32 %v395, %v591
        %v593 = vpop.f32.mrb[0].mxu0
        %v594 = vpop.f32.mrb[0].mxu0
        %v595 = vadd.f32 %v395, %v594
        %v596 = vpop.f32.mrb[0].mxu0
        %597 = vmatprep.mubr.bf16.mxu0 0
        %598 = vmatmul.mubr.bf16.gmra.mrb[0].mxu0 %v464
        %v599 = vpop.f32.mrb[0].mxu0
        %v600 = vadd.f32 %v395, %v599
        %v601 = vpop.f32.mrb[0].mxu0
        %v602 = vpop.f32.mrb[0].mxu0
        %v603 = vadd.f32 %v395, %v602
        %v604 = vpop.f32.mrb[0].mxu0
        %605 = vmatprep.mubr.bf16.mxu0 0
        %606 = vmatmul.mubr.bf16.gmra.mrb[0].mxu0 %v465
        %v607 = vpop.f32.mrb[0].mxu0
        %v608 = vadd.f32 %v395, %v607
        %v609 = vpop.f32.mrb[0].mxu0
        %v610 = vpop.f32.mrb[0].mxu0
        %v611 = vadd.f32 %v395, %v610
        %v612 = vpop.f32.mrb[0].mxu0
        %613 = vmatprep.mubr.bf16.mxu0 0
        %614 = vmatmul.mubr.bf16.gmra.mrb[0].mxu0 %v466
        %v615 = vpop.f32.mrb[0].mxu0
        %v616 = vadd.f32 %v395, %v615
        %v617 = vpop.f32.mrb[0].mxu0
        %v618 = vpop.f32.mrb[0].mxu0
        %v619 = vadd.f32 %v395, %v618
        %v620 = vpop.f32.mrb[0].mxu0
        %621 = vmatprep.mubr.bf16.mxu0 0
        %622 = vmatmul.mubr.bf16.gmra.mrb[0].mxu0 %v467
        %v623 = vpop.f32.mrb[0].mxu0
        %v624 = vadd.f32 %v395, %v623
        %v625 = vpop.f32.mrb[0].mxu0
        %v626 = vpop.f32.mrb[0].mxu0
        %v627 = vadd.f32 %v395, %v626
        %v628 = vpop.f32.mrb[0].mxu0
        %629 = vmatprep.mubr.bf16.mxu0 0
        %630 = vmatmul.mubr.bf16.gmra.mrb[0].mxu0 %v468
        %v631 = vpop.f32.mrb[0].mxu0
        %v632 = vadd.f32 %v395, %v631
        %v633 = vpop.f32.mrb[0].mxu0
        %v634 = vpop.f32.mrb[0].mxu0
        %v635 = vadd.f32 %v395, %v634
        %v636 = vpop.f32.mrb[0].mxu0
        %637 = vmatprep.mubr.bf16.mxu0 0
        %638 = vmatmul.mubr.bf16.gmra.mrb[0].mxu0 %v469
        %v639 = vpop.f32.mrb[0].mxu0
        %v640 = vadd.f32 %v395, %v639
        %v641 = vpop.f32.mrb[0].mxu0
        %v642 = vpop.f32.mrb[0].mxu0
        %v643 = vadd.f32 %v395, %v642
        %v644 = vpop.f32.mrb[0].mxu0
        %645 = vmatprep.mubr.bf16.mxu0 0
        %646 = vmatmul.mubr.bf16.gmra.mrb[0].mxu0 %v470
        %v647 = vpop.f32.mrb[0].mxu0
        %v648 = vadd.f32 %v395, %v647
        %v649 = vpop.f32.mrb[0].mxu0
        %v650 = vpop.f32.mrb[0].mxu0
        %v651 = vadd.f32 %v395, %v650
        %v652 = vpop.f32.mrb[0].mxu0
        %653 = vmatprep.mubr.bf16.mxu0 0
        %654 = vmatmul.mubr.bf16.gmra.mrb[0].mxu0 %v471
        %v655 = vpop.f32.mrb[0].mxu0
        %v656 = vadd.f32 %v395, %v655
        %v657 = vpop.f32.mrb[0].mxu0
        %v658 = vpop.f32.mrb[0].mxu0
        %v659 = vadd.f32 %v395, %v658
        %v660 = vpop.f32.mrb[0].mxu0
        %661 = vmatprep.mubr.bf16.mxu0 0
        %662 = vmatmul.mubr.bf16.gmra.mrb[0].mxu0 %v472
        %v663 = vpop.f32.mrb[0].mxu0
        %v664 = vadd.f32 %v395, %v663
        %v665 = vpop.f32.mrb[0].mxu0
        %v666 = vpop.f32.mrb[0].mxu0
        %v667 = vadd.f32 %v395, %v666
        %v668 = vpop.f32.mrb[0].mxu0
        %669 = vmatprep.mubr.bf16.mxu0 0
        %670 = vmatmul.mubr.bf16.gmra.mrb[0].mxu0 %v473
        %v671 = vpop.f32.mrb[0].mxu0
        %v672 = vadd.f32 %v395, %v671
        %v673 = vpop.f32.mrb[0].mxu0
        %v674 = vpop.f32.mrb[0].mxu0
        %v675 = vadd.f32 %v395, %v674
        %v676 = vpop.f32.mrb[0].mxu0
        %677 = vmatprep.mubr.bf16.mxu0 0
        %678 = vmatmul.mubr.bf16.gmra.mrb[0].mxu0 %v474
        %v679 = vpop.f32.mrb[0].mxu0
        %v680 = vadd.f32 %v395, %v679
        %v681 = vpop.f32.mrb[0].mxu0
        %v682 = vpop.f32.mrb[0].mxu0
        %v683 = vadd.f32 %v395, %v682
        %v684 = vpop.f32.mrb[0].mxu0
        %685 = vmatprep.mubr.bf16.mxu0 0
        %686 = vmatmul.mubr.bf16.gmra.mrb[0].mxu0 %v475
        %v687 = vpop.f32.mrb[0].mxu0
        %v688 = vadd.f32 %v395, %v687
        %v689 = vpop.f32.mrb[0].mxu0
        %v690 = vpop.f32.mrb[0].mxu0
        %v691 = vadd.f32 %v395, %v690
        %v692 = vpop.f32.mrb[0].mxu0
        %693 = vmatprep.mubr.bf16.mxu0 0
        %694 = vmatmul.mubr.bf16.gmra.mrb[0].mxu0 %v476
        %v695 = vpop.f32.mrb[0].mxu0
        %v696 = vadd.f32 %v395, %v695
        %v697 = vpop.f32.mrb[0].mxu0
        %v698 = vpop.f32.mrb[0].mxu0
        %v699 = vadd.f32 %v395, %v698
        %v700 = vpop.f32.mrb[0].mxu0
        %701 = vdwg.mxu0
        %v702 = vmax.f32 %v576, 0.0
        %v703 = vmax.f32 %v579, 0.0
        %v704 = vmax.f32 %v584, 0.0
        %v705 = vmax.f32 %v587, 0.0
        %v706 = vmax.f32 %v592, 0.0
        %v707 = vmax.f32 %v595, 0.0
        %v708 = vmax.f32 %v600, 0.0
        %v709 = vmax.f32 %v603, 0.0
        %v710 = vmax.f32 %v608, 0.0
        %v711 = vmax.f32 %v611, 0.0
        %v712 = vmax.f32 %v616, 0.0
        %v713 = vmax.f32 %v619, 0.0
        %v714 = vmax.f32 %v624, 0.0
        %v715 = vmax.f32 %v627, 0.0
        %v716 = vmax.f32 %v632, 0.0
        %v717 = vmax.f32 %v635, 0.0
        %v718 = vmax.f32 %v640, 0.0
        %v719 = vmax.f32 %v643, 0.0
        %v720 = vmax.f32 %v648, 0.0
        %v721 = vmax.f32 %v651, 0.0
        %v722 = vmax.f32 %v656, 0.0
        %v723 = vmax.f32 %v659, 0.0
        %v724 = vmax.f32 %v664, 0.0
        %v725 = vmax.f32 %v667, 0.0
        %v726 = vmax.f32 %v672, 0.0
        %v727 = vmax.f32 %v675, 0.0
        %v728 = vmax.f32 %v680, 0.0
        %v729 = vmax.f32 %v683, 0.0
        %v730 = vmax.f32 %v688, 0.0
        %v731 = vmax.f32 %v691, 0.0
        %v732 = vmax.f32 %v696, 0.0
        %v733 = vmax.f32 %v699, 0.0
        %v734 = vpack.c.bf16 %v703, %v702
        %v735 = vpack.c.bf16 %v705, %v704
        %v736 = vpack.c.bf16 %v707, %v706
        %v737 = vpack.c.bf16 %v709, %v708
        %v738 = vpack.c.bf16 %v711, %v710
        %v739 = vpack.c.bf16 %v713, %v712
        %v740 = vpack.c.bf16 %v715, %v714
        %v741 = vpack.c.bf16 %v717, %v716
        %v742 = vpack.c.bf16 %v719, %v718
        %v743 = vpack.c.bf16 %v721, %v720
        %v744 = vpack.c.bf16 %v723, %v722
        %v745 = vpack.c.bf16 %v725, %v724
        %v746 = vpack.c.bf16 %v727, %v726
        %v747 = vpack.c.bf16 %v729, %v728
        %v748 = vpack.c.bf16 %v731, %v730
        %v749 = vpack.c.bf16 %v733, %v732
        %750 = vst [vmem:[#allocation2] sm:$0xf] 0
        %751 = vst [vmem:[#allocation2 + $0x4] sm:$0xf] 0
        %752 = vst [vmem:[#allocation2 + $0x8] sm:$0xf] 0
        %s753 = scalar_lea.vmem [#allocation2], 204
        %754 = vst [vmem:[%s753] sm:$0xf] 0
        %755 = vst [vmem:[%s753 + $0x4] sm:$0xf] 0
        %756 = vst [vmem:[%s753 + $0x8] sm:$0xf] 0
        %s757 = scalar_lea.vmem [#allocation2], 12
        %vm758 = vcmask 1040384
        %vm759 = vsmask.f32 256
        %vm760 = vmand %vm758, %vm759
        %v761 = vld [vmem:[%s757] sm:$0x1]
        %v762 = vsel %vm760, 0, %v761
        %763 = vst [vmem:[%s757] sm:$0x1] %v762
        %v764 = vld [vmem:[%s757 + $0xc] sm:$0x1]
        %v765 = vsel %vm760, 0, %v764
        %766 = vst [vmem:[%s757 + $0xc] sm:$0x1] %v765
        %v767 = vld [vmem:[%s757 + $0x18] sm:$0x1]
        %v768 = vsel %vm760, 0, %v767
        %769 = vst [vmem:[%s757 + $0x18] sm:$0x1] %v768
        %v770 = vld [vmem:[%s757 + $0x24] sm:$0x1]
        %v771 = vsel %vm760, 0, %v770
        %772 = vst [vmem:[%s757 + $0x24] sm:$0x1] %v771
        %v773 = vld [vmem:[%s757 + $0x30] sm:$0x1]
        %v774 = vsel %vm760, 0, %v773
        %775 = vst [vmem:[%s757 + $0x30] sm:$0x1] %v774
        %v776 = vld [vmem:[%s757 + $0x3c] sm:$0x1]
        %v777 = vsel %vm760, 0, %v776
        %778 = vst [vmem:[%s757 + $0x3c] sm:$0x1] %v777
        %v779 = vld [vmem:[%s757 + $0x48] sm:$0x1]
        %v780 = vsel %vm760, 0, %v779
        %781 = vst [vmem:[%s757 + $0x48] sm:$0x1] %v780
        %v782 = vld [vmem:[%s757 + $0x54] sm:$0x1]
        %v783 = vsel %vm760, 0, %v782
        %784 = vst [vmem:[%s757 + $0x54] sm:$0x1] %v783
        %v785 = vld [vmem:[%s757 + $0x60] sm:$0x1]
        %v786 = vsel %vm760, 0, %v785
        %787 = vst [vmem:[%s757 + $0x60] sm:$0x1] %v786
        %v788 = vld [vmem:[%s757 + $0x6c] sm:$0x1]
        %v789 = vsel %vm760, 0, %v788
        %790 = vst [vmem:[%s757 + $0x6c] sm:$0x1] %v789
        %v791 = vld [vmem:[%s757 + $0x78] sm:$0x1]
        %v792 = vsel %vm760, 0, %v791
        %793 = vst [vmem:[%s757 + $0x78] sm:$0x1] %v792
        %v794 = vld [vmem:[%s757 + $0x84] sm:$0x1]
        %v795 = vsel %vm760, 0, %v794
        %796 = vst [vmem:[%s757 + $0x84] sm:$0x1] %v795
        %v797 = vld [vmem:[%s757 + $0x90] sm:$0x1]
        %v798 = vsel %vm760, 0, %v797
        %799 = vst [vmem:[%s757 + $0x90] sm:$0x1] %v798
        %v800 = vld [vmem:[%s757 + $0x9c] sm:$0x1]
        %v801 = vsel %vm760, 0, %v800
        %802 = vst [vmem:[%s757 + $0x9c] sm:$0x1] %v801
        %v803 = vld [vmem:[%s757 + $0xa8] sm:$0x1]
        %v804 = vsel %vm760, 0, %v803
        %805 = vst [vmem:[%s757 + $0xa8] sm:$0x1] %v804
        %v806 = vld [vmem:[%s757 + $0xb4] sm:$0x1]
        %v807 = vsel %vm760, 0, %v806
        %808 = vst [vmem:[%s757 + $0xb4] sm:$0x1] %v807
        %vm809 = vsmask.f32 7938
        %vm810 = vmand %vm758, %vm809
        %v811 = vld [vmem:[%s757 + $0x8] sm:$0x1]
        %v812 = vsel %vm810, 0, %v811
        %813 = vst [vmem:[%s757 + $0x8] sm:$0x1] %v812
        %v814 = vld [vmem:[%s757 + $0x14] sm:$0x1]
        %v815 = vsel %vm810, 0, %v814
        %816 = vst [vmem:[%s757 + $0x14] sm:$0x1] %v815
        %v817 = vld [vmem:[%s757 + $0x20] sm:$0x1]
        %v818 = vsel %vm810, 0, %v817
        %819 = vst [vmem:[%s757 + $0x20] sm:$0x1] %v818
        %v820 = vld [vmem:[%s757 + $0x2c] sm:$0x1]
        %v821 = vsel %vm810, 0, %v820
        %822 = vst [vmem:[%s757 + $0x2c] sm:$0x1] %v821
        %v823 = vld [vmem:[%s757 + $0x38] sm:$0x1]
        %v824 = vsel %vm810, 0, %v823
        %825 = vst [vmem:[%s757 + $0x38] sm:$0x1] %v824
        %v826 = vld [vmem:[%s757 + $0x44] sm:$0x1]
        %v827 = vsel %vm810, 0, %v826
        %828 = vst [vmem:[%s757 + $0x44] sm:$0x1] %v827
        %v829 = vld [vmem:[%s757 + $0x50] sm:$0x1]
        %v830 = vsel %vm810, 0, %v829
        %831 = vst [vmem:[%s757 + $0x50] sm:$0x1] %v830
        %v832 = vld [vmem:[%s757 + $0x5c] sm:$0x1]
        %v833 = vsel %vm810, 0, %v832
        %834 = vst [vmem:[%s757 + $0x5c] sm:$0x1] %v833
        %v835 = vld [vmem:[%s757 + $0x68] sm:$0x1]
        %v836 = vsel %vm810, 0, %v835
        %837 = vst [vmem:[%s757 + $0x68] sm:$0x1] %v836
        %v838 = vld [vmem:[%s757 + $0x74] sm:$0x1]
        %v839 = vsel %vm810, 0, %v838
        %840 = vst [vmem:[%s757 + $0x74] sm:$0x1] %v839
        %v841 = vld [vmem:[%s757 + $0x80] sm:$0x1]
        %v842 = vsel %vm810, 0, %v841
        %843 = vst [vmem:[%s757 + $0x80] sm:$0x1] %v842
        %v844 = vld [vmem:[%s757 + $0x8c] sm:$0x1]
        %v845 = vsel %vm810, 0, %v844
        %846 = vst [vmem:[%s757 + $0x8c] sm:$0x1] %v845
        %v847 = vld [vmem:[%s757 + $0x98] sm:$0x1]
        %v848 = vsel %vm810, 0, %v847
        %849 = vst [vmem:[%s757 + $0x98] sm:$0x1] %v848
        %v850 = vld [vmem:[%s757 + $0xa4] sm:$0x1]
        %v851 = vsel %vm810, 0, %v850
        %852 = vst [vmem:[%s757 + $0xa4] sm:$0x1] %v851
        %v853 = vld [vmem:[%s757 + $0xb0] sm:$0x1]
        %v854 = vsel %vm810, 0, %v853
        %855 = vst [vmem:[%s757 + $0xb0] sm:$0x1] %v854
        %v856 = vld [vmem:[%s757 + $0xbc] sm:$0x1]
        %v857 = vsel %vm810, 0, %v856
        %858 = vst [vmem:[%s757 + $0xbc] sm:$0x1] %v857
        %v875 = vunpack.c.l.b16 %v734
        %v876 = vunpack.c.h.b16 %v734
        %v877 = vunpack.c.l.b16 %v735
        %v878 = vunpack.c.h.b16 %v735
        %v879 = vunpack.c.l.b16 %v736
        %v880 = vunpack.c.h.b16 %v736
        %v881 = vunpack.c.l.b16 %v737
        %v882 = vunpack.c.h.b16 %v737
        %v883 = vunpack.c.l.b16 %v738
        %v884 = vunpack.c.h.b16 %v738
        %v885 = vunpack.c.l.b16 %v739
        %v886 = vunpack.c.h.b16 %v739
        %v887 = vunpack.c.l.b16 %v740
        %v888 = vunpack.c.h.b16 %v740
        %v889 = vunpack.c.l.b16 %v741
        %v890 = vunpack.c.h.b16 %v741
        %v891 = vunpack.c.l.b16 %v742
        %v892 = vunpack.c.h.b16 %v742
        %v893 = vunpack.c.l.b16 %v743
        %v894 = vunpack.c.h.b16 %v743
        %v895 = vunpack.c.l.b16 %v744
        %v896 = vunpack.c.h.b16 %v744
        %v897 = vunpack.c.l.b16 %v745
        %v898 = vunpack.c.h.b16 %v745
        %v899 = vunpack.c.l.b16 %v746
        %v900 = vunpack.c.h.b16 %v746
        %v901 = vunpack.c.l.b16 %v747
        %v902 = vunpack.c.h.b16 %v747
        %v903 = vunpack.c.l.b16 %v748
        %v904 = vunpack.c.h.b16 %v748
        %v905 = vunpack.c.l.b16 %v749
        %v906 = vunpack.c.h.b16 %v749
        %v907 = vpack.c.b16 %v875, %v875
        %v908 = vpack.c.b16 %v876, %v876
        %v909 = vpack.c.b16 %v877, %v877
        %v910 = vpack.c.b16 %v878, %v878
        %v911 = vpack.c.b16 %v879, %v879
        %v912 = vpack.c.b16 %v880, %v880
        %v913 = vpack.c.b16 %v881, %v881
        %v914 = vpack.c.b16 %v882, %v882
        %v915 = vpack.c.b16 %v883, %v883
        %v916 = vpack.c.b16 %v884, %v884
        %v917 = vpack.c.b16 %v885, %v885
        %v918 = vpack.c.b16 %v886, %v886
        %v919 = vpack.c.b16 %v887, %v887
        %v920 = vpack.c.b16 %v888, %v888
        %v921 = vpack.c.b16 %v889, %v889
        %v922 = vpack.c.b16 %v890, %v890
        %v923 = vpack.c.b16 %v891, %v891
        %v924 = vpack.c.b16 %v892, %v892
        %v925 = vpack.c.b16 %v893, %v893
        %v926 = vpack.c.b16 %v894, %v894
        %v927 = vpack.c.b16 %v895, %v895
        %v928 = vpack.c.b16 %v896, %v896
        %v929 = vpack.c.b16 %v897, %v897
        %v930 = vpack.c.b16 %v898, %v898
        %v931 = vpack.c.b16 %v899, %v899
        %v932 = vpack.c.b16 %v900, %v900
        %v933 = vpack.c.b16 %v901, %v901
        %v934 = vpack.c.b16 %v902, %v902
        %v935 = vpack.c.b16 %v903, %v903
        %v936 = vpack.c.b16 %v904, %v904
        %v937 = vpack.c.b16 %v905, %v905
        %v938 = vpack.c.b16 %v906, %v906
        %vm939 = vsmask.f32 4368
        %vm940 = vmor %vm759, %vm939
        %v942 = vshrl.u32 %v907, 16
        %v944 = vrot.slane %v942, 7
        %v945 = vshll.u32 %v907, 16
        %v947 = vor.u32 %v944, %v945
        %v948 = vrot.slane %v944, 4
        %v950 = vshrl.u32 %v908, 16
        %v952 = vrot.slane %v950, 7
        %v953 = vshll.u32 %v908, 16
        %v955 = vor.u32 %v952, %v953
        %v956 = vsel %vm940, %v948, %v955
        %v957 = vrot.slane %v952, 4
        %v959 = vshrl.u32 %v909, 16
        %v961 = vrot.slane %v959, 7
        %v962 = vshll.u32 %v909, 16
        %v964 = vor.u32 %v961, %v962
        %v965 = vrot.slane %v961, 4
        %v967 = vshrl.u32 %v910, 16
        %v969 = vrot.slane %v967, 7
        %v970 = vshll.u32 %v910, 16
        %v972 = vor.u32 %v969, %v970
        %v973 = vsel %vm940, %v965, %v972
        %v974 = vrot.slane %v969, 4
        %v976 = vshrl.u32 %v911, 16
        %v978 = vrot.slane %v976, 7
        %v979 = vshll.u32 %v911, 16
        %v981 = vor.u32 %v978, %v979
        %v982 = vrot.slane %v978, 4
        %v984 = vshrl.u32 %v912, 16
        %v986 = vrot.slane %v984, 7
        %v987 = vshll.u32 %v912, 16
        %v989 = vor.u32 %v986, %v987
        %v990 = vsel %vm940, %v982, %v989
        %v991 = vrot.slane %v986, 4
        %v993 = vshrl.u32 %v913, 16
        %v995 = vrot.slane %v993, 7
        %v996 = vshll.u32 %v913, 16
        %v998 = vor.u32 %v995, %v996
        %v999 = vrot.slane %v995, 4
        %v1001 = vshrl.u32 %v914, 16
        %v1003 = vrot.slane %v1001, 7
        %v1004 = vshll.u32 %v914, 16
        %v1006 = vor.u32 %v1003, %v1004
        %v1007 = vsel %vm940, %v999, %v1006
        %v1008 = vrot.slane %v1003, 4
        %v1010 = vshrl.u32 %v915, 16
        %v1012 = vrot.slane %v1010, 7
        %v1013 = vshll.u32 %v915, 16
        %v1015 = vor.u32 %v1012, %v1013
        %v1016 = vrot.slane %v1012, 4
        %v1018 = vshrl.u32 %v916, 16
        %v1020 = vrot.slane %v1018, 7
        %v1021 = vshll.u32 %v916, 16
        %v1023 = vor.u32 %v1020, %v1021
        %v1024 = vsel %vm940, %v1016, %v1023
        %v1025 = vrot.slane %v1020, 4
        %v1027 = vshrl.u32 %v917, 16
        %v1029 = vrot.slane %v1027, 7
        %v1030 = vshll.u32 %v917, 16
        %v1032 = vor.u32 %v1029, %v1030
        %v1033 = vrot.slane %v1029, 4
        %v1035 = vshrl.u32 %v918, 16
        %v1037 = vrot.slane %v1035, 7
        %v1038 = vshll.u32 %v918, 16
        %v1040 = vor.u32 %v1037, %v1038
        %v1041 = vsel %vm940, %v1033, %v1040
        %v1042 = vrot.slane %v1037, 4
        %v1044 = vshrl.u32 %v919, 16
        %v1046 = vrot.slane %v1044, 7
        %v1047 = vshll.u32 %v919, 16
        %v1049 = vor.u32 %v1046, %v1047
        %v1050 = vrot.slane %v1046, 4
        %v1052 = vshrl.u32 %v920, 16
        %v1054 = vrot.slane %v1052, 7
        %v1055 = vshll.u32 %v920, 16
        %v1057 = vor.u32 %v1054, %v1055
        %v1058 = vsel %vm940, %v1050, %v1057
        %v1059 = vrot.slane %v1054, 4
        %v1061 = vshrl.u32 %v921, 16
        %v1063 = vrot.slane %v1061, 7
        %v1064 = vshll.u32 %v921, 16
        %v1066 = vor.u32 %v1063, %v1064
        %v1067 = vrot.slane %v1063, 4
        %v1069 = vshrl.u32 %v922, 16
        %v1071 = vrot.slane %v1069, 7
        %v1072 = vshll.u32 %v922, 16
        %v1074 = vor.u32 %v1071, %v1072
        %v1075 = vsel %vm940, %v1067, %v1074
        %v1076 = vrot.slane %v1071, 4
        %v1078 = vshrl.u32 %v923, 16
        %v1080 = vrot.slane %v1078, 7
        %v1081 = vshll.u32 %v923, 16
        %v1083 = vor.u32 %v1080, %v1081
        %v1084 = vrot.slane %v1080, 4
        %v1086 = vshrl.u32 %v924, 16
        %v1088 = vrot.slane %v1086, 7
        %v1089 = vshll.u32 %v924, 16
        %v1091 = vor.u32 %v1088, %v1089
        %v1092 = vsel %vm940, %v1084, %v1091
        %v1093 = vrot.slane %v1088, 4
        %v1095 = vshrl.u32 %v925, 16
        %v1097 = vrot.slane %v1095, 7
        %v1098 = vshll.u32 %v925, 16
        %v1100 = vor.u32 %v1097, %v1098
        %v1101 = vrot.slane %v1097, 4
        %v1103 = vshrl.u32 %v926, 16
        %v1105 = vrot.slane %v1103, 7
        %v1106 = vshll.u32 %v926, 16
        %v1108 = vor.u32 %v1105, %v1106
        %v1109 = vsel %vm940, %v1101, %v1108
        %v1110 = vrot.slane %v1105, 4
        %v1112 = vshrl.u32 %v927, 16
        %v1114 = vrot.slane %v1112, 7
        %v1115 = vshll.u32 %v927, 16
        %v1117 = vor.u32 %v1114, %v1115
        %v1118 = vrot.slane %v1114, 4
        %v1120 = vshrl.u32 %v928, 16
        %v1122 = vrot.slane %v1120, 7
        %v1123 = vshll.u32 %v928, 16
        %v1125 = vor.u32 %v1122, %v1123
        %v1126 = vsel %vm940, %v1118, %v1125
        %v1127 = vrot.slane %v1122, 4
        %v1129 = vshrl.u32 %v929, 16
        %v1131 = vrot.slane %v1129, 7
        %v1132 = vshll.u32 %v929, 16
        %v1134 = vor.u32 %v1131, %v1132
        %v1135 = vrot.slane %v1131, 4
        %v1137 = vshrl.u32 %v930, 16
        %v1139 = vrot.slane %v1137, 7
        %v1140 = vshll.u32 %v930, 16
        %v1142 = vor.u32 %v1139, %v1140
        %v1143 = vsel %vm940, %v1135, %v1142
        %v1144 = vrot.slane %v1139, 4
        %v1146 = vshrl.u32 %v931, 16
        %v1148 = vrot.slane %v1146, 7
        %v1149 = vshll.u32 %v931, 16
        %v1151 = vor.u32 %v1148, %v1149
        %v1152 = vrot.slane %v1148, 4
        %v1154 = vshrl.u32 %v932, 16
        %v1156 = vrot.slane %v1154, 7
        %v1157 = vshll.u32 %v932, 16
        %v1159 = vor.u32 %v1156, %v1157
        %v1160 = vsel %vm940, %v1152, %v1159
        %v1161 = vrot.slane %v1156, 4
        %v1163 = vshrl.u32 %v933, 16
        %v1165 = vrot.slane %v1163, 7
        %v1166 = vshll.u32 %v933, 16
        %v1168 = vor.u32 %v1165, %v1166
        %v1169 = vrot.slane %v1165, 4
        %v1171 = vshrl.u32 %v934, 16
        %v1173 = vrot.slane %v1171, 7
        %v1174 = vshll.u32 %v934, 16
        %v1176 = vor.u32 %v1173, %v1174
        %v1177 = vsel %vm940, %v1169, %v1176
        %v1178 = vrot.slane %v1173, 4
        %v1180 = vshrl.u32 %v935, 16
        %v1182 = vrot.slane %v1180, 7
        %v1183 = vshll.u32 %v935, 16
        %v1185 = vor.u32 %v1182, %v1183
        %v1186 = vrot.slane %v1182, 4
        %v1188 = vshrl.u32 %v936, 16
        %v1190 = vrot.slane %v1188, 7
        %v1191 = vshll.u32 %v936, 16
        %v1193 = vor.u32 %v1190, %v1191
        %v1194 = vsel %vm940, %v1186, %v1193
        %v1195 = vrot.slane %v1190, 4
        %v1197 = vshrl.u32 %v937, 16
        %v1199 = vrot.slane %v1197, 7
        %v1200 = vshll.u32 %v937, 16
        %v1202 = vor.u32 %v1199, %v1200
        %v1203 = vrot.slane %v1199, 4
        %v1205 = vshrl.u32 %v938, 16
        %v1207 = vrot.slane %v1205, 7
        %v1208 = vshll.u32 %v938, 16
        %v1210 = vor.u32 %v1207, %v1208
        %v1211 = vsel %vm940, %v1203, %v1210
        %v1212 = vrot.slane %v1207, 4
        %vm1261 = vcmask 1043456
        %vm1262 = vmand %vm1261, %vm809
        %v1263 = vld [vmem:[%s757] sm:$0xf]
        %v1264 = vsel %vm1262, %v947, %v1263
        %1265 = vst [vmem:[%s757] sm:$0xf] %v1264
        %1266 = vst [vmem:[%s757 + $0x4] sm:$0xf] %v956
        %v1267 = vld [vmem:[%s757 + $0x8] sm:$0x1]
        %v1268 = vsel %vm760, %v957, %v1267
        %1269 = vst [vmem:[%s757 + $0x8] sm:$0x1] %v1268
        %v1270 = vld [vmem:[%s757 + $0xc] sm:$0xf]
        %v1271 = vsel %vm1262, %v964, %v1270
        %1272 = vst [vmem:[%s757 + $0xc] sm:$0xf] %v1271
        %1273 = vst [vmem:[%s757 + $0x10] sm:$0xf] %v973
        %v1274 = vld [vmem:[%s757 + $0x14] sm:$0x1]
        %v1275 = vsel %vm760, %v974, %v1274
        %1276 = vst [vmem:[%s757 + $0x14] sm:$0x1] %v1275
        %v1277 = vld [vmem:[%s757 + $0x18] sm:$0xf]
        %v1278 = vsel %vm1262, %v981, %v1277
        %1279 = vst [vmem:[%s757 + $0x18] sm:$0xf] %v1278
        %1280 = vst [vmem:[%s757 + $0x1c] sm:$0xf] %v990
        %v1281 = vld [vmem:[%s757 + $0x20] sm:$0x1]
        %v1282 = vsel %vm760, %v991, %v1281
        %1283 = vst [vmem:[%s757 + $0x20] sm:$0x1] %v1282
        %v1284 = vld [vmem:[%s757 + $0x24] sm:$0xf]
        %v1285 = vsel %vm1262, %v998, %v1284
        %1286 = vst [vmem:[%s757 + $0x24] sm:$0xf] %v1285
        %1287 = vst [vmem:[%s757 + $0x28] sm:$0xf] %v1007
        %v1288 = vld [vmem:[%s757 + $0x2c] sm:$0x1]
        %v1289 = vsel %vm760, %v1008, %v1288
        %1290 = vst [vmem:[%s757 + $0x2c] sm:$0x1] %v1289
        %v1291 = vld [vmem:[%s757 + $0x30] sm:$0xf]
        %v1292 = vsel %vm1262, %v1015, %v1291
        %1293 = vst [vmem:[%s757 + $0x30] sm:$0xf] %v1292
        %1294 = vst [vmem:[%s757 + $0x34] sm:$0xf] %v1024
        %v1295 = vld [vmem:[%s757 + $0x38] sm:$0x1]
        %v1296 = vsel %vm760, %v1025, %v1295
        %1297 = vst [vmem:[%s757 + $0x38] sm:$0x1] %v1296
        %v1298 = vld [vmem:[%s757 + $0x3c] sm:$0xf]
        %v1299 = vsel %vm1262, %v1032, %v1298
        %1300 = vst [vmem:[%s757 + $0x3c] sm:$0xf] %v1299
        %1301 = vst [vmem:[%s757 + $0x40] sm:$0xf] %v1041
        %v1302 = vld [vmem:[%s757 + $0x44] sm:$0x1]
        %v1303 = vsel %vm760, %v1042, %v1302
        %1304 = vst [vmem:[%s757 + $0x44] sm:$0x1] %v1303
        %v1305 = vld [vmem:[%s757 + $0x48] sm:$0xf]
        %v1306 = vsel %vm1262, %v1049, %v1305
        %1307 = vst [vmem:[%s757 + $0x48] sm:$0xf] %v1306
        %1308 = vst [vmem:[%s757 + $0x4c] sm:$0xf] %v1058
        %v1309 = vld [vmem:[%s757 + $0x50] sm:$0x1]
        %v1310 = vsel %vm760, %v1059, %v1309
        %1311 = vst [vmem:[%s757 + $0x50] sm:$0x1] %v1310
        %v1312 = vld [vmem:[%s757 + $0x54] sm:$0xf]
        %v1313 = vsel %vm1262, %v1066, %v1312
        %1314 = vst [vmem:[%s757 + $0x54] sm:$0xf] %v1313
        %1315 = vst [vmem:[%s757 + $0x58] sm:$0xf] %v1075
        %v1316 = vld [vmem:[%s757 + $0x5c] sm:$0x1]
        %v1317 = vsel %vm760, %v1076, %v1316
        %1318 = vst [vmem:[%s757 + $0x5c] sm:$0x1] %v1317
        %v1319 = vld [vmem:[%s757 + $0x60] sm:$0xf]
        %v1320 = vsel %vm1262, %v1083, %v1319
        %1321 = vst [vmem:[%s757 + $0x60] sm:$0xf] %v1320
        %1322 = vst [vmem:[%s757 + $0x64] sm:$0xf] %v1092
        %v1323 = vld [vmem:[%s757 + $0x68] sm:$0x1]
        %v1324 = vsel %vm760, %v1093, %v1323
        %1325 = vst [vmem:[%s757 + $0x68] sm:$0x1] %v1324
        %v1326 = vld [vmem:[%s757 + $0x6c] sm:$0xf]
        %v1327 = vsel %vm1262, %v1100, %v1326
        %1328 = vst [vmem:[%s757 + $0x6c] sm:$0xf] %v1327
        %1329 = vst [vmem:[%s757 + $0x70] sm:$0xf] %v1109
        %v1330 = vld [vmem:[%s757 + $0x74] sm:$0x1]
        %v1331 = vsel %vm760, %v1110, %v1330
        %1332 = vst [vmem:[%s757 + $0x74] sm:$0x1] %v1331
        %v1333 = vld [vmem:[%s757 + $0x78] sm:$0xf]
        %v1334 = vsel %vm1262, %v1117, %v1333
        %1335 = vst [vmem:[%s757 + $0x78] sm:$0xf] %v1334
        %1336 = vst [vmem:[%s757 + $0x7c] sm:$0xf] %v1126
        %v1337 = vld [vmem:[%s757 + $0x80] sm:$0x1]
        %v1338 = vsel %vm760, %v1127, %v1337
        %1339 = vst [vmem:[%s757 + $0x80] sm:$0x1] %v1338
        %v1340 = vld [vmem:[%s757 + $0x84] sm:$0xf]
        %v1341 = vsel %vm1262, %v1134, %v1340
        %1342 = vst [vmem:[%s757 + $0x84] sm:$0xf] %v1341
        %1343 = vst [vmem:[%s757 + $0x88] sm:$0xf] %v1143
        %v1344 = vld [vmem:[%s757 + $0x8c] sm:$0x1]
        %v1345 = vsel %vm760, %v1144, %v1344
        %1346 = vst [vmem:[%s757 + $0x8c] sm:$0x1] %v1345
        %v1347 = vld [vmem:[%s757 + $0x90] sm:$0xf]
        %v1348 = vsel %vm1262, %v1151, %v1347
        %1349 = vst [vmem:[%s757 + $0x90] sm:$0xf] %v1348
        %1350 = vst [vmem:[%s757 + $0x94] sm:$0xf] %v1160
        %v1351 = vld [vmem:[%s757 + $0x98] sm:$0x1]
        %v1352 = vsel %vm760, %v1161, %v1351
        %1353 = vst [vmem:[%s757 + $0x98] sm:$0x1] %v1352
        %v1354 = vld [vmem:[%s757 + $0x9c] sm:$0xf]
        %v1355 = vsel %vm1262, %v1168, %v1354
        %1356 = vst [vmem:[%s757 + $0x9c] sm:$0xf] %v1355
        %1357 = vst [vmem:[%s757 + $0xa0] sm:$0xf] %v1177
        %v1358 = vld [vmem:[%s757 + $0xa4] sm:$0x1]
        %v1359 = vsel %vm760, %v1178, %v1358
        %1360 = vst [vmem:[%s757 + $0xa4] sm:$0x1] %v1359
        %v1361 = vld [vmem:[%s757 + $0xa8] sm:$0xf]
        %v1362 = vsel %vm1262, %v1185, %v1361
        %1363 = vst [vmem:[%s757 + $0xa8] sm:$0xf] %v1362
        %1364 = vst [vmem:[%s757 + $0xac] sm:$0xf] %v1194
        %v1365 = vld [vmem:[%s757 + $0xb0] sm:$0x1]
        %v1366 = vsel %vm760, %v1195, %v1365
        %1367 = vst [vmem:[%s757 + $0xb0] sm:$0x1] %v1366
        %v1368 = vld [vmem:[%s757 + $0xb4] sm:$0xf]
        %v1369 = vsel %vm1262, %v1202, %v1368
        %1370 = vst [vmem:[%s757 + $0xb4] sm:$0xf] %v1369
        %1371 = vst [vmem:[%s757 + $0xb8] sm:$0xf] %v1211
        %v1372 = vld [vmem:[%s757 + $0xbc] sm:$0x1]
        %v1373 = vsel %vm760, %v1212, %v1372
        %1374 = vst [vmem:[%s757 + $0xbc] sm:$0x1] %v1373
        %v1375 = vld [vmem:[#allocation2] sm:$0xf]
        %v1376 = vld [vmem:[#allocation2 + $0x4] sm:$0xf]
        %v1377 = vld [vmem:[#allocation2 + $0xc] sm:$0xf]
        %v1378 = vld [vmem:[#allocation2 + $0x10] sm:$0xf]
        %v1379 = vld [vmem:[#allocation2 + $0x18] sm:$0xf]
        %v1380 = vld [vmem:[#allocation2 + $0x1c] sm:$0xf]
        %v1381 = vld [vmem:[#allocation2 + $0x24] sm:$0xf]
        %v1382 = vld [vmem:[#allocation2 + $0x28] sm:$0xf]
        %v1383 = vld [vmem:[#allocation2 + $0x30] sm:$0xf]
        %v1384 = vld [vmem:[#allocation2 + $0x34] sm:$0xf]
        %v1385 = vld [vmem:[#allocation2 + $0x3c] sm:$0xf]
        %v1386 = vld [vmem:[#allocation2 + $0x40] sm:$0xf]
        %v1387 = vld [vmem:[#allocation2 + $0x48] sm:$0xf]
        %v1388 = vld [vmem:[#allocation2 + $0x4c] sm:$0xf]
        %v1389 = vld [vmem:[#allocation2 + $0x54] sm:$0xf]
        %v1390 = vld [vmem:[#allocation2 + $0x58] sm:$0xf]
        %v1391 = vld [vmem:[#allocation2 + $0x60] sm:$0xf]
        %v1392 = vld [vmem:[#allocation2 + $0x64] sm:$0xf]
        %v1393 = vld [vmem:[#allocation2 + $0x6c] sm:$0xf]
        %v1394 = vld [vmem:[#allocation2 + $0x70] sm:$0xf]
        %v1395 = vld [vmem:[#allocation2 + $0x78] sm:$0xf]
        %v1396 = vld [vmem:[#allocation2 + $0x7c] sm:$0xf]
        %v1397 = vld [vmem:[#allocation2 + $0x84] sm:$0xf]
        %v1398 = vld [vmem:[#allocation2 + $0x88] sm:$0xf]
        %v1399 = vld [vmem:[#allocation2 + $0x90] sm:$0xf]
        %v1400 = vld [vmem:[#allocation2 + $0x94] sm:$0xf]
        %v1401 = vld [vmem:[#allocation2 + $0x9c] sm:$0xf]
        %v1402 = vld [vmem:[#allocation2 + $0xa0] sm:$0xf]
        %v1403 = vld [vmem:[#allocation2 + $0xa8] sm:$0xf]
        %v1404 = vld [vmem:[#allocation2 + $0xac] sm:$0xf]
        %v1405 = vld [vmem:[#allocation2 + $0xb4] sm:$0xf]
        %v1406 = vld [vmem:[#allocation2 + $0xb8] sm:$0xf]
        %v1407 = vld [vmem:[#allocation8] sm:$0xf]
        %v1408 = vld [vmem:[#allocation8 + $0x4] sm:$0xf]
        %v1409 = vld [vmem:[#allocation8 + $0x8] sm:$0xf]
        %v1410 = vld [vmem:[#allocation8 + $0xc] sm:$0xf]
        %v1411 = vld [vmem:[#allocation8 + $0x10] sm:$0xf]
        %v1412 = vld [vmem:[#allocation8 + $0x14] sm:$0xf]
        %v1413 = vld [vmem:[#allocation8 + $0x18] sm:$0xf]
        %v1414 = vld [vmem:[#allocation8 + $0x1c] sm:$0xf]
        %v1415 = vld [vmem:[#allocation8 + $0x20] sm:$0xf]
        %v1416 = vld [vmem:[#allocation8 + $0x24] sm:$0xf]
        %v1417 = vld [vmem:[#allocation8 + $0x28] sm:$0xf]
        %v1418 = vld [vmem:[#allocation8 + $0x2c] sm:$0xf]
        %v1419 = vld [vmem:[#allocation8 + $0x30] sm:$0xf]
        %v1420 = vld [vmem:[#allocation8 + $0x34] sm:$0xf]
        %v1421 = vld [vmem:[#allocation8 + $0x38] sm:$0xf]
        %v1422 = vld [vmem:[#allocation8 + $0x3c] sm:$0xf]
        %v1423 = vld [vmem:[#allocation2 + $0x8] sm:$0x1]
        %v1424 = vld [vmem:[#allocation2 + $0x14] sm:$0x1]
        %v1425 = vld [vmem:[#allocation2 + $0x20] sm:$0x1]
        %v1426 = vld [vmem:[#allocation2 + $0x2c] sm:$0x1]
        %v1427 = vld [vmem:[#allocation2 + $0x38] sm:$0x1]
        %v1428 = vld [vmem:[#allocation2 + $0x44] sm:$0x1]
        %v1429 = vld [vmem:[#allocation2 + $0x50] sm:$0x1]
        %v1430 = vld [vmem:[#allocation2 + $0x5c] sm:$0x1]
        %v1431 = vld [vmem:[#allocation2 + $0x68] sm:$0x1]
        %v1432 = vld [vmem:[#allocation2 + $0x74] sm:$0x1]
        %v1433 = vld [vmem:[#allocation2 + $0x80] sm:$0x1]
        %v1434 = vld [vmem:[#allocation2 + $0x8c] sm:$0x1]
        %v1435 = vld [vmem:[#allocation2 + $0x98] sm:$0x1]
        %v1436 = vld [vmem:[#allocation2 + $0xa4] sm:$0x1]
        %v1437 = vld [vmem:[#allocation2 + $0xb0] sm:$0x1]
        %v1438 = vld [vmem:[#allocation2 + $0xbc] sm:$0x1]
        %vm1439 = vsmask.f32 3328
        %vm1440 = vsmask.f32 7440
        %vm1441 = vmor %vm1439, %vm1440
        %v1443 = vshrl.u32 %v1375, 16
        %v1445 = vrot.slane %v1443, 4
        %v1446 = vshll.u32 %v1375, 16
        %v1448 = vrot.slane %v1446, 5
        %v1449 = vor.u32 %v1445, %v1448
        %v1450 = vrot.slane %v1449, 4
        %v1452 = vshll.u32 %v1376, 16
        %v1454 = vrot.slane %v1452, 5
        %v1455 = vsel %vm1441, %v1450, %v1454
        %v1456 = vshrl.u32 %v1376, 16
        %v1458 = vrot.slane %v1456, 4
        %v1459 = vor.u32 %v1458, %v1454
        %v1460 = vrot.slane %v1459, 4
        %v1462 = vshll.u32 %v1423, 16
        %v1464 = vrot.slane %v1462, 5
        %v1465 = vsel %vm1441, %v1460, %v1464
        %v1467 = vshrl.u32 %v1377, 16
        %v1469 = vrot.slane %v1467, 4
        %v1470 = vshll.u32 %v1377, 16
        %v1472 = vrot.slane %v1470, 5
        %v1473 = vor.u32 %v1469, %v1472
        %v1474 = vrot.slane %v1473, 4
        %v1476 = vshll.u32 %v1378, 16
        %v1478 = vrot.slane %v1476, 5
        %v1479 = vsel %vm1441, %v1474, %v1478
        %v1480 = vshrl.u32 %v1378, 16
        %v1482 = vrot.slane %v1480, 4
        %v1483 = vor.u32 %v1482, %v1478
        %v1484 = vrot.slane %v1483, 4
        %v1486 = vshll.u32 %v1424, 16
        %v1488 = vrot.slane %v1486, 5
        %v1489 = vsel %vm1441, %v1484, %v1488
        %v1491 = vshrl.u32 %v1379, 16
        %v1493 = vrot.slane %v1491, 4
        %v1494 = vshll.u32 %v1379, 16
        %v1496 = vrot.slane %v1494, 5
        %v1497 = vor.u32 %v1493, %v1496
        %v1498 = vrot.slane %v1497, 4
        %v1500 = vshll.u32 %v1380, 16
        %v1502 = vrot.slane %v1500, 5
        %v1503 = vsel %vm1441, %v1498, %v1502
        %v1504 = vshrl.u32 %v1380, 16
        %v1506 = vrot.slane %v1504, 4
        %v1507 = vor.u32 %v1506, %v1502
        %v1508 = vrot.slane %v1507, 4
        %v1510 = vshll.u32 %v1425, 16
        %v1512 = vrot.slane %v1510, 5
        %v1513 = vsel %vm1441, %v1508, %v1512
        %v1515 = vshrl.u32 %v1381, 16
        %v1517 = vrot.slane %v1515, 4
        %v1518 = vshll.u32 %v1381, 16
        %v1520 = vrot.slane %v1518, 5
        %v1521 = vor.u32 %v1517, %v1520
        %v1522 = vrot.slane %v1521, 4
        %v1524 = vshll.u32 %v1382, 16
        %v1526 = vrot.slane %v1524, 5
        %v1527 = vsel %vm1441, %v1522, %v1526
        %v1528 = vshrl.u32 %v1382, 16
        %v1530 = vrot.slane %v1528, 4
        %v1531 = vor.u32 %v1530, %v1526
        %v1532 = vrot.slane %v1531, 4
        %v1534 = vshll.u32 %v1426, 16
        %v1536 = vrot.slane %v1534, 5
        %v1537 = vsel %vm1441, %v1532, %v1536
        %v1539 = vshrl.u32 %v1383, 16
        %v1541 = vrot.slane %v1539, 4
        %v1542 = vshll.u32 %v1383, 16
        %v1544 = vrot.slane %v1542, 5
        %v1545 = vor.u32 %v1541, %v1544
        %v1546 = vrot.slane %v1545, 4
        %v1548 = vshll.u32 %v1384, 16
        %v1550 = vrot.slane %v1548, 5
        %v1551 = vsel %vm1441, %v1546, %v1550
        %v1552 = vshrl.u32 %v1384, 16
        %v1554 = vrot.slane %v1552, 4
        %v1555 = vor.u32 %v1554, %v1550
        %v1556 = vrot.slane %v1555, 4
        %v1558 = vshll.u32 %v1427, 16
        %v1560 = vrot.slane %v1558, 5
        %v1561 = vsel %vm1441, %v1556, %v1560
        %v1563 = vshrl.u32 %v1385, 16
        %v1565 = vrot.slane %v1563, 4
        %v1566 = vshll.u32 %v1385, 16
        %v1568 = vrot.slane %v1566, 5
        %v1569 = vor.u32 %v1565, %v1568
        %v1570 = vrot.slane %v1569, 4
        %v1572 = vshll.u32 %v1386, 16
        %v1574 = vrot.slane %v1572, 5
        %v1575 = vsel %vm1441, %v1570, %v1574
        %v1576 = vshrl.u32 %v1386, 16
        %v1578 = vrot.slane %v1576, 4
        %v1579 = vor.u32 %v1578, %v1574
        %v1580 = vrot.slane %v1579, 4
        %v1582 = vshll.u32 %v1428, 16
        %v1584 = vrot.slane %v1582, 5
        %v1585 = vsel %vm1441, %v1580, %v1584
        %v1587 = vshrl.u32 %v1387, 16
        %v1589 = vrot.slane %v1587, 4
        %v1590 = vshll.u32 %v1387, 16
        %v1592 = vrot.slane %v1590, 5
        %v1593 = vor.u32 %v1589, %v1592
        %v1594 = vrot.slane %v1593, 4
        %v1596 = vshll.u32 %v1388, 16
        %v1598 = vrot.slane %v1596, 5
        %v1599 = vsel %vm1441, %v1594, %v1598
        %v1600 = vshrl.u32 %v1388, 16
        %v1602 = vrot.slane %v1600, 4
        %v1603 = vor.u32 %v1602, %v1598
        %v1604 = vrot.slane %v1603, 4
        %v1606 = vshll.u32 %v1429, 16
        %v1608 = vrot.slane %v1606, 5
        %v1609 = vsel %vm1441, %v1604, %v1608
        %v1611 = vshrl.u32 %v1389, 16
        %v1613 = vrot.slane %v1611, 4
        %v1614 = vshll.u32 %v1389, 16
        %v1616 = vrot.slane %v1614, 5
        %v1617 = vor.u32 %v1613, %v1616
        %v1618 = vrot.slane %v1617, 4
        %v1620 = vshll.u32 %v1390, 16
        %v1622 = vrot.slane %v1620, 5
        %v1623 = vsel %vm1441, %v1618, %v1622
        %v1624 = vshrl.u32 %v1390, 16
        %v1626 = vrot.slane %v1624, 4
        %v1627 = vor.u32 %v1626, %v1622
        %v1628 = vrot.slane %v1627, 4
        %v1630 = vshll.u32 %v1430, 16
        %v1632 = vrot.slane %v1630, 5
        %v1633 = vsel %vm1441, %v1628, %v1632
        %v1635 = vshrl.u32 %v1391, 16
        %v1637 = vrot.slane %v1635, 4
        %v1638 = vshll.u32 %v1391, 16
        %v1640 = vrot.slane %v1638, 5
        %v1641 = vor.u32 %v1637, %v1640
        %v1642 = vrot.slane %v1641, 4
        %v1644 = vshll.u32 %v1392, 16
        %v1646 = vrot.slane %v1644, 5
        %v1647 = vsel %vm1441, %v1642, %v1646
        %v1648 = vshrl.u32 %v1392, 16
        %v1650 = vrot.slane %v1648, 4
        %v1651 = vor.u32 %v1650, %v1646
        %v1652 = vrot.slane %v1651, 4
        %v1654 = vshll.u32 %v1431, 16
        %v1656 = vrot.slane %v1654, 5
        %v1657 = vsel %vm1441, %v1652, %v1656
        %v1659 = vshrl.u32 %v1393, 16
        %v1661 = vrot.slane %v1659, 4
        %v1662 = vshll.u32 %v1393, 16
        %v1664 = vrot.slane %v1662, 5
        %v1665 = vor.u32 %v1661, %v1664
        %v1666 = vrot.slane %v1665, 4
        %v1668 = vshll.u32 %v1394, 16
        %v1670 = vrot.slane %v1668, 5
        %v1671 = vsel %vm1441, %v1666, %v1670
        %v1672 = vshrl.u32 %v1394, 16
        %v1674 = vrot.slane %v1672, 4
        %v1675 = vor.u32 %v1674, %v1670
        %v1676 = vrot.slane %v1675, 4
        %v1678 = vshll.u32 %v1432, 16
        %v1680 = vrot.slane %v1678, 5
        %v1681 = vsel %vm1441, %v1676, %v1680
        %v1683 = vshrl.u32 %v1395, 16
        %v1685 = vrot.slane %v1683, 4
        %v1686 = vshll.u32 %v1395, 16
        %v1688 = vrot.slane %v1686, 5
        %v1689 = vor.u32 %v1685, %v1688
        %v1690 = vrot.slane %v1689, 4
        %v1692 = vshll.u32 %v1396, 16
        %v1694 = vrot.slane %v1692, 5
        %v1695 = vsel %vm1441, %v1690, %v1694
        %v1696 = vshrl.u32 %v1396, 16
        %v1698 = vrot.slane %v1696, 4
        %v1699 = vor.u32 %v1698, %v1694
        %v1700 = vrot.slane %v1699, 4
        %v1702 = vshll.u32 %v1433, 16
        %v1704 = vrot.slane %v1702, 5
        %v1705 = vsel %vm1441, %v1700, %v1704
        %v1707 = vshrl.u32 %v1397, 16
        %v1709 = vrot.slane %v1707, 4
        %v1710 = vshll.u32 %v1397, 16
        %v1712 = vrot.slane %v1710, 5
        %v1713 = vor.u32 %v1709, %v1712
        %v1714 = vrot.slane %v1713, 4
        %v1716 = vshll.u32 %v1398, 16
        %v1718 = vrot.slane %v1716, 5
        %v1719 = vsel %vm1441, %v1714, %v1718
        %v1720 = vshrl.u32 %v1398, 16
        %v1722 = vrot.slane %v1720, 4
        %v1723 = vor.u32 %v1722, %v1718
        %v1724 = vrot.slane %v1723, 4
        %v1726 = vshll.u32 %v1434, 16
        %v1728 = vrot.slane %v1726, 5
        %v1729 = vsel %vm1441, %v1724, %v1728
        %v1731 = vshrl.u32 %v1399, 16
        %v1733 = vrot.slane %v1731, 4
        %v1734 = vshll.u32 %v1399, 16
        %v1736 = vrot.slane %v1734, 5
        %v1737 = vor.u32 %v1733, %v1736
        %v1738 = vrot.slane %v1737, 4
        %v1740 = vshll.u32 %v1400, 16
        %v1742 = vrot.slane %v1740, 5
        %v1743 = vsel %vm1441, %v1738, %v1742
        %v1744 = vshrl.u32 %v1400, 16
        %v1746 = vrot.slane %v1744, 4
        %v1747 = vor.u32 %v1746, %v1742
        %v1748 = vrot.slane %v1747, 4
        %v1750 = vshll.u32 %v1435, 16
        %v1752 = vrot.slane %v1750, 5
        %v1753 = vsel %vm1441, %v1748, %v1752
        %v1755 = vshrl.u32 %v1401, 16
        %v1757 = vrot.slane %v1755, 4
        %v1758 = vshll.u32 %v1401, 16
        %v1760 = vrot.slane %v1758, 5
        %v1761 = vor.u32 %v1757, %v1760
        %v1762 = vrot.slane %v1761, 4
        %v1764 = vshll.u32 %v1402, 16
        %v1766 = vrot.slane %v1764, 5
        %v1767 = vsel %vm1441, %v1762, %v1766
        %v1768 = vshrl.u32 %v1402, 16
        %v1770 = vrot.slane %v1768, 4
        %v1771 = vor.u32 %v1770, %v1766
        %v1772 = vrot.slane %v1771, 4
        %v1774 = vshll.u32 %v1436, 16
        %v1776 = vrot.slane %v1774, 5
        %v1777 = vsel %vm1441, %v1772, %v1776
        %v1779 = vshrl.u32 %v1403, 16
        %v1781 = vrot.slane %v1779, 4
        %v1782 = vshll.u32 %v1403, 16
        %v1784 = vrot.slane %v1782, 5
        %v1785 = vor.u32 %v1781, %v1784
        %v1786 = vrot.slane %v1785, 4
        %v1788 = vshll.u32 %v1404, 16
        %v1790 = vrot.slane %v1788, 5
        %v1791 = vsel %vm1441, %v1786, %v1790
        %v1792 = vshrl.u32 %v1404, 16
        %v1794 = vrot.slane %v1792, 4
        %v1795 = vor.u32 %v1794, %v1790
        %v1796 = vrot.slane %v1795, 4
        %v1798 = vshll.u32 %v1437, 16
        %v1800 = vrot.slane %v1798, 5
        %v1801 = vsel %vm1441, %v1796, %v1800
        %v1803 = vshrl.u32 %v1405, 16
        %v1805 = vrot.slane %v1803, 4
        %v1806 = vshll.u32 %v1405, 16
        %v1808 = vrot.slane %v1806, 5
        %v1809 = vor.u32 %v1805, %v1808
        %v1810 = vrot.slane %v1809, 4
        %v1812 = vshll.u32 %v1406, 16
        %v1814 = vrot.slane %v1812, 5
        %v1815 = vsel %vm1441, %v1810, %v1814
        %v1816 = vshrl.u32 %v1406, 16
        %v1818 = vrot.slane %v1816, 4
        %v1819 = vor.u32 %v1818, %v1814
        %v1820 = vrot.slane %v1819, 4
        %v1822 = vshll.u32 %v1438, 16
        %v1824 = vrot.slane %v1822, 5
        %v1825 = vsel %vm1441, %v1820, %v1824
        %s1826 = scalar_lea.vmem [#allocation8], 64
        %v1827 = vld [vmem:[%s1826] sm:$0xf]
        %v1828 = vld [vmem:[%s1826 + $0x4] sm:$0xf]
        %v1829 = vld [vmem:[%s1826 + $0x8] sm:$0xf]
        %v1830 = vld [vmem:[%s1826 + $0xc] sm:$0xf]
        %v1831 = vld [vmem:[%s1826 + $0x10] sm:$0xf]
        %v1832 = vld [vmem:[%s1826 + $0x14] sm:$0xf]
        %v1833 = vld [vmem:[%s1826 + $0x18] sm:$0xf]
        %v1834 = vld [vmem:[%s1826 + $0x1c] sm:$0xf]
        %v1835 = vld [vmem:[%s1826 + $0x20] sm:$0xf]
        %v1836 = vld [vmem:[%s1826 + $0x24] sm:$0xf]
        %v1837 = vld [vmem:[%s1826 + $0x28] sm:$0xf]
        %v1838 = vld [vmem:[%s1826 + $0x2c] sm:$0xf]
        %v1839 = vld [vmem:[%s1826 + $0x30] sm:$0xf]
        %v1840 = vld [vmem:[%s1826 + $0x34] sm:$0xf]
        %v1841 = vld [vmem:[%s1826 + $0x38] sm:$0xf]
        %v1842 = vld [vmem:[%s1826 + $0x3c] sm:$0xf]
        %v1843 = vunpack.c.l.b16 %v1455
        %v1844 = vunpack.c.l.b16 %v1465
        %v1845 = vunpack.c.l.b16 %v1479
        %v1846 = vunpack.c.l.b16 %v1489
        %v1847 = vunpack.c.l.b16 %v1503
        %v1848 = vunpack.c.l.b16 %v1513
        %v1849 = vunpack.c.l.b16 %v1527
        %v1850 = vunpack.c.l.b16 %v1537
        %v1851 = vunpack.c.l.b16 %v1551
        %v1852 = vunpack.c.l.b16 %v1561
        %v1853 = vunpack.c.l.b16 %v1575
        %v1854 = vunpack.c.l.b16 %v1585
        %v1855 = vunpack.c.l.b16 %v1599
        %v1856 = vunpack.c.l.b16 %v1609
        %v1857 = vunpack.c.l.b16 %v1623
        %v1858 = vunpack.c.l.b16 %v1633
        %v1859 = vunpack.c.l.b16 %v1647
        %v1860 = vunpack.c.l.b16 %v1657
        %v1861 = vunpack.c.l.b16 %v1671
        %v1862 = vunpack.c.l.b16 %v1681
        %v1863 = vunpack.c.l.b16 %v1695
        %v1864 = vunpack.c.l.b16 %v1705
        %v1865 = vunpack.c.l.b16 %v1719
        %v1866 = vunpack.c.l.b16 %v1729
        %v1867 = vunpack.c.l.b16 %v1743
        %v1868 = vunpack.c.l.b16 %v1753
        %v1869 = vunpack.c.l.b16 %v1767
        %v1870 = vunpack.c.l.b16 %v1777
        %v1871 = vunpack.c.l.b16 %v1791
        %v1872 = vunpack.c.l.b16 %v1801
        %v1873 = vunpack.c.l.b16 %v1815
        %v1874 = vunpack.c.l.b16 %v1825
        %v1875 = vpack.c.b16 %v1844, %v1843
        %v1876 = vpack.c.b16 %v1846, %v1845
        %v1877 = vpack.c.b16 %v1848, %v1847
        %v1878 = vpack.c.b16 %v1850, %v1849
        %v1879 = vpack.c.b16 %v1852, %v1851
        %v1880 = vpack.c.b16 %v1854, %v1853
        %v1881 = vpack.c.b16 %v1856, %v1855
        %v1882 = vpack.c.b16 %v1858, %v1857
        %v1883 = vpack.c.b16 %v1860, %v1859
        %v1884 = vpack.c.b16 %v1862, %v1861
        %v1885 = vpack.c.b16 %v1864, %v1863
        %v1886 = vpack.c.b16 %v1866, %v1865
        %v1887 = vpack.c.b16 %v1868, %v1867
        %v1888 = vpack.c.b16 %v1870, %v1869
        %v1889 = vpack.c.b16 %v1872, %v1871
        %v1890 = vpack.c.b16 %v1874, %v1873
        %v1923 = vunpack.c.l.b16 %v1827
        %v1924 = vunpack.c.l.b16 %v1828
        %v1925 = vunpack.c.l.b16 %v1829
        %v1926 = vunpack.c.l.b16 %v1830
        %v1927 = vunpack.c.l.b16 %v1831
        %v1928 = vunpack.c.l.b16 %v1832
        %v1929 = vunpack.c.l.b16 %v1833
        %v1930 = vunpack.c.l.b16 %v1834
        %v1931 = vunpack.c.l.b16 %v1835
        %v1932 = vunpack.c.l.b16 %v1836
        %v1933 = vunpack.c.l.b16 %v1837
        %v1934 = vunpack.c.l.b16 %v1838
        %v1935 = vunpack.c.l.b16 %v1839
        %v1936 = vunpack.c.l.b16 %v1840
        %v1937 = vunpack.c.l.b16 %v1841
        %v1938 = vunpack.c.l.b16 %v1842
        %v1939 = vpack.c.b16 %v1924, %v1923
        %v1940 = vpack.c.b16 %v1926, %v1925
        %v1941 = vpack.c.b16 %v1928, %v1927
        %v1942 = vpack.c.b16 %v1930, %v1929
        %v1943 = vpack.c.b16 %v1932, %v1931
        %v1944 = vpack.c.b16 %v1934, %v1933
        %v1945 = vpack.c.b16 %v1936, %v1935
        %v1946 = vpack.c.b16 %v1938, %v1937
        %1955 = vmatprep.subr.bf16.mxu0 0
        %1956 = vmatpush1.bf16.msra.mxu0 %v1939
        %1957 = vmatprep.subr.bf16.mxu0 0
        %1958 = vmatpush1.bf16.msra.mxu0 %v1940
        %1959 = vmatprep.subr.bf16.mxu0 0
        %1960 = vmatpush1.bf16.msra.mxu0 %v1941
        %1961 = vmatprep.subr.bf16.mxu0 0
        %1962 = vmatpush1.bf16.msra.mxu0 %v1942
        %1963 = vmatprep.subr.bf16.mxu0 0
        %1964 = vmatpush1.bf16.msra.mxu0 %v1943
        %1965 = vmatprep.subr.bf16.mxu0 0
        %1966 = vmatpush1.bf16.msra.mxu0 %v1944
        %1967 = vmatprep.subr.bf16.mxu0 0
        %1968 = vmatpush1.bf16.msra.mxu0 %v1945
        %1969 = vmatprep.subr.bf16.mxu0 0
        %1970 = vmatpush1.bf16.msra.mxu0 %v1946
        %1971 = vmatprep.subr.bf16.mxu0 0
        %1972 = vmatpush1.bf16.msra.mxu0 0
        %1973 = vmatprep.subr.bf16.mxu0 0
        %1974 = vmatpush1.bf16.msra.mxu0 0
        %1975 = vmatprep.subr.bf16.mxu0 0
        %1976 = vmatpush1.bf16.msra.mxu0 0
        %1977 = vmatprep.subr.bf16.mxu0 0
        %1978 = vmatpush1.bf16.msra.mxu0 0
        %1979 = vmatprep.subr.bf16.mxu0 0
        %1980 = vmatpush1.bf16.msra.mxu0 0
        %1981 = vmatprep.subr.bf16.mxu0 0
        %1982 = vmatpush1.bf16.msra.mxu0 0
        %1983 = vmatprep.subr.bf16.mxu0 0
        %1984 = vmatpush1.bf16.msra.mxu0 0
        %1985 = vmatprep.subr.bf16.mxu0 0
        %1986 = vmatpush1.bf16.msra.mxu0 0
        %1987 = vmatprep.mubr.bf16.mxu0 0
        %1988 = vmatmul.mubr.bf16.gmra.mrb[0].mxu0 %v1875
        %v1989 = vpop.f32.mrb[0].mxu0
        %v1990 = vadd.f32 0.0, %v1989
        %v1991 = vpop.f32.mrb[0].mxu0
        %v1992 = vpop.f32.mrb[0].mxu0
        %v1993 = vadd.f32 0.0, %v1992
        %v1994 = vpop.f32.mrb[0].mxu0
        %1995 = vmatprep.mubr.bf16.mxu0 0
        %1996 = vmatmul.mubr.bf16.gmra.mrb[0].mxu0 %v1876
        %v1997 = vpop.f32.mrb[0].mxu0
        %v1998 = vadd.f32 0.0, %v1997
        %v1999 = vpop.f32.mrb[0].mxu0
        %v2000 = vpop.f32.mrb[0].mxu0
        %v2001 = vadd.f32 0.0, %v2000
        %v2002 = vpop.f32.mrb[0].mxu0
        %2003 = vmatprep.mubr.bf16.mxu0 0
        %2004 = vmatmul.mubr.bf16.gmra.mrb[0].mxu0 %v1877
        %v2005 = vpop.f32.mrb[0].mxu0
        %v2006 = vadd.f32 0.0, %v2005
        %v2007 = vpop.f32.mrb[0].mxu0
        %v2008 = vpop.f32.mrb[0].mxu0
        %v2009 = vadd.f32 0.0, %v2008
        %v2010 = vpop.f32.mrb[0].mxu0
        %2011 = vmatprep.mubr.bf16.mxu0 0
        %2012 = vmatmul.mubr.bf16.gmra.mrb[0].mxu0 %v1878
        %v2013 = vpop.f32.mrb[0].mxu0
        %v2014 = vadd.f32 0.0, %v2013
        %v2015 = vpop.f32.mrb[0].mxu0
        %v2016 = vpop.f32.mrb[0].mxu0
        %v2017 = vadd.f32 0.0, %v2016
        %v2018 = vpop.f32.mrb[0].mxu0
        %2019 = vmatprep.mubr.bf16.mxu0 0
        %2020 = vmatmul.mubr.bf16.gmra.mrb[0].mxu0 %v1879
        %v2021 = vpop.f32.mrb[0].mxu0
        %v2022 = vadd.f32 0.0, %v2021
        %v2023 = vpop.f32.mrb[0].mxu0
        %v2024 = vpop.f32.mrb[0].mxu0
        %v2025 = vadd.f32 0.0, %v2024
        %v2026 = vpop.f32.mrb[0].mxu0
        %2027 = vmatprep.mubr.bf16.mxu0 0
        %2028 = vmatmul.mubr.bf16.gmra.mrb[0].mxu0 %v1880
        %v2029 = vpop.f32.mrb[0].mxu0
        %v2030 = vadd.f32 0.0, %v2029
        %v2031 = vpop.f32.mrb[0].mxu0
        %v2032 = vpop.f32.mrb[0].mxu0
        %v2033 = vadd.f32 0.0, %v2032
        %v2034 = vpop.f32.mrb[0].mxu0
        %2035 = vmatprep.mubr.bf16.mxu0 0
        %2036 = vmatmul.mubr.bf16.gmra.mrb[0].mxu0 %v1881
        %v2037 = vpop.f32.mrb[0].mxu0
        %v2038 = vadd.f32 0.0, %v2037
        %v2039 = vpop.f32.mrb[0].mxu0
        %v2040 = vpop.f32.mrb[0].mxu0
        %v2041 = vadd.f32 0.0, %v2040
        %v2042 = vpop.f32.mrb[0].mxu0
        %2043 = vmatprep.mubr.bf16.mxu0 0
        %2044 = vmatmul.mubr.bf16.gmra.mrb[0].mxu0 %v1882
        %v2045 = vpop.f32.mrb[0].mxu0
        %v2046 = vadd.f32 0.0, %v2045
        %v2047 = vpop.f32.mrb[0].mxu0
        %v2048 = vpop.f32.mrb[0].mxu0
        %v2049 = vadd.f32 0.0, %v2048
        %v2050 = vpop.f32.mrb[0].mxu0
        %2051 = vmatprep.mubr.bf16.mxu0 0
        %2052 = vmatmul.mubr.bf16.gmra.mrb[0].mxu0 %v1883
        %v2053 = vpop.f32.mrb[0].mxu0
        %v2054 = vadd.f32 0.0, %v2053
        %v2055 = vpop.f32.mrb[0].mxu0
        %v2056 = vpop.f32.mrb[0].mxu0
        %v2057 = vadd.f32 0.0, %v2056
        %v2058 = vpop.f32.mrb[0].mxu0
        %2059 = vmatprep.mubr.bf16.mxu0 0
        %2060 = vmatmul.mubr.bf16.gmra.mrb[0].mxu0 %v1884
        %v2061 = vpop.f32.mrb[0].mxu0
        %v2062 = vadd.f32 0.0, %v2061
        %v2063 = vpop.f32.mrb[0].mxu0
        %v2064 = vpop.f32.mrb[0].mxu0
        %v2065 = vadd.f32 0.0, %v2064
        %v2066 = vpop.f32.mrb[0].mxu0
        %2067 = vmatprep.mubr.bf16.mxu0 0
        %2068 = vmatmul.mubr.bf16.gmra.mrb[0].mxu0 %v1885
        %v2069 = vpop.f32.mrb[0].mxu0
        %v2070 = vadd.f32 0.0, %v2069
        %v2071 = vpop.f32.mrb[0].mxu0
        %v2072 = vpop.f32.mrb[0].mxu0
        %v2073 = vadd.f32 0.0, %v2072
        %v2074 = vpop.f32.mrb[0].mxu0
        %2075 = vmatprep.mubr.bf16.mxu0 0
        %2076 = vmatmul.mubr.bf16.gmra.mrb[0].mxu0 %v1886
        %v2077 = vpop.f32.mrb[0].mxu0
        %v2078 = vadd.f32 0.0, %v2077
        %v2079 = vpop.f32.mrb[0].mxu0
        %v2080 = vpop.f32.mrb[0].mxu0
        %v2081 = vadd.f32 0.0, %v2080
        %v2082 = vpop.f32.mrb[0].mxu0
        %2083 = vmatprep.mubr.bf16.mxu0 0
        %2084 = vmatmul.mubr.bf16.gmra.mrb[0].mxu0 %v1887
        %v2085 = vpop.f32.mrb[0].mxu0
        %v2086 = vadd.f32 0.0, %v2085
        %v2087 = vpop.f32.mrb[0].mxu0
        %v2088 = vpop.f32.mrb[0].mxu0
        %v2089 = vadd.f32 0.0, %v2088
        %v2090 = vpop.f32.mrb[0].mxu0
        %2091 = vmatprep.mubr.bf16.mxu0 0
        %2092 = vmatmul.mubr.bf16.gmra.mrb[0].mxu0 %v1888
        %v2093 = vpop.f32.mrb[0].mxu0
        %v2094 = vadd.f32 0.0, %v2093
        %v2095 = vpop.f32.mrb[0].mxu0
        %v2096 = vpop.f32.mrb[0].mxu0
        %v2097 = vadd.f32 0.0, %v2096
        %v2098 = vpop.f32.mrb[0].mxu0
        %2099 = vmatprep.mubr.bf16.mxu0 0
        %2100 = vmatmul.mubr.bf16.gmra.mrb[0].mxu0 %v1889
        %v2101 = vpop.f32.mrb[0].mxu0
        %v2102 = vadd.f32 0.0, %v2101
        %v2103 = vpop.f32.mrb[0].mxu0
        %v2104 = vpop.f32.mrb[0].mxu0
        %v2105 = vadd.f32 0.0, %v2104
        %v2106 = vpop.f32.mrb[0].mxu0
        %2107 = vmatprep.mubr.bf16.mxu0 0
        %2108 = vmatmul.mubr.bf16.gmra.mrb[0].mxu0 %v1890
        %v2109 = vpop.f32.mrb[0].mxu0
        %v2110 = vadd.f32 0.0, %v2109
        %v2111 = vpop.f32.mrb[0].mxu0
        %v2112 = vpop.f32.mrb[0].mxu0
        %v2113 = vadd.f32 0.0, %v2112
        %v2114 = vpop.f32.mrb[0].mxu0
        %2115 = vdwg.mxu0
        %v2148 = vunpack.c.l.b16 %v1375
        %v2149 = vunpack.c.l.b16 %v1376
        %v2150 = vunpack.c.l.b16 %v1377
        %v2151 = vunpack.c.l.b16 %v1378
        %v2152 = vunpack.c.l.b16 %v1379
        %v2153 = vunpack.c.l.b16 %v1380
        %v2154 = vunpack.c.l.b16 %v1381
        %v2155 = vunpack.c.l.b16 %v1382
        %v2156 = vunpack.c.l.b16 %v1383
        %v2157 = vunpack.c.l.b16 %v1384
        %v2158 = vunpack.c.l.b16 %v1385
        %v2159 = vunpack.c.l.b16 %v1386
        %v2160 = vunpack.c.l.b16 %v1387
        %v2161 = vunpack.c.l.b16 %v1388
        %v2162 = vunpack.c.l.b16 %v1389
        %v2163 = vunpack.c.l.b16 %v1390
        %v2164 = vunpack.c.l.b16 %v1391
        %v2165 = vunpack.c.l.b16 %v1392
        %v2166 = vunpack.c.l.b16 %v1393
        %v2167 = vunpack.c.l.b16 %v1394
        %v2168 = vunpack.c.l.b16 %v1395
        %v2169 = vunpack.c.l.b16 %v1396
        %v2170 = vunpack.c.l.b16 %v1397
        %v2171 = vunpack.c.l.b16 %v1398
        %v2172 = vunpack.c.l.b16 %v1399
        %v2173 = vunpack.c.l.b16 %v1400
        %v2174 = vunpack.c.l.b16 %v1401
        %v2175 = vunpack.c.l.b16 %v1402
        %v2176 = vunpack.c.l.b16 %v1403
        %v2177 = vunpack.c.l.b16 %v1404
        %v2178 = vunpack.c.l.b16 %v1405
        %v2179 = vunpack.c.l.b16 %v1406
        %v2180 = vpack.c.b16 %v2149, %v2148
        %v2181 = vpack.c.b16 %v2151, %v2150
        %v2182 = vpack.c.b16 %v2153, %v2152
        %v2183 = vpack.c.b16 %v2155, %v2154
        %v2184 = vpack.c.b16 %v2157, %v2156
        %v2185 = vpack.c.b16 %v2159, %v2158
        %v2186 = vpack.c.b16 %v2161, %v2160
        %v2187 = vpack.c.b16 %v2163, %v2162
        %v2188 = vpack.c.b16 %v2165, %v2164
        %v2189 = vpack.c.b16 %v2167, %v2166
        %v2190 = vpack.c.b16 %v2169, %v2168
        %v2191 = vpack.c.b16 %v2171, %v2170
        %v2192 = vpack.c.b16 %v2173, %v2172
        %v2193 = vpack.c.b16 %v2175, %v2174
        %v2194 = vpack.c.b16 %v2177, %v2176
        %v2195 = vpack.c.b16 %v2179, %v2178
        %v2228 = vunpack.c.l.b16 %v1407
        %v2229 = vunpack.c.l.b16 %v1408
        %v2230 = vunpack.c.l.b16 %v1409
        %v2231 = vunpack.c.l.b16 %v1410
        %v2232 = vunpack.c.l.b16 %v1411
        %v2233 = vunpack.c.l.b16 %v1412
        %v2234 = vunpack.c.l.b16 %v1413
        %v2235 = vunpack.c.l.b16 %v1414
        %v2236 = vunpack.c.l.b16 %v1415
        %v2237 = vunpack.c.l.b16 %v1416
        %v2238 = vunpack.c.l.b16 %v1417
        %v2239 = vunpack.c.l.b16 %v1418
        %v2240 = vunpack.c.l.b16 %v1419
        %v2241 = vunpack.c.l.b16 %v1420
        %v2242 = vunpack.c.l.b16 %v1421
        %v2243 = vunpack.c.l.b16 %v1422
        %v2244 = vpack.c.b16 %v2229, %v2228
        %v2245 = vpack.c.b16 %v2231, %v2230
        %v2246 = vpack.c.b16 %v2233, %v2232
        %v2247 = vpack.c.b16 %v2235, %v2234
        %v2248 = vpack.c.b16 %v2237, %v2236
        %v2249 = vpack.c.b16 %v2239, %v2238
        %v2250 = vpack.c.b16 %v2241, %v2240
        %v2251 = vpack.c.b16 %v2243, %v2242
        %2260 = vmatprep.subr.bf16.mxu0 0
        %2261 = vmatpush1.bf16.msra.mxu0 %v2244
        %2262 = vmatprep.subr.bf16.mxu0 0
        %2263 = vmatpush1.bf16.msra.mxu0 %v2245
        %2264 = vmatprep.subr.bf16.mxu0 0
        %2265 = vmatpush1.bf16.msra.mxu0 %v2246
        %2266 = vmatprep.subr.bf16.mxu0 0
        %2267 = vmatpush1.bf16.msra.mxu0 %v2247
        %2268 = vmatprep.subr.bf16.mxu0 0
        %2269 = vmatpush1.bf16.msra.mxu0 %v2248
        %2270 = vmatprep.subr.bf16.mxu0 0
        %2271 = vmatpush1.bf16.msra.mxu0 %v2249
        %2272 = vmatprep.subr.bf16.mxu0 0
        %2273 = vmatpush1.bf16.msra.mxu0 %v2250
        %2274 = vmatprep.subr.bf16.mxu0 0
        %2275 = vmatpush1.bf16.msra.mxu0 %v2251
        %2276 = vmatprep.subr.bf16.mxu0 0
        %2277 = vmatpush1.bf16.msra.mxu0 0
        %2278 = vmatprep.subr.bf16.mxu0 0
        %2279 = vmatpush1.bf16.msra.mxu0 0
        %2280 = vmatprep.subr.bf16.mxu0 0
        %2281 = vmatpush1.bf16.msra.mxu0 0
        %2282 = vmatprep.subr.bf16.mxu0 0
        %2283 = vmatpush1.bf16.msra.mxu0 0
        %2284 = vmatprep.subr.bf16.mxu0 0
        %2285 = vmatpush1.bf16.msra.mxu0 0
        %2286 = vmatprep.subr.bf16.mxu0 0
        %2287 = vmatpush1.bf16.msra.mxu0 0
        %2288 = vmatprep.subr.bf16.mxu0 0
        %2289 = vmatpush1.bf16.msra.mxu0 0
        %2290 = vmatprep.subr.bf16.mxu0 0
        %2291 = vmatpush1.bf16.msra.mxu0 0
        %2292 = vmatprep.mubr.bf16.mxu0 0
        %2293 = vmatmul.mubr.bf16.gmra.mrb[0].mxu0 %v2180
        %v2294 = vpop.f32.mrb[0].mxu0
        %v2295 = vadd.f32 %v1990, %v2294
        %v2296 = vpop.f32.mrb[0].mxu0
        %v2297 = vpop.f32.mrb[0].mxu0
        %v2298 = vadd.f32 %v1993, %v2297
        %v2299 = vpop.f32.mrb[0].mxu0
        %2300 = vmatprep.mubr.bf16.mxu0 0
        %2301 = vmatmul.mubr.bf16.gmra.mrb[0].mxu0 %v2181
        %v2302 = vpop.f32.mrb[0].mxu0
        %v2303 = vadd.f32 %v1998, %v2302
        %v2304 = vpop.f32.mrb[0].mxu0
        %v2305 = vpop.f32.mrb[0].mxu0
        %v2306 = vadd.f32 %v2001, %v2305
        %v2307 = vpop.f32.mrb[0].mxu0
        %2308 = vmatprep.mubr.bf16.mxu0 0
        %2309 = vmatmul.mubr.bf16.gmra.mrb[0].mxu0 %v2182
        %v2310 = vpop.f32.mrb[0].mxu0
        %v2311 = vadd.f32 %v2006, %v2310
        %v2312 = vpop.f32.mrb[0].mxu0
        %v2313 = vpop.f32.mrb[0].mxu0
        %v2314 = vadd.f32 %v2009, %v2313
        %v2315 = vpop.f32.mrb[0].mxu0
        %2316 = vmatprep.mubr.bf16.mxu0 0
        %2317 = vmatmul.mubr.bf16.gmra.mrb[0].mxu0 %v2183
        %v2318 = vpop.f32.mrb[0].mxu0
        %v2319 = vadd.f32 %v2014, %v2318
        %v2320 = vpop.f32.mrb[0].mxu0
        %v2321 = vpop.f32.mrb[0].mxu0
        %v2322 = vadd.f32 %v2017, %v2321
        %v2323 = vpop.f32.mrb[0].mxu0
        %2324 = vmatprep.mubr.bf16.mxu0 0
        %2325 = vmatmul.mubr.bf16.gmra.mrb[0].mxu0 %v2184
        %v2326 = vpop.f32.mrb[0].mxu0
        %v2327 = vadd.f32 %v2022, %v2326
        %v2328 = vpop.f32.mrb[0].mxu0
        %v2329 = vpop.f32.mrb[0].mxu0
        %v2330 = vadd.f32 %v2025, %v2329
        %v2331 = vpop.f32.mrb[0].mxu0
        %2332 = vmatprep.mubr.bf16.mxu0 0
        %2333 = vmatmul.mubr.bf16.gmra.mrb[0].mxu0 %v2185
        %v2334 = vpop.f32.mrb[0].mxu0
        %v2335 = vadd.f32 %v2030, %v2334
        %v2336 = vpop.f32.mrb[0].mxu0
        %v2337 = vpop.f32.mrb[0].mxu0
        %v2338 = vadd.f32 %v2033, %v2337
        %v2339 = vpop.f32.mrb[0].mxu0
        %2340 = vmatprep.mubr.bf16.mxu0 0
        %2341 = vmatmul.mubr.bf16.gmra.mrb[0].mxu0 %v2186
        %v2342 = vpop.f32.mrb[0].mxu0
        %v2343 = vadd.f32 %v2038, %v2342
        %v2344 = vpop.f32.mrb[0].mxu0
        %v2345 = vpop.f32.mrb[0].mxu0
        %v2346 = vadd.f32 %v2041, %v2345
        %v2347 = vpop.f32.mrb[0].mxu0
        %2348 = vmatprep.mubr.bf16.mxu0 0
        %2349 = vmatmul.mubr.bf16.gmra.mrb[0].mxu0 %v2187
        %v2350 = vpop.f32.mrb[0].mxu0
        %v2351 = vadd.f32 %v2046, %v2350
        %v2352 = vpop.f32.mrb[0].mxu0
        %v2353 = vpop.f32.mrb[0].mxu0
        %v2354 = vadd.f32 %v2049, %v2353
        %v2355 = vpop.f32.mrb[0].mxu0
        %2356 = vmatprep.mubr.bf16.mxu0 0
        %2357 = vmatmul.mubr.bf16.gmra.mrb[0].mxu0 %v2188
        %v2358 = vpop.f32.mrb[0].mxu0
        %v2359 = vadd.f32 %v2054, %v2358
        %v2360 = vpop.f32.mrb[0].mxu0
        %v2361 = vpop.f32.mrb[0].mxu0
        %v2362 = vadd.f32 %v2057, %v2361
        %v2363 = vpop.f32.mrb[0].mxu0
        %2364 = vmatprep.mubr.bf16.mxu0 0
        %2365 = vmatmul.mubr.bf16.gmra.mrb[0].mxu0 %v2189
        %v2366 = vpop.f32.mrb[0].mxu0
        %v2367 = vadd.f32 %v2062, %v2366
        %v2368 = vpop.f32.mrb[0].mxu0
        %v2369 = vpop.f32.mrb[0].mxu0
        %v2370 = vadd.f32 %v2065, %v2369
        %v2371 = vpop.f32.mrb[0].mxu0
        %2372 = vmatprep.mubr.bf16.mxu0 0
        %2373 = vmatmul.mubr.bf16.gmra.mrb[0].mxu0 %v2190
        %v2374 = vpop.f32.mrb[0].mxu0
        %v2375 = vadd.f32 %v2070, %v2374
        %v2376 = vpop.f32.mrb[0].mxu0
        %v2377 = vpop.f32.mrb[0].mxu0
        %v2378 = vadd.f32 %v2073, %v2377
        %v2379 = vpop.f32.mrb[0].mxu0
        %2380 = vmatprep.mubr.bf16.mxu0 0
        %2381 = vmatmul.mubr.bf16.gmra.mrb[0].mxu0 %v2191
        %v2382 = vpop.f32.mrb[0].mxu0
        %v2383 = vadd.f32 %v2078, %v2382
        %v2384 = vpop.f32.mrb[0].mxu0
        %v2385 = vpop.f32.mrb[0].mxu0
        %v2386 = vadd.f32 %v2081, %v2385
        %v2387 = vpop.f32.mrb[0].mxu0
        %2388 = vmatprep.mubr.bf16.mxu0 0
        %2389 = vmatmul.mubr.bf16.gmra.mrb[0].mxu0 %v2192
        %v2390 = vpop.f32.mrb[0].mxu0
        %v2391 = vadd.f32 %v2086, %v2390
        %v2392 = vpop.f32.mrb[0].mxu0
        %v2393 = vpop.f32.mrb[0].mxu0
        %v2394 = vadd.f32 %v2089, %v2393
        %v2395 = vpop.f32.mrb[0].mxu0
        %2396 = vmatprep.mubr.bf16.mxu0 0
        %2397 = vmatmul.mubr.bf16.gmra.mrb[0].mxu0 %v2193
        %v2398 = vpop.f32.mrb[0].mxu0
        %v2399 = vadd.f32 %v2094, %v2398
        %v2400 = vpop.f32.mrb[0].mxu0
        %v2401 = vpop.f32.mrb[0].mxu0
        %v2402 = vadd.f32 %v2097, %v2401
        %v2403 = vpop.f32.mrb[0].mxu0
        %2404 = vmatprep.mubr.bf16.mxu0 0
        %2405 = vmatmul.mubr.bf16.gmra.mrb[0].mxu0 %v2194
        %v2406 = vpop.f32.mrb[0].mxu0
        %v2407 = vadd.f32 %v2102, %v2406
        %v2408 = vpop.f32.mrb[0].mxu0
        %v2409 = vpop.f32.mrb[0].mxu0
        %v2410 = vadd.f32 %v2105, %v2409
        %v2411 = vpop.f32.mrb[0].mxu0
        %2412 = vmatprep.mubr.bf16.mxu0 0
        %2413 = vmatmul.mubr.bf16.gmra.mrb[0].mxu0 %v2195
        %v2414 = vpop.f32.mrb[0].mxu0
        %v2415 = vadd.f32 %v2110, %v2414
        %v2416 = vpop.f32.mrb[0].mxu0
        %v2417 = vpop.f32.mrb[0].mxu0
        %v2418 = vadd.f32 %v2113, %v2417
        %v2419 = vpop.f32.mrb[0].mxu0
        %2420 = vdwg.mxu0
        %v2421 = vld [vmem:[#allocation2] sm:$0xe]
        %v2422 = vld [vmem:[#allocation2 + $0xc] sm:$0xe]
        %v2423 = vld [vmem:[#allocation2 + $0x18] sm:$0xe]
        %v2424 = vld [vmem:[#allocation2 + $0x24] sm:$0xe]
        %v2425 = vld [vmem:[#allocation2 + $0x30] sm:$0xe]
        %v2426 = vld [vmem:[#allocation2 + $0x3c] sm:$0xe]
        %v2427 = vld [vmem:[#allocation2 + $0x48] sm:$0xe]
        %v2428 = vld [vmem:[#allocation2 + $0x54] sm:$0xe]
        %v2429 = vld [vmem:[#allocation2 + $0x60] sm:$0xe]
        %v2430 = vld [vmem:[#allocation2 + $0x6c] sm:$0xe]
        %v2431 = vld [vmem:[#allocation2 + $0x78] sm:$0xe]
        %v2432 = vld [vmem:[#allocation2 + $0x84] sm:$0xe]
        %v2433 = vld [vmem:[#allocation2 + $0x90] sm:$0xe]
        %v2434 = vld [vmem:[#allocation2 + $0x9c] sm:$0xe]
        %v2435 = vld [vmem:[#allocation2 + $0xa8] sm:$0xe]
        %v2436 = vld [vmem:[#allocation2 + $0xb4] sm:$0xe]
        %vm2469 = vcmask 1042432
        %vm2470 = vcmask 1046532
        %vm2471 = vmor %vm2469, %vm2470
        %v2472 = vrot.slane %v2421, 5
        %v2473 = vrot.slane %v2472, 4
        %v2474 = vrot.slane %v1376, 5
        %v2475 = vsel %vm2471, %v2473, %v2474
        %v2476 = vrot.slane %v2474, 4
        %v2477 = vrot.slane %v1423, 5
        %v2478 = vsel %vm2471, %v2476, %v2477
        %v2479 = vrot.slane %v2422, 5
        %v2480 = vrot.slane %v2479, 4
        %v2481 = vrot.slane %v1378, 5
        %v2482 = vsel %vm2471, %v2480, %v2481
        %v2483 = vrot.slane %v2481, 4
        %v2484 = vrot.slane %v1424, 5
        %v2485 = vsel %vm2471, %v2483, %v2484
        %v2486 = vrot.slane %v2423, 5
        %v2487 = vrot.slane %v2486, 4
        %v2488 = vrot.slane %v1380, 5
        %v2489 = vsel %vm2471, %v2487, %v2488
        %v2490 = vrot.slane %v2488, 4
        %v2491 = vrot.slane %v1425, 5
        %v2492 = vsel %vm2471, %v2490, %v2491
        %v2493 = vrot.slane %v2424, 5
        %v2494 = vrot.slane %v2493, 4
        %v2495 = vrot.slane %v1382, 5
        %v2496 = vsel %vm2471, %v2494, %v2495
        %v2497 = vrot.slane %v2495, 4
        %v2498 = vrot.slane %v1426, 5
        %v2499 = vsel %vm2471, %v2497, %v2498
        %v2500 = vrot.slane %v2425, 5
        %v2501 = vrot.slane %v2500, 4
        %v2502 = vrot.slane %v1384, 5
        %v2503 = vsel %vm2471, %v2501, %v2502
        %v2504 = vrot.slane %v2502, 4
        %v2505 = vrot.slane %v1427, 5
        %v2506 = vsel %vm2471, %v2504, %v2505
        %v2507 = vrot.slane %v2426, 5
        %v2508 = vrot.slane %v2507, 4
        %v2509 = vrot.slane %v1386, 5
        %v2510 = vsel %vm2471, %v2508, %v2509
        %v2511 = vrot.slane %v2509, 4
        %v2512 = vrot.slane %v1428, 5
        %v2513 = vsel %vm2471, %v2511, %v2512
        %v2514 = vrot.slane %v2427, 5
        %v2515 = vrot.slane %v2514, 4
        %v2516 = vrot.slane %v1388, 5
        %v2517 = vsel %vm2471, %v2515, %v2516
        %v2518 = vrot.slane %v2516, 4
        %v2519 = vrot.slane %v1429, 5
        %v2520 = vsel %vm2471, %v2518, %v2519
        %v2521 = vrot.slane %v2428, 5
        %v2522 = vrot.slane %v2521, 4
        %v2523 = vrot.slane %v1390, 5
        %v2524 = vsel %vm2471, %v2522, %v2523
        %v2525 = vrot.slane %v2523, 4
        %v2526 = vrot.slane %v1430, 5
        %v2527 = vsel %vm2471, %v2525, %v2526
        %v2528 = vrot.slane %v2429, 5
        %v2529 = vrot.slane %v2528, 4
        %v2530 = vrot.slane %v1392, 5
        %v2531 = vsel %vm2471, %v2529, %v2530
        %v2532 = vrot.slane %v2530, 4
        %v2533 = vrot.slane %v1431, 5
        %v2534 = vsel %vm2471, %v2532, %v2533
        %v2535 = vrot.slane %v2430, 5
        %v2536 = vrot.slane %v2535, 4
        %v2537 = vrot.slane %v1394, 5
        %v2538 = vsel %vm2471, %v2536, %v2537
        %v2539 = vrot.slane %v2537, 4
        %v2540 = vrot.slane %v1432, 5
        %v2541 = vsel %vm2471, %v2539, %v2540
        %v2542 = vrot.slane %v2431, 5
        %v2543 = vrot.slane %v2542, 4
        %v2544 = vrot.slane %v1396, 5
        %v2545 = vsel %vm2471, %v2543, %v2544
        %v2546 = vrot.slane %v2544, 4
        %v2547 = vrot.slane %v1433, 5
        %v2548 = vsel %vm2471, %v2546, %v2547
        %v2549 = vrot.slane %v2432, 5
        %v2550 = vrot.slane %v2549, 4
        %v2551 = vrot.slane %v1398, 5
        %v2552 = vsel %vm2471, %v2550, %v2551
        %v2553 = vrot.slane %v2551, 4
        %v2554 = vrot.slane %v1434, 5
        %v2555 = vsel %vm2471, %v2553, %v2554
        %v2556 = vrot.slane %v2433, 5
        %v2557 = vrot.slane %v2556, 4
        %v2558 = vrot.slane %v1400, 5
        %v2559 = vsel %vm2471, %v2557, %v2558
        %v2560 = vrot.slane %v2558, 4
        %v2561 = vrot.slane %v1435, 5
        %v2562 = vsel %vm2471, %v2560, %v2561
        %v2563 = vrot.slane %v2434, 5
        %v2564 = vrot.slane %v2563, 4
        %v2565 = vrot.slane %v1402, 5
        %v2566 = vsel %vm2471, %v2564, %v2565
        %v2567 = vrot.slane %v2565, 4
        %v2568 = vrot.slane %v1436, 5
        %v2569 = vsel %vm2471, %v2567, %v2568
        %v2570 = vrot.slane %v2435, 5
        %v2571 = vrot.slane %v2570, 4
        %v2572 = vrot.slane %v1404, 5
        %v2573 = vsel %vm2471, %v2571, %v2572
        %v2574 = vrot.slane %v2572, 4
        %v2575 = vrot.slane %v1437, 5
        %v2576 = vsel %vm2471, %v2574, %v2575
        %v2577 = vrot.slane %v2436, 5
        %v2578 = vrot.slane %v2577, 4
        %v2579 = vrot.slane %v1406, 5
        %v2580 = vsel %vm2471, %v2578, %v2579
        %v2581 = vrot.slane %v2579, 4
        %v2582 = vrot.slane %v1438, 5
        %v2583 = vsel %vm2471, %v2581, %v2582
        %s2584 = scalar_lea.vmem [#allocation8], 128
        %v2585 = vld [vmem:[%s2584] sm:$0xf]
        %v2586 = vld [vmem:[%s2584 + $0x4] sm:$0xf]
        %v2587 = vld [vmem:[%s2584 + $0x8] sm:$0xf]
        %v2588 = vld [vmem:[%s2584 + $0xc] sm:$0xf]
        %v2589 = vld [vmem:[%s2584 + $0x10] sm:$0xf]
        %v2590 = vld [vmem:[%s2584 + $0x14] sm:$0xf]
        %v2591 = vld [vmem:[%s2584 + $0x18] sm:$0xf]
        %v2592 = vld [vmem:[%s2584 + $0x1c] sm:$0xf]
        %v2593 = vld [vmem:[%s2584 + $0x20] sm:$0xf]
        %v2594 = vld [vmem:[%s2584 + $0x24] sm:$0xf]
        %v2595 = vld [vmem:[%s2584 + $0x28] sm:$0xf]
        %v2596 = vld [vmem:[%s2584 + $0x2c] sm:$0xf]
        %v2597 = vld [vmem:[%s2584 + $0x30] sm:$0xf]
        %v2598 = vld [vmem:[%s2584 + $0x34] sm:$0xf]
        %v2599 = vld [vmem:[%s2584 + $0x38] sm:$0xf]
        %v2600 = vld [vmem:[%s2584 + $0x3c] sm:$0xf]
        %v2601 = vunpack.c.l.b16 %v2475
        %v2602 = vunpack.c.l.b16 %v2478
        %v2603 = vunpack.c.l.b16 %v2482
        %v2604 = vunpack.c.l.b16 %v2485
        %v2605 = vunpack.c.l.b16 %v2489
        %v2606 = vunpack.c.l.b16 %v2492
        %v2607 = vunpack.c.l.b16 %v2496
        %v2608 = vunpack.c.l.b16 %v2499
        %v2609 = vunpack.c.l.b16 %v2503
        %v2610 = vunpack.c.l.b16 %v2506
        %v2611 = vunpack.c.l.b16 %v2510
        %v2612 = vunpack.c.l.b16 %v2513
        %v2613 = vunpack.c.l.b16 %v2517
        %v2614 = vunpack.c.l.b16 %v2520
        %v2615 = vunpack.c.l.b16 %v2524
        %v2616 = vunpack.c.l.b16 %v2527
        %v2617 = vunpack.c.l.b16 %v2531
        %v2618 = vunpack.c.l.b16 %v2534
        %v2619 = vunpack.c.l.b16 %v2538
        %v2620 = vunpack.c.l.b16 %v2541
        %v2621 = vunpack.c.l.b16 %v2545
        %v2622 = vunpack.c.l.b16 %v2548
        %v2623 = vunpack.c.l.b16 %v2552
        %v2624 = vunpack.c.l.b16 %v2555
        %v2625 = vunpack.c.l.b16 %v2559
        %v2626 = vunpack.c.l.b16 %v2562
        %v2627 = vunpack.c.l.b16 %v2566
        %v2628 = vunpack.c.l.b16 %v2569
        %v2629 = vunpack.c.l.b16 %v2573
        %v2630 = vunpack.c.l.b16 %v2576
        %v2631 = vunpack.c.l.b16 %v2580
        %v2632 = vunpack.c.l.b16 %v2583
        %v2633 = vpack.c.b16 %v2602, %v2601
        %v2634 = vpack.c.b16 %v2604, %v2603
        %v2635 = vpack.c.b16 %v2606, %v2605
        %v2636 = vpack.c.b16 %v2608, %v2607
        %v2637 = vpack.c.b16 %v2610, %v2609
        %v2638 = vpack.c.b16 %v2612, %v2611
        %v2639 = vpack.c.b16 %v2614, %v2613
        %v2640 = vpack.c.b16 %v2616, %v2615
        %v2641 = vpack.c.b16 %v2618, %v2617
        %v2642 = vpack.c.b16 %v2620, %v2619
        %v2643 = vpack.c.b16 %v2622, %v2621
        %v2644 = vpack.c.b16 %v2624, %v2623
        %v2645 = vpack.c.b16 %v2626, %v2625
        %v2646 = vpack.c.b16 %v2628, %v2627
        %v2647 = vpack.c.b16 %v2630, %v2629
        %v2648 = vpack.c.b16 %v2632, %v2631
        %v2681 = vunpack.c.l.b16 %v2585
        %v2682 = vunpack.c.l.b16 %v2586
        %v2683 = vunpack.c.l.b16 %v2587
        %v2684 = vunpack.c.l.b16 %v2588
        %v2685 = vunpack.c.l.b16 %v2589
        %v2686 = vunpack.c.l.b16 %v2590
        %v2687 = vunpack.c.l.b16 %v2591
        %v2688 = vunpack.c.l.b16 %v2592
        %v2689 = vunpack.c.l.b16 %v2593
        %v2690 = vunpack.c.l.b16 %v2594
        %v2691 = vunpack.c.l.b16 %v2595
        %v2692 = vunpack.c.l.b16 %v2596
        %v2693 = vunpack.c.l.b16 %v2597
        %v2694 = vunpack.c.l.b16 %v2598
        %v2695 = vunpack.c.l.b16 %v2599
        %v2696 = vunpack.c.l.b16 %v2600
        %v2697 = vpack.c.b16 %v2682, %v2681
        %v2698 = vpack.c.b16 %v2684, %v2683
        %v2699 = vpack.c.b16 %v2686, %v2685
        %v2700 = vpack.c.b16 %v2688, %v2687
        %v2701 = vpack.c.b16 %v2690, %v2689
        %v2702 = vpack.c.b16 %v2692, %v2691
        %v2703 = vpack.c.b16 %v2694, %v2693
        %v2704 = vpack.c.b16 %v2696, %v2695
        %2713 = vmatprep.subr.bf16.mxu0 0
        %2714 = vmatpush1.bf16.msra.mxu0 %v2697
        %2715 = vmatprep.subr.bf16.mxu0 0
        %2716 = vmatpush1.bf16.msra.mxu0 %v2698
        %2717 = vmatprep.subr.bf16.mxu0 0
        %2718 = vmatpush1.bf16.msra.mxu0 %v2699
        %2719 = vmatprep.subr.bf16.mxu0 0
        %2720 = vmatpush1.bf16.msra.mxu0 %v2700
        %2721 = vmatprep.subr.bf16.mxu0 0
        %2722 = vmatpush1.bf16.msra.mxu0 %v2701
        %2723 = vmatprep.subr.bf16.mxu0 0
        %2724 = vmatpush1.bf16.msra.mxu0 %v2702
        %2725 = vmatprep.subr.bf16.mxu0 0
        %2726 = vmatpush1.bf16.msra.mxu0 %v2703
        %2727 = vmatprep.subr.bf16.mxu0 0
        %2728 = vmatpush1.bf16.msra.mxu0 %v2704
        %2729 = vmatprep.subr.bf16.mxu0 0
        %2730 = vmatpush1.bf16.msra.mxu0 0
        %2731 = vmatprep.subr.bf16.mxu0 0
        %2732 = vmatpush1.bf16.msra.mxu0 0
        %2733 = vmatprep.subr.bf16.mxu0 0
        %2734 = vmatpush1.bf16.msra.mxu0 0
        %2735 = vmatprep.subr.bf16.mxu0 0
        %2736 = vmatpush1.bf16.msra.mxu0 0
        %2737 = vmatprep.subr.bf16.mxu0 0
        %2738 = vmatpush1.bf16.msra.mxu0 0
        %2739 = vmatprep.subr.bf16.mxu0 0
        %2740 = vmatpush1.bf16.msra.mxu0 0
        %2741 = vmatprep.subr.bf16.mxu0 0
        %2742 = vmatpush1.bf16.msra.mxu0 0
        %2743 = vmatprep.subr.bf16.mxu0 0
        %2744 = vmatpush1.bf16.msra.mxu0 0
        %2745 = vmatprep.mubr.bf16.mxu0 0
        %2746 = vmatmul.mubr.bf16.gmra.mrb[0].mxu0 %v2633
        %v2747 = vpop.f32.mrb[0].mxu0
        %v2748 = vadd.f32 0.0, %v2747
        %v2749 = vpop.f32.mrb[0].mxu0
        %v2750 = vpop.f32.mrb[0].mxu0
        %v2751 = vadd.f32 0.0, %v2750
        %v2752 = vpop.f32.mrb[0].mxu0
        %2753 = vmatprep.mubr.bf16.mxu0 0
        %2754 = vmatmul.mubr.bf16.gmra.mrb[0].mxu0 %v2634
        %v2755 = vpop.f32.mrb[0].mxu0
        %v2756 = vadd.f32 0.0, %v2755
        %v2757 = vpop.f32.mrb[0].mxu0
        %v2758 = vpop.f32.mrb[0].mxu0
        %v2759 = vadd.f32 0.0, %v2758
        %v2760 = vpop.f32.mrb[0].mxu0
        %2761 = vmatprep.mubr.bf16.mxu0 0
        %2762 = vmatmul.mubr.bf16.gmra.mrb[0].mxu0 %v2635
        %v2763 = vpop.f32.mrb[0].mxu0
        %v2764 = vadd.f32 0.0, %v2763
        %v2765 = vpop.f32.mrb[0].mxu0
        %v2766 = vpop.f32.mrb[0].mxu0
        %v2767 = vadd.f32 0.0, %v2766
        %v2768 = vpop.f32.mrb[0].mxu0
        %2769 = vmatprep.mubr.bf16.mxu0 0
        %2770 = vmatmul.mubr.bf16.gmra.mrb[0].mxu0 %v2636
        %v2771 = vpop.f32.mrb[0].mxu0
        %v2772 = vadd.f32 0.0, %v2771
        %v2773 = vpop.f32.mrb[0].mxu0
        %v2774 = vpop.f32.mrb[0].mxu0
        %v2775 = vadd.f32 0.0, %v2774
        %v2776 = vpop.f32.mrb[0].mxu0
        %2777 = vmatprep.mubr.bf16.mxu0 0
        %2778 = vmatmul.mubr.bf16.gmra.mrb[0].mxu0 %v2637
        %v2779 = vpop.f32.mrb[0].mxu0
        %v2780 = vadd.f32 0.0, %v2779
        %v2781 = vpop.f32.mrb[0].mxu0
        %v2782 = vpop.f32.mrb[0].mxu0
        %v2783 = vadd.f32 0.0, %v2782
        %v2784 = vpop.f32.mrb[0].mxu0
        %2785 = vmatprep.mubr.bf16.mxu0 0
        %2786 = vmatmul.mubr.bf16.gmra.mrb[0].mxu0 %v2638
        %v2787 = vpop.f32.mrb[0].mxu0
        %v2788 = vadd.f32 0.0, %v2787
        %v2789 = vpop.f32.mrb[0].mxu0
        %v2790 = vpop.f32.mrb[0].mxu0
        %v2791 = vadd.f32 0.0, %v2790
        %v2792 = vpop.f32.mrb[0].mxu0
        %2793 = vmatprep.mubr.bf16.mxu0 0
        %2794 = vmatmul.mubr.bf16.gmra.mrb[0].mxu0 %v2639
        %v2795 = vpop.f32.mrb[0].mxu0
        %v2796 = vadd.f32 0.0, %v2795
        %v2797 = vpop.f32.mrb[0].mxu0
        %v2798 = vpop.f32.mrb[0].mxu0
        %v2799 = vadd.f32 0.0, %v2798
        %v2800 = vpop.f32.mrb[0].mxu0
        %2801 = vmatprep.mubr.bf16.mxu0 0
        %2802 = vmatmul.mubr.bf16.gmra.mrb[0].mxu0 %v2640
        %v2803 = vpop.f32.mrb[0].mxu0
        %v2804 = vadd.f32 0.0, %v2803
        %v2805 = vpop.f32.mrb[0].mxu0
        %v2806 = vpop.f32.mrb[0].mxu0
        %v2807 = vadd.f32 0.0, %v2806
        %v2808 = vpop.f32.mrb[0].mxu0
        %2809 = vmatprep.mubr.bf16.mxu0 0
        %2810 = vmatmul.mubr.bf16.gmra.mrb[0].mxu0 %v2641
        %v2811 = vpop.f32.mrb[0].mxu0
        %v2812 = vadd.f32 0.0, %v2811
        %v2813 = vpop.f32.mrb[0].mxu0
        %v2814 = vpop.f32.mrb[0].mxu0
        %v2815 = vadd.f32 0.0, %v2814
        %v2816 = vpop.f32.mrb[0].mxu0
        %2817 = vmatprep.mubr.bf16.mxu0 0
        %2818 = vmatmul.mubr.bf16.gmra.mrb[0].mxu0 %v2642
        %v2819 = vpop.f32.mrb[0].mxu0
        %v2820 = vadd.f32 0.0, %v2819
        %v2821 = vpop.f32.mrb[0].mxu0
        %v2822 = vpop.f32.mrb[0].mxu0
        %v2823 = vadd.f32 0.0, %v2822
        %v2824 = vpop.f32.mrb[0].mxu0
        %2825 = vmatprep.mubr.bf16.mxu0 0
        %2826 = vmatmul.mubr.bf16.gmra.mrb[0].mxu0 %v2643
        %v2827 = vpop.f32.mrb[0].mxu0
        %v2828 = vadd.f32 0.0, %v2827
        %v2829 = vpop.f32.mrb[0].mxu0
        %v2830 = vpop.f32.mrb[0].mxu0
        %v2831 = vadd.f32 0.0, %v2830
        %v2832 = vpop.f32.mrb[0].mxu0
        %2833 = vmatprep.mubr.bf16.mxu0 0
        %2834 = vmatmul.mubr.bf16.gmra.mrb[0].mxu0 %v2644
        %v2835 = vpop.f32.mrb[0].mxu0
        %v2836 = vadd.f32 0.0, %v2835
        %v2837 = vpop.f32.mrb[0].mxu0
        %v2838 = vpop.f32.mrb[0].mxu0
        %v2839 = vadd.f32 0.0, %v2838
        %v2840 = vpop.f32.mrb[0].mxu0
        %2841 = vmatprep.mubr.bf16.mxu0 0
        %2842 = vmatmul.mubr.bf16.gmra.mrb[0].mxu0 %v2645
        %v2843 = vpop.f32.mrb[0].mxu0
        %v2844 = vadd.f32 0.0, %v2843
        %v2845 = vpop.f32.mrb[0].mxu0
        %v2846 = vpop.f32.mrb[0].mxu0
        %v2847 = vadd.f32 0.0, %v2846
        %v2848 = vpop.f32.mrb[0].mxu0
        %2849 = vmatprep.mubr.bf16.mxu0 0
        %2850 = vmatmul.mubr.bf16.gmra.mrb[0].mxu0 %v2646
        %v2851 = vpop.f32.mrb[0].mxu0
        %v2852 = vadd.f32 0.0, %v2851
        %v2853 = vpop.f32.mrb[0].mxu0
        %v2854 = vpop.f32.mrb[0].mxu0
        %v2855 = vadd.f32 0.0, %v2854
        %v2856 = vpop.f32.mrb[0].mxu0
        %2857 = vmatprep.mubr.bf16.mxu0 0
        %2858 = vmatmul.mubr.bf16.gmra.mrb[0].mxu0 %v2647
        %v2859 = vpop.f32.mrb[0].mxu0
        %v2860 = vadd.f32 0.0, %v2859
        %v2861 = vpop.f32.mrb[0].mxu0
        %v2862 = vpop.f32.mrb[0].mxu0
        %v2863 = vadd.f32 0.0, %v2862
        %v2864 = vpop.f32.mrb[0].mxu0
        %2865 = vmatprep.mubr.bf16.mxu0 0
        %2866 = vmatmul.mubr.bf16.gmra.mrb[0].mxu0 %v2648
        %v2867 = vpop.f32.mrb[0].mxu0
        %v2868 = vadd.f32 0.0, %v2867
        %v2869 = vpop.f32.mrb[0].mxu0
        %v2870 = vpop.f32.mrb[0].mxu0
        %v2871 = vadd.f32 0.0, %v2870
        %v2872 = vpop.f32.mrb[0].mxu0
        %2873 = vdwg.mxu0
        %v2874 = vadd.f32 %v2295, %v2748
        %v2875 = vadd.f32 %v2298, %v2751
        %v2876 = vadd.f32 %v2303, %v2756
        %v2877 = vadd.f32 %v2306, %v2759
        %v2878 = vadd.f32 %v2311, %v2764
        %v2879 = vadd.f32 %v2314, %v2767
        %v2880 = vadd.f32 %v2319, %v2772
        %v2881 = vadd.f32 %v2322, %v2775
        %v2882 = vadd.f32 %v2327, %v2780
        %v2883 = vadd.f32 %v2330, %v2783
        %v2884 = vadd.f32 %v2335, %v2788
        %v2885 = vadd.f32 %v2338, %v2791
        %v2886 = vadd.f32 %v2343, %v2796
        %v2887 = vadd.f32 %v2346, %v2799
        %v2888 = vadd.f32 %v2351, %v2804
        %v2889 = vadd.f32 %v2354, %v2807
        %v2890 = vadd.f32 %v2359, %v2812
        %v2891 = vadd.f32 %v2362, %v2815
        %v2892 = vadd.f32 %v2367, %v2820
        %v2893 = vadd.f32 %v2370, %v2823
        %v2894 = vadd.f32 %v2375, %v2828
        %v2895 = vadd.f32 %v2378, %v2831
        %v2896 = vadd.f32 %v2383, %v2836
        %v2897 = vadd.f32 %v2386, %v2839
        %v2898 = vadd.f32 %v2391, %v2844
        %v2899 = vadd.f32 %v2394, %v2847
        %v2900 = vadd.f32 %v2399, %v2852
        %v2901 = vadd.f32 %v2402, %v2855
        %v2902 = vadd.f32 %v2407, %v2860
        %v2903 = vadd.f32 %v2410, %v2863
        %v2904 = vadd.f32 %v2415, %v2868
        %v2905 = vadd.f32 %v2418, %v2871
        %v2906 = vld [vmem:[%s757] sm:$0xf]
        %v2907 = vld [vmem:[%s757 + $0x4] sm:$0xf]
        %v2908 = vld [vmem:[%s757 + $0xc] sm:$0xf]
        %v2909 = vld [vmem:[%s757 + $0x10] sm:$0xf]
        %v2910 = vld [vmem:[%s757 + $0x18] sm:$0xf]
        %v2911 = vld [vmem:[%s757 + $0x1c] sm:$0xf]
        %v2912 = vld [vmem:[%s757 + $0x24] sm:$0xf]
        %v2913 = vld [vmem:[%s757 + $0x28] sm:$0xf]
        %v2914 = vld [vmem:[%s757 + $0x30] sm:$0xf]
        %v2915 = vld [vmem:[%s757 + $0x34] sm:$0xf]
        %v2916 = vld [vmem:[%s757 + $0x3c] sm:$0xf]
        %v2917 = vld [vmem:[%s757 + $0x40] sm:$0xf]
        %v2918 = vld [vmem:[%s757 + $0x48] sm:$0xf]
        %v2919 = vld [vmem:[%s757 + $0x4c] sm:$0xf]
        %v2920 = vld [vmem:[%s757 + $0x54] sm:$0xf]
        %v2921 = vld [vmem:[%s757 + $0x58] sm:$0xf]
        %v2922 = vld [vmem:[%s757 + $0x60] sm:$0xf]
        %v2923 = vld [vmem:[%s757 + $0x64] sm:$0xf]
        %v2924 = vld [vmem:[%s757 + $0x6c] sm:$0xf]
        %v2925 = vld [vmem:[%s757 + $0x70] sm:$0xf]
        %v2926 = vld [vmem:[%s757 + $0x78] sm:$0xf]
        %v2927 = vld [vmem:[%s757 + $0x7c] sm:$0xf]
        %v2928 = vld [vmem:[%s757 + $0x84] sm:$0xf]
        %v2929 = vld [vmem:[%s757 + $0x88] sm:$0xf]
        %v2930 = vld [vmem:[%s757 + $0x90] sm:$0xf]
        %v2931 = vld [vmem:[%s757 + $0x94] sm:$0xf]
        %v2932 = vld [vmem:[%s757 + $0x9c] sm:$0xf]
        %v2933 = vld [vmem:[%s757 + $0xa0] sm:$0xf]
        %v2934 = vld [vmem:[%s757 + $0xa8] sm:$0xf]
        %v2935 = vld [vmem:[%s757 + $0xac] sm:$0xf]
        %v2936 = vld [vmem:[%s757 + $0xb4] sm:$0xf]
        %v2937 = vld [vmem:[%s757 + $0xb8] sm:$0xf]
        %s2938 = scalar_lea.vmem [#allocation8], 192
        %v2939 = vld [vmem:[%s2938] sm:$0xf]
        %v2940 = vld [vmem:[%s2938 + $0x4] sm:$0xf]
        %v2941 = vld [vmem:[%s2938 + $0x8] sm:$0xf]
        %v2942 = vld [vmem:[%s2938 + $0xc] sm:$0xf]
        %v2943 = vld [vmem:[%s2938 + $0x10] sm:$0xf]
        %v2944 = vld [vmem:[%s2938 + $0x14] sm:$0xf]
        %v2945 = vld [vmem:[%s2938 + $0x18] sm:$0xf]
        %v2946 = vld [vmem:[%s2938 + $0x1c] sm:$0xf]
        %v2947 = vld [vmem:[%s2938 + $0x20] sm:$0xf]
        %v2948 = vld [vmem:[%s2938 + $0x24] sm:$0xf]
        %v2949 = vld [vmem:[%s2938 + $0x28] sm:$0xf]
        %v2950 = vld [vmem:[%s2938 + $0x2c] sm:$0xf]
        %v2951 = vld [vmem:[%s2938 + $0x30] sm:$0xf]
        %v2952 = vld [vmem:[%s2938 + $0x34] sm:$0xf]
        %v2953 = vld [vmem:[%s2938 + $0x38] sm:$0xf]
        %v2954 = vld [vmem:[%s2938 + $0x3c] sm:$0xf]
        %v2987 = vunpack.c.l.b16 %v2906
        %v2988 = vunpack.c.l.b16 %v2907
        %v2989 = vunpack.c.l.b16 %v2908
        %v2990 = vunpack.c.l.b16 %v2909
        %v2991 = vunpack.c.l.b16 %v2910
        %v2992 = vunpack.c.l.b16 %v2911
        %v2993 = vunpack.c.l.b16 %v2912
        %v2994 = vunpack.c.l.b16 %v2913
        %v2995 = vunpack.c.l.b16 %v2914
        %v2996 = vunpack.c.l.b16 %v2915
        %v2997 = vunpack.c.l.b16 %v2916
        %v2998 = vunpack.c.l.b16 %v2917
        %v2999 = vunpack.c.l.b16 %v2918
        %v3000 = vunpack.c.l.b16 %v2919
        %v3001 = vunpack.c.l.b16 %v2920
        %v3002 = vunpack.c.l.b16 %v2921
        %v3003 = vunpack.c.l.b16 %v2922
        %v3004 = vunpack.c.l.b16 %v2923
        %v3005 = vunpack.c.l.b16 %v2924
        %v3006 = vunpack.c.l.b16 %v2925
        %v3007 = vunpack.c.l.b16 %v2926
        %v3008 = vunpack.c.l.b16 %v2927
        %v3009 = vunpack.c.l.b16 %v2928
        %v3010 = vunpack.c.l.b16 %v2929
        %v3011 = vunpack.c.l.b16 %v2930
        %v3012 = vunpack.c.l.b16 %v2931
        %v3013 = vunpack.c.l.b16 %v2932
        %v3014 = vunpack.c.l.b16 %v2933
        %v3015 = vunpack.c.l.b16 %v2934
        %v3016 = vunpack.c.l.b16 %v2935
        %v3017 = vunpack.c.l.b16 %v2936
        %v3018 = vunpack.c.l.b16 %v2937
        %v3019 = vpack.c.b16 %v2988, %v2987
        %v3020 = vpack.c.b16 %v2990, %v2989
        %v3021 = vpack.c.b16 %v2992, %v2991
        %v3022 = vpack.c.b16 %v2994, %v2993
        %v3023 = vpack.c.b16 %v2996, %v2995
        %v3024 = vpack.c.b16 %v2998, %v2997
        %v3025 = vpack.c.b16 %v3000, %v2999
        %v3026 = vpack.c.b16 %v3002, %v3001
        %v3027 = vpack.c.b16 %v3004, %v3003
        %v3028 = vpack.c.b16 %v3006, %v3005
        %v3029 = vpack.c.b16 %v3008, %v3007
        %v3030 = vpack.c.b16 %v3010, %v3009
        %v3031 = vpack.c.b16 %v3012, %v3011
        %v3032 = vpack.c.b16 %v3014, %v3013
        %v3033 = vpack.c.b16 %v3016, %v3015
        %v3034 = vpack.c.b16 %v3018, %v3017
        %v3067 = vunpack.c.l.b16 %v2939
        %v3068 = vunpack.c.l.b16 %v2940
        %v3069 = vunpack.c.l.b16 %v2941
        %v3070 = vunpack.c.l.b16 %v2942
        %v3071 = vunpack.c.l.b16 %v2943
        %v3072 = vunpack.c.l.b16 %v2944
        %v3073 = vunpack.c.l.b16 %v2945
        %v3074 = vunpack.c.l.b16 %v2946
        %v3075 = vunpack.c.l.b16 %v2947
        %v3076 = vunpack.c.l.b16 %v2948
        %v3077 = vunpack.c.l.b16 %v2949
        %v3078 = vunpack.c.l.b16 %v2950
        %v3079 = vunpack.c.l.b16 %v2951
        %v3080 = vunpack.c.l.b16 %v2952
        %v3081 = vunpack.c.l.b16 %v2953
        %v3082 = vunpack.c.l.b16 %v2954
        %v3083 = vpack.c.b16 %v3068, %v3067
        %v3084 = vpack.c.b16 %v3070, %v3069
        %v3085 = vpack.c.b16 %v3072, %v3071
        %v3086 = vpack.c.b16 %v3074, %v3073
        %v3087 = vpack.c.b16 %v3076, %v3075
        %v3088 = vpack.c.b16 %v3078, %v3077
        %v3089 = vpack.c.b16 %v3080, %v3079
        %v3090 = vpack.c.b16 %v3082, %v3081
        %3099 = vmatprep.subr.bf16.mxu0 0
        %3100 = vmatpush1.bf16.msra.mxu0 %v3083
        %3101 = vmatprep.subr.bf16.mxu0 0
        %3102 = vmatpush1.bf16.msra.mxu0 %v3084
        %3103 = vmatprep.subr.bf16.mxu0 0
        %3104 = vmatpush1.bf16.msra.mxu0 %v3085
        %3105 = vmatprep.subr.bf16.mxu0 0
        %3106 = vmatpush1.bf16.msra.mxu0 %v3086
        %3107 = vmatprep.subr.bf16.mxu0 0
        %3108 = vmatpush1.bf16.msra.mxu0 %v3087
        %3109 = vmatprep.subr.bf16.mxu0 0
        %3110 = vmatpush1.bf16.msra.mxu0 %v3088
        %3111 = vmatprep.subr.bf16.mxu0 0
        %3112 = vmatpush1.bf16.msra.mxu0 %v3089
        %3113 = vmatprep.subr.bf16.mxu0 0
        %3114 = vmatpush1.bf16.msra.mxu0 %v3090
        %3115 = vmatprep.subr.bf16.mxu0 0
        %3116 = vmatpush1.bf16.msra.mxu0 0
        %3117 = vmatprep.subr.bf16.mxu0 0
        %3118 = vmatpush1.bf16.msra.mxu0 0
        %3119 = vmatprep.subr.bf16.mxu0 0
        %3120 = vmatpush1.bf16.msra.mxu0 0
        %3121 = vmatprep.subr.bf16.mxu0 0
        %3122 = vmatpush1.bf16.msra.mxu0 0
        %3123 = vmatprep.subr.bf16.mxu0 0
        %3124 = vmatpush1.bf16.msra.mxu0 0
        %3125 = vmatprep.subr.bf16.mxu0 0
        %3126 = vmatpush1.bf16.msra.mxu0 0
        %3127 = vmatprep.subr.bf16.mxu0 0
        %3128 = vmatpush1.bf16.msra.mxu0 0
        %3129 = vmatprep.subr.bf16.mxu0 0
        %3130 = vmatpush1.bf16.msra.mxu0 0
        %3131 = vmatprep.mubr.bf16.mxu0 0
        %3132 = vmatmul.mubr.bf16.gmra.mrb[0].mxu0 %v3019
        %v3133 = vpop.f32.mrb[0].mxu0
        %v3134 = vadd.f32 0.0, %v3133
        %v3135 = vpop.f32.mrb[0].mxu0
        %v3136 = vpop.f32.mrb[0].mxu0
        %v3137 = vadd.f32 0.0, %v3136
        %v3138 = vpop.f32.mrb[0].mxu0
        %3139 = vmatprep.mubr.bf16.mxu0 0
        %3140 = vmatmul.mubr.bf16.gmra.mrb[0].mxu0 %v3020
        %v3141 = vpop.f32.mrb[0].mxu0
        %v3142 = vadd.f32 0.0, %v3141
        %v3143 = vpop.f32.mrb[0].mxu0
        %v3144 = vpop.f32.mrb[0].mxu0
        %v3145 = vadd.f32 0.0, %v3144
        %v3146 = vpop.f32.mrb[0].mxu0
        %3147 = vmatprep.mubr.bf16.mxu0 0
        %3148 = vmatmul.mubr.bf16.gmra.mrb[0].mxu0 %v3021
        %v3149 = vpop.f32.mrb[0].mxu0
        %v3150 = vadd.f32 0.0, %v3149
        %v3151 = vpop.f32.mrb[0].mxu0
        %v3152 = vpop.f32.mrb[0].mxu0
        %v3153 = vadd.f32 0.0, %v3152
        %v3154 = vpop.f32.mrb[0].mxu0
        %3155 = vmatprep.mubr.bf16.mxu0 0
        %3156 = vmatmul.mubr.bf16.gmra.mrb[0].mxu0 %v3022
        %v3157 = vpop.f32.mrb[0].mxu0
        %v3158 = vadd.f32 0.0, %v3157
        %v3159 = vpop.f32.mrb[0].mxu0
        %v3160 = vpop.f32.mrb[0].mxu0
        %v3161 = vadd.f32 0.0, %v3160
        %v3162 = vpop.f32.mrb[0].mxu0
        %3163 = vmatprep.mubr.bf16.mxu0 0
        %3164 = vmatmul.mubr.bf16.gmra.mrb[0].mxu0 %v3023
        %v3165 = vpop.f32.mrb[0].mxu0
        %v3166 = vadd.f32 0.0, %v3165
        %v3167 = vpop.f32.mrb[0].mxu0
        %v3168 = vpop.f32.mrb[0].mxu0
        %v3169 = vadd.f32 0.0, %v3168
        %v3170 = vpop.f32.mrb[0].mxu0
        %3171 = vmatprep.mubr.bf16.mxu0 0
        %3172 = vmatmul.mubr.bf16.gmra.mrb[0].mxu0 %v3024
        %v3173 = vpop.f32.mrb[0].mxu0
        %v3174 = vadd.f32 0.0, %v3173
        %v3175 = vpop.f32.mrb[0].mxu0
        %v3176 = vpop.f32.mrb[0].mxu0
        %v3177 = vadd.f32 0.0, %v3176
        %v3178 = vpop.f32.mrb[0].mxu0
        %3179 = vmatprep.mubr.bf16.mxu0 0
        %3180 = vmatmul.mubr.bf16.gmra.mrb[0].mxu0 %v3025
        %v3181 = vpop.f32.mrb[0].mxu0
        %v3182 = vadd.f32 0.0, %v3181
        %v3183 = vpop.f32.mrb[0].mxu0
        %v3184 = vpop.f32.mrb[0].mxu0
        %v3185 = vadd.f32 0.0, %v3184
        %v3186 = vpop.f32.mrb[0].mxu0
        %3187 = vmatprep.mubr.bf16.mxu0 0
        %3188 = vmatmul.mubr.bf16.gmra.mrb[0].mxu0 %v3026
        %v3189 = vpop.f32.mrb[0].mxu0
        %v3190 = vadd.f32 0.0, %v3189
        %v3191 = vpop.f32.mrb[0].mxu0
        %v3192 = vpop.f32.mrb[0].mxu0
        %v3193 = vadd.f32 0.0, %v3192
        %v3194 = vpop.f32.mrb[0].mxu0
        %3195 = vmatprep.mubr.bf16.mxu0 0
        %3196 = vmatmul.mubr.bf16.gmra.mrb[0].mxu0 %v3027
        %v3197 = vpop.f32.mrb[0].mxu0
        %v3198 = vadd.f32 0.0, %v3197
        %v3199 = vpop.f32.mrb[0].mxu0
        %v3200 = vpop.f32.mrb[0].mxu0
        %v3201 = vadd.f32 0.0, %v3200
        %v3202 = vpop.f32.mrb[0].mxu0
        %3203 = vmatprep.mubr.bf16.mxu0 0
        %3204 = vmatmul.mubr.bf16.gmra.mrb[0].mxu0 %v3028
        %v3205 = vpop.f32.mrb[0].mxu0
        %v3206 = vadd.f32 0.0, %v3205
        %v3207 = vpop.f32.mrb[0].mxu0
        %v3208 = vpop.f32.mrb[0].mxu0
        %v3209 = vadd.f32 0.0, %v3208
        %v3210 = vpop.f32.mrb[0].mxu0
        %3211 = vmatprep.mubr.bf16.mxu0 0
        %3212 = vmatmul.mubr.bf16.gmra.mrb[0].mxu0 %v3029
        %v3213 = vpop.f32.mrb[0].mxu0
        %v3214 = vadd.f32 0.0, %v3213
        %v3215 = vpop.f32.mrb[0].mxu0
        %v3216 = vpop.f32.mrb[0].mxu0
        %v3217 = vadd.f32 0.0, %v3216
        %v3218 = vpop.f32.mrb[0].mxu0
        %3219 = vmatprep.mubr.bf16.mxu0 0
        %3220 = vmatmul.mubr.bf16.gmra.mrb[0].mxu0 %v3030
        %v3221 = vpop.f32.mrb[0].mxu0
        %v3222 = vadd.f32 0.0, %v3221
        %v3223 = vpop.f32.mrb[0].mxu0
        %v3224 = vpop.f32.mrb[0].mxu0
        %v3225 = vadd.f32 0.0, %v3224
        %v3226 = vpop.f32.mrb[0].mxu0
        %3227 = vmatprep.mubr.bf16.mxu0 0
        %3228 = vmatmul.mubr.bf16.gmra.mrb[0].mxu0 %v3031
        %v3229 = vpop.f32.mrb[0].mxu0
        %v3230 = vadd.f32 0.0, %v3229
        %v3231 = vpop.f32.mrb[0].mxu0
        %v3232 = vpop.f32.mrb[0].mxu0
        %v3233 = vadd.f32 0.0, %v3232
        %v3234 = vpop.f32.mrb[0].mxu0
        %3235 = vmatprep.mubr.bf16.mxu0 0
        %3236 = vmatmul.mubr.bf16.gmra.mrb[0].mxu0 %v3032
        %v3237 = vpop.f32.mrb[0].mxu0
        %v3238 = vadd.f32 0.0, %v3237
        %v3239 = vpop.f32.mrb[0].mxu0
        %v3240 = vpop.f32.mrb[0].mxu0
        %v3241 = vadd.f32 0.0, %v3240
        %v3242 = vpop.f32.mrb[0].mxu0
        %3243 = vmatprep.mubr.bf16.mxu0 0
        %3244 = vmatmul.mubr.bf16.gmra.mrb[0].mxu0 %v3033
        %v3245 = vpop.f32.mrb[0].mxu0
        %v3246 = vadd.f32 0.0, %v3245
        %v3247 = vpop.f32.mrb[0].mxu0
        %v3248 = vpop.f32.mrb[0].mxu0
        %v3249 = vadd.f32 0.0, %v3248
        %v3250 = vpop.f32.mrb[0].mxu0
        %3251 = vmatprep.mubr.bf16.mxu0 0
        %3252 = vmatmul.mubr.bf16.gmra.mrb[0].mxu0 %v3034
        %v3253 = vpop.f32.mrb[0].mxu0
        %v3254 = vadd.f32 0.0, %v3253
        %v3255 = vpop.f32.mrb[0].mxu0
        %v3256 = vpop.f32.mrb[0].mxu0
        %v3257 = vadd.f32 0.0, %v3256
        %v3258 = vpop.f32.mrb[0].mxu0
        %3259 = vdwg.mxu0
        %v3260 = vadd.f32 %v2874, %v3134
        %v3261 = vadd.f32 %v2875, %v3137
        %v3262 = vadd.f32 %v2876, %v3142
        %v3263 = vadd.f32 %v2877, %v3145
        %v3264 = vadd.f32 %v2878, %v3150
        %v3265 = vadd.f32 %v2879, %v3153
        %v3266 = vadd.f32 %v2880, %v3158
        %v3267 = vadd.f32 %v2881, %v3161
        %v3268 = vadd.f32 %v2882, %v3166
        %v3269 = vadd.f32 %v2883, %v3169
        %v3270 = vadd.f32 %v2884, %v3174
        %v3271 = vadd.f32 %v2885, %v3177
        %v3272 = vadd.f32 %v2886, %v3182
        %v3273 = vadd.f32 %v2887, %v3185
        %v3274 = vadd.f32 %v2888, %v3190
        %v3275 = vadd.f32 %v2889, %v3193
        %v3276 = vadd.f32 %v2890, %v3198
        %v3277 = vadd.f32 %v2891, %v3201
        %v3278 = vadd.f32 %v2892, %v3206
        %v3279 = vadd.f32 %v2893, %v3209
        %v3280 = vadd.f32 %v2894, %v3214
        %v3281 = vadd.f32 %v2895, %v3217
        %v3282 = vadd.f32 %v2896, %v3222
        %v3283 = vadd.f32 %v2897, %v3225
        %v3284 = vadd.f32 %v2898, %v3230
        %v3285 = vadd.f32 %v2899, %v3233
        %v3286 = vadd.f32 %v2900, %v3238
        %v3287 = vadd.f32 %v2901, %v3241
        %v3288 = vadd.f32 %v2902, %v3246
        %v3289 = vadd.f32 %v2903, %v3249
        %v3290 = vadd.f32 %v2904, %v3254
        %v3291 = vadd.f32 %v2905, %v3257
        %v3292 = vld [vmem:[%s757] sm:$0xf]
        %v3293 = vld [vmem:[%s757 + $0x4] sm:$0xf]
        %v3294 = vld [vmem:[%s757 + $0x8] sm:$0x1]
        %v3295 = vld [vmem:[%s757 + $0xc] sm:$0xf]
        %v3296 = vld [vmem:[%s757 + $0x10] sm:$0xf]
        %v3297 = vld [vmem:[%s757 + $0x14] sm:$0x1]
        %v3298 = vld [vmem:[%s757 + $0x18] sm:$0xf]
        %v3299 = vld [vmem:[%s757 + $0x1c] sm:$0xf]
        %v3300 = vld [vmem:[%s757 + $0x20] sm:$0x1]
        %v3301 = vld [vmem:[%s757 + $0x24] sm:$0xf]
        %v3302 = vld [vmem:[%s757 + $0x28] sm:$0xf]
        %v3303 = vld [vmem:[%s757 + $0x2c] sm:$0x1]
        %v3304 = vld [vmem:[%s757 + $0x30] sm:$0xf]
        %v3305 = vld [vmem:[%s757 + $0x34] sm:$0xf]
        %v3306 = vld [vmem:[%s757 + $0x38] sm:$0x1]
        %v3307 = vld [vmem:[%s757 + $0x3c] sm:$0xf]
        %v3308 = vld [vmem:[%s757 + $0x40] sm:$0xf]
        %v3309 = vld [vmem:[%s757 + $0x44] sm:$0x1]
        %v3310 = vld [vmem:[%s757 + $0x48] sm:$0xf]
        %v3311 = vld [vmem:[%s757 + $0x4c] sm:$0xf]
        %v3312 = vld [vmem:[%s757 + $0x50] sm:$0x1]
        %v3313 = vld [vmem:[%s757 + $0x54] sm:$0xf]
        %v3314 = vld [vmem:[%s757 + $0x58] sm:$0xf]
        %v3315 = vld [vmem:[%s757 + $0x5c] sm:$0x1]
        %v3316 = vld [vmem:[%s757 + $0x60] sm:$0xf]
        %v3317 = vld [vmem:[%s757 + $0x64] sm:$0xf]
        %v3318 = vld [vmem:[%s757 + $0x68] sm:$0x1]
        %v3319 = vld [vmem:[%s757 + $0x6c] sm:$0xf]
        %v3320 = vld [vmem:[%s757 + $0x70] sm:$0xf]
        %v3321 = vld [vmem:[%s757 + $0x74] sm:$0x1]
        %v3322 = vld [vmem:[%s757 + $0x78] sm:$0xf]
        %v3323 = vld [vmem:[%s757 + $0x7c] sm:$0xf]
        %v3324 = vld [vmem:[%s757 + $0x80] sm:$0x1]
        %v3325 = vld [vmem:[%s757 + $0x84] sm:$0xf]
        %v3326 = vld [vmem:[%s757 + $0x88] sm:$0xf]
        %v3327 = vld [vmem:[%s757 + $0x8c] sm:$0x1]
        %v3328 = vld [vmem:[%s757 + $0x90] sm:$0xf]
        %v3329 = vld [vmem:[%s757 + $0x94] sm:$0xf]
        %v3330 = vld [vmem:[%s757 + $0x98] sm:$0x1]
        %v3331 = vld [vmem:[%s757 + $0x9c] sm:$0xf]
        %v3332 = vld [vmem:[%s757 + $0xa0] sm:$0xf]
        %v3333 = vld [vmem:[%s757 + $0xa4] sm:$0x1]
        %v3334 = vld [vmem:[%s757 + $0xa8] sm:$0xf]
        %v3335 = vld [vmem:[%s757 + $0xac] sm:$0xf]
        %v3336 = vld [vmem:[%s757 + $0xb0] sm:$0x1]
        %v3337 = vld [vmem:[%s757 + $0xb4] sm:$0xf]
        %v3338 = vld [vmem:[%s757 + $0xb8] sm:$0xf]
        %v3339 = vld [vmem:[%s757 + $0xbc] sm:$0x1]
        %v3341 = vshrl.u32 %v3292, 16
        %v3343 = vrot.slane %v3341, 4
        %v3344 = vshll.u32 %v3292, 16
        %v3346 = vrot.slane %v3344, 5
        %v3347 = vor.u32 %v3343, %v3346
        %v3348 = vrot.slane %v3347, 4
        %v3350 = vshll.u32 %v3293, 16
        %v3352 = vrot.slane %v3350, 5
        %v3353 = vsel %vm1441, %v3348, %v3352
        %v3354 = vshrl.u32 %v3293, 16
        %v3356 = vrot.slane %v3354, 4
        %v3357 = vor.u32 %v3356, %v3352
        %v3358 = vrot.slane %v3357, 4
        %v3360 = vshll.u32 %v3294, 16
        %v3362 = vrot.slane %v3360, 5
        %v3363 = vsel %vm1441, %v3358, %v3362
        %v3365 = vshrl.u32 %v3295, 16
        %v3367 = vrot.slane %v3365, 4
        %v3368 = vshll.u32 %v3295, 16
        %v3370 = vrot.slane %v3368, 5
        %v3371 = vor.u32 %v3367, %v3370
        %v3372 = vrot.slane %v3371, 4
        %v3374 = vshll.u32 %v3296, 16
        %v3376 = vrot.slane %v3374, 5
        %v3377 = vsel %vm1441, %v3372, %v3376
        %v3378 = vshrl.u32 %v3296, 16
        %v3380 = vrot.slane %v3378, 4
        %v3381 = vor.u32 %v3380, %v3376
        %v3382 = vrot.slane %v3381, 4
        %v3384 = vshll.u32 %v3297, 16
        %v3386 = vrot.slane %v3384, 5
        %v3387 = vsel %vm1441, %v3382, %v3386
        %v3389 = vshrl.u32 %v3298, 16
        %v3391 = vrot.slane %v3389, 4
        %v3392 = vshll.u32 %v3298, 16
        %v3394 = vrot.slane %v3392, 5
        %v3395 = vor.u32 %v3391, %v3394
        %v3396 = vrot.slane %v3395, 4
        %v3398 = vshll.u32 %v3299, 16
        %v3400 = vrot.slane %v3398, 5
        %v3401 = vsel %vm1441, %v3396, %v3400
        %v3402 = vshrl.u32 %v3299, 16
        %v3404 = vrot.slane %v3402, 4
        %v3405 = vor.u32 %v3404, %v3400
        %v3406 = vrot.slane %v3405, 4
        %v3408 = vshll.u32 %v3300, 16
        %v3410 = vrot.slane %v3408, 5
        %v3411 = vsel %vm1441, %v3406, %v3410
        %v3413 = vshrl.u32 %v3301, 16
        %v3415 = vrot.slane %v3413, 4
        %v3416 = vshll.u32 %v3301, 16
        %v3418 = vrot.slane %v3416, 5
        %v3419 = vor.u32 %v3415, %v3418
        %v3420 = vrot.slane %v3419, 4
        %v3422 = vshll.u32 %v3302, 16
        %v3424 = vrot.slane %v3422, 5
        %v3425 = vsel %vm1441, %v3420, %v3424
        %v3426 = vshrl.u32 %v3302, 16
        %v3428 = vrot.slane %v3426, 4
        %v3429 = vor.u32 %v3428, %v3424
        %v3430 = vrot.slane %v3429, 4
        %v3432 = vshll.u32 %v3303, 16
        %v3434 = vrot.slane %v3432, 5
        %v3435 = vsel %vm1441, %v3430, %v3434
        %v3437 = vshrl.u32 %v3304, 16
        %v3439 = vrot.slane %v3437, 4
        %v3440 = vshll.u32 %v3304, 16
        %v3442 = vrot.slane %v3440, 5
        %v3443 = vor.u32 %v3439, %v3442
        %v3444 = vrot.slane %v3443, 4
        %v3446 = vshll.u32 %v3305, 16
        %v3448 = vrot.slane %v3446, 5
        %v3449 = vsel %vm1441, %v3444, %v3448
        %v3450 = vshrl.u32 %v3305, 16
        %v3452 = vrot.slane %v3450, 4
        %v3453 = vor.u32 %v3452, %v3448
        %v3454 = vrot.slane %v3453, 4
        %v3456 = vshll.u32 %v3306, 16
        %v3458 = vrot.slane %v3456, 5
        %v3459 = vsel %vm1441, %v3454, %v3458
        %v3461 = vshrl.u32 %v3307, 16
        %v3463 = vrot.slane %v3461, 4
        %v3464 = vshll.u32 %v3307, 16
        %v3466 = vrot.slane %v3464, 5
        %v3467 = vor.u32 %v3463, %v3466
        %v3468 = vrot.slane %v3467, 4
        %v3470 = vshll.u32 %v3308, 16
        %v3472 = vrot.slane %v3470, 5
        %v3473 = vsel %vm1441, %v3468, %v3472
        %v3474 = vshrl.u32 %v3308, 16
        %v3476 = vrot.slane %v3474, 4
        %v3477 = vor.u32 %v3476, %v3472
        %v3478 = vrot.slane %v3477, 4
        %v3480 = vshll.u32 %v3309, 16
        %v3482 = vrot.slane %v3480, 5
        %v3483 = vsel %vm1441, %v3478, %v3482
        %v3485 = vshrl.u32 %v3310, 16
        %v3487 = vrot.slane %v3485, 4
        %v3488 = vshll.u32 %v3310, 16
        %v3490 = vrot.slane %v3488, 5
        %v3491 = vor.u32 %v3487, %v3490
        %v3492 = vrot.slane %v3491, 4
        %v3494 = vshll.u32 %v3311, 16
        %v3496 = vrot.slane %v3494, 5
        %v3497 = vsel %vm1441, %v3492, %v3496
        %v3498 = vshrl.u32 %v3311, 16
        %v3500 = vrot.slane %v3498, 4
        %v3501 = vor.u32 %v3500, %v3496
        %v3502 = vrot.slane %v3501, 4
        %v3504 = vshll.u32 %v3312, 16
        %v3506 = vrot.slane %v3504, 5
        %v3507 = vsel %vm1441, %v3502, %v3506
        %v3509 = vshrl.u32 %v3313, 16
        %v3511 = vrot.slane %v3509, 4
        %v3512 = vshll.u32 %v3313, 16
        %v3514 = vrot.slane %v3512, 5
        %v3515 = vor.u32 %v3511, %v3514
        %v3516 = vrot.slane %v3515, 4
        %v3518 = vshll.u32 %v3314, 16
        %v3520 = vrot.slane %v3518, 5
        %v3521 = vsel %vm1441, %v3516, %v3520
        %v3522 = vshrl.u32 %v3314, 16
        %v3524 = vrot.slane %v3522, 4
        %v3525 = vor.u32 %v3524, %v3520
        %v3526 = vrot.slane %v3525, 4
        %v3528 = vshll.u32 %v3315, 16
        %v3530 = vrot.slane %v3528, 5
        %v3531 = vsel %vm1441, %v3526, %v3530
        %v3533 = vshrl.u32 %v3316, 16
        %v3535 = vrot.slane %v3533, 4
        %v3536 = vshll.u32 %v3316, 16
        %v3538 = vrot.slane %v3536, 5
        %v3539 = vor.u32 %v3535, %v3538
        %v3540 = vrot.slane %v3539, 4
        %v3542 = vshll.u32 %v3317, 16
        %v3544 = vrot.slane %v3542, 5
        %v3545 = vsel %vm1441, %v3540, %v3544
        %v3546 = vshrl.u32 %v3317, 16
        %v3548 = vrot.slane %v3546, 4
        %v3549 = vor.u32 %v3548, %v3544
        %v3550 = vrot.slane %v3549, 4
        %v3552 = vshll.u32 %v3318, 16
        %v3554 = vrot.slane %v3552, 5
        %v3555 = vsel %vm1441, %v3550, %v3554
        %v3557 = vshrl.u32 %v3319, 16
        %v3559 = vrot.slane %v3557, 4
        %v3560 = vshll.u32 %v3319, 16
        %v3562 = vrot.slane %v3560, 5
        %v3563 = vor.u32 %v3559, %v3562
        %v3564 = vrot.slane %v3563, 4
        %v3566 = vshll.u32 %v3320, 16
        %v3568 = vrot.slane %v3566, 5
        %v3569 = vsel %vm1441, %v3564, %v3568
        %v3570 = vshrl.u32 %v3320, 16
        %v3572 = vrot.slane %v3570, 4
        %v3573 = vor.u32 %v3572, %v3568
        %v3574 = vrot.slane %v3573, 4
        %v3576 = vshll.u32 %v3321, 16
        %v3578 = vrot.slane %v3576, 5
        %v3579 = vsel %vm1441, %v3574, %v3578
        %v3581 = vshrl.u32 %v3322, 16
        %v3583 = vrot.slane %v3581, 4
        %v3584 = vshll.u32 %v3322, 16
        %v3586 = vrot.slane %v3584, 5
        %v3587 = vor.u32 %v3583, %v3586
        %v3588 = vrot.slane %v3587, 4
        %v3590 = vshll.u32 %v3323, 16
        %v3592 = vrot.slane %v3590, 5
        %v3593 = vsel %vm1441, %v3588, %v3592
        %v3594 = vshrl.u32 %v3323, 16
        %v3596 = vrot.slane %v3594, 4
        %v3597 = vor.u32 %v3596, %v3592
        %v3598 = vrot.slane %v3597, 4
        %v3600 = vshll.u32 %v3324, 16
        %v3602 = vrot.slane %v3600, 5
        %v3603 = vsel %vm1441, %v3598, %v3602
        %v3605 = vshrl.u32 %v3325, 16
        %v3607 = vrot.slane %v3605, 4
        %v3608 = vshll.u32 %v3325, 16
        %v3610 = vrot.slane %v3608, 5
        %v3611 = vor.u32 %v3607, %v3610
        %v3612 = vrot.slane %v3611, 4
        %v3614 = vshll.u32 %v3326, 16
        %v3616 = vrot.slane %v3614, 5
        %v3617 = vsel %vm1441, %v3612, %v3616
        %v3618 = vshrl.u32 %v3326, 16
        %v3620 = vrot.slane %v3618, 4
        %v3621 = vor.u32 %v3620, %v3616
        %v3622 = vrot.slane %v3621, 4
        %v3624 = vshll.u32 %v3327, 16
        %v3626 = vrot.slane %v3624, 5
        %v3627 = vsel %vm1441, %v3622, %v3626
        %v3629 = vshrl.u32 %v3328, 16
        %v3631 = vrot.slane %v3629, 4
        %v3632 = vshll.u32 %v3328, 16
        %v3634 = vrot.slane %v3632, 5
        %v3635 = vor.u32 %v3631, %v3634
        %v3636 = vrot.slane %v3635, 4
        %v3638 = vshll.u32 %v3329, 16
        %v3640 = vrot.slane %v3638, 5
        %v3641 = vsel %vm1441, %v3636, %v3640
        %v3642 = vshrl.u32 %v3329, 16
        %v3644 = vrot.slane %v3642, 4
        %v3645 = vor.u32 %v3644, %v3640
        %v3646 = vrot.slane %v3645, 4
        %v3648 = vshll.u32 %v3330, 16
        %v3650 = vrot.slane %v3648, 5
        %v3651 = vsel %vm1441, %v3646, %v3650
        %v3653 = vshrl.u32 %v3331, 16
        %v3655 = vrot.slane %v3653, 4
        %v3656 = vshll.u32 %v3331, 16
        %v3658 = vrot.slane %v3656, 5
        %v3659 = vor.u32 %v3655, %v3658
        %v3660 = vrot.slane %v3659, 4
        %v3662 = vshll.u32 %v3332, 16
        %v3664 = vrot.slane %v3662, 5
        %v3665 = vsel %vm1441, %v3660, %v3664
        %v3666 = vshrl.u32 %v3332, 16
        %v3668 = vrot.slane %v3666, 4
        %v3669 = vor.u32 %v3668, %v3664
        %v3670 = vrot.slane %v3669, 4
        %v3672 = vshll.u32 %v3333, 16
        %v3674 = vrot.slane %v3672, 5
        %v3675 = vsel %vm1441, %v3670, %v3674
        %v3677 = vshrl.u32 %v3334, 16
        %v3679 = vrot.slane %v3677, 4
        %v3680 = vshll.u32 %v3334, 16
        %v3682 = vrot.slane %v3680, 5
        %v3683 = vor.u32 %v3679, %v3682
        %v3684 = vrot.slane %v3683, 4
        %v3686 = vshll.u32 %v3335, 16
        %v3688 = vrot.slane %v3686, 5
        %v3689 = vsel %vm1441, %v3684, %v3688
        %v3690 = vshrl.u32 %v3335, 16
        %v3692 = vrot.slane %v3690, 4
        %v3693 = vor.u32 %v3692, %v3688
        %v3694 = vrot.slane %v3693, 4
        %v3696 = vshll.u32 %v3336, 16
        %v3698 = vrot.slane %v3696, 5
        %v3699 = vsel %vm1441, %v3694, %v3698
        %v3701 = vshrl.u32 %v3337, 16
        %v3703 = vrot.slane %v3701, 4
        %v3704 = vshll.u32 %v3337, 16
        %v3706 = vrot.slane %v3704, 5
        %v3707 = vor.u32 %v3703, %v3706
        %v3708 = vrot.slane %v3707, 4
        %v3710 = vshll.u32 %v3338, 16
        %v3712 = vrot.slane %v3710, 5
        %v3713 = vsel %vm1441, %v3708, %v3712
        %v3714 = vshrl.u32 %v3338, 16
        %v3716 = vrot.slane %v3714, 4
        %v3717 = vor.u32 %v3716, %v3712
        %v3718 = vrot.slane %v3717, 4
        %v3720 = vshll.u32 %v3339, 16
        %v3722 = vrot.slane %v3720, 5
        %v3723 = vsel %vm1441, %v3718, %v3722
        %s3724 = scalar_lea.vmem [#allocation8], 256
        %v3725 = vld [vmem:[%s3724] sm:$0xf]
        %v3726 = vld [vmem:[%s3724 + $0x4] sm:$0xf]
        %v3727 = vld [vmem:[%s3724 + $0x8] sm:$0xf]
        %v3728 = vld [vmem:[%s3724 + $0xc] sm:$0xf]
        %v3729 = vld [vmem:[%s3724 + $0x10] sm:$0xf]
        %v3730 = vld [vmem:[%s3724 + $0x14] sm:$0xf]
        %v3731 = vld [vmem:[%s3724 + $0x18] sm:$0xf]
        %v3732 = vld [vmem:[%s3724 + $0x1c] sm:$0xf]
        %v3733 = vld [vmem:[%s3724 + $0x20] sm:$0xf]
        %v3734 = vld [vmem:[%s3724 + $0x24] sm:$0xf]
        %v3735 = vld [vmem:[%s3724 + $0x28] sm:$0xf]
        %v3736 = vld [vmem:[%s3724 + $0x2c] sm:$0xf]
        %v3737 = vld [vmem:[%s3724 + $0x30] sm:$0xf]
        %v3738 = vld [vmem:[%s3724 + $0x34] sm:$0xf]
        %v3739 = vld [vmem:[%s3724 + $0x38] sm:$0xf]
        %v3740 = vld [vmem:[%s3724 + $0x3c] sm:$0xf]
        %v3741 = vunpack.c.l.b16 %v3353
        %v3742 = vunpack.c.l.b16 %v3363
        %v3743 = vunpack.c.l.b16 %v3377
        %v3744 = vunpack.c.l.b16 %v3387
        %v3745 = vunpack.c.l.b16 %v3401
        %v3746 = vunpack.c.l.b16 %v3411
        %v3747 = vunpack.c.l.b16 %v3425
        %v3748 = vunpack.c.l.b16 %v3435
        %v3749 = vunpack.c.l.b16 %v3449
        %v3750 = vunpack.c.l.b16 %v3459
        %v3751 = vunpack.c.l.b16 %v3473
        %v3752 = vunpack.c.l.b16 %v3483
        %v3753 = vunpack.c.l.b16 %v3497
        %v3754 = vunpack.c.l.b16 %v3507
        %v3755 = vunpack.c.l.b16 %v3521
        %v3756 = vunpack.c.l.b16 %v3531
        %v3757 = vunpack.c.l.b16 %v3545
        %v3758 = vunpack.c.l.b16 %v3555
        %v3759 = vunpack.c.l.b16 %v3569
        %v3760 = vunpack.c.l.b16 %v3579
        %v3761 = vunpack.c.l.b16 %v3593
        %v3762 = vunpack.c.l.b16 %v3603
        %v3763 = vunpack.c.l.b16 %v3617
        %v3764 = vunpack.c.l.b16 %v3627
        %v3765 = vunpack.c.l.b16 %v3641
        %v3766 = vunpack.c.l.b16 %v3651
        %v3767 = vunpack.c.l.b16 %v3665
        %v3768 = vunpack.c.l.b16 %v3675
        %v3769 = vunpack.c.l.b16 %v3689
        %v3770 = vunpack.c.l.b16 %v3699
        %v3771 = vunpack.c.l.b16 %v3713
        %v3772 = vunpack.c.l.b16 %v3723
        %v3773 = vpack.c.b16 %v3742, %v3741
        %v3774 = vpack.c.b16 %v3744, %v3743
        %v3775 = vpack.c.b16 %v3746, %v3745
        %v3776 = vpack.c.b16 %v3748, %v3747
        %v3777 = vpack.c.b16 %v3750, %v3749
        %v3778 = vpack.c.b16 %v3752, %v3751
        %v3779 = vpack.c.b16 %v3754, %v3753
        %v3780 = vpack.c.b16 %v3756, %v3755
        %v3781 = vpack.c.b16 %v3758, %v3757
        %v3782 = vpack.c.b16 %v3760, %v3759
        %v3783 = vpack.c.b16 %v3762, %v3761
        %v3784 = vpack.c.b16 %v3764, %v3763
        %v3785 = vpack.c.b16 %v3766, %v3765
        %v3786 = vpack.c.b16 %v3768, %v3767
        %v3787 = vpack.c.b16 %v3770, %v3769
        %v3788 = vpack.c.b16 %v3772, %v3771
        %v3821 = vunpack.c.l.b16 %v3725
        %v3822 = vunpack.c.l.b16 %v3726
        %v3823 = vunpack.c.l.b16 %v3727
        %v3824 = vunpack.c.l.b16 %v3728
        %v3825 = vunpack.c.l.b16 %v3729
        %v3826 = vunpack.c.l.b16 %v3730
        %v3827 = vunpack.c.l.b16 %v3731
        %v3828 = vunpack.c.l.b16 %v3732
        %v3829 = vunpack.c.l.b16 %v3733
        %v3830 = vunpack.c.l.b16 %v3734
        %v3831 = vunpack.c.l.b16 %v3735
        %v3832 = vunpack.c.l.b16 %v3736
        %v3833 = vunpack.c.l.b16 %v3737
        %v3834 = vunpack.c.l.b16 %v3738
        %v3835 = vunpack.c.l.b16 %v3739
        %v3836 = vunpack.c.l.b16 %v3740
        %v3837 = vpack.c.b16 %v3822, %v3821
        %v3838 = vpack.c.b16 %v3824, %v3823
        %v3839 = vpack.c.b16 %v3826, %v3825
        %v3840 = vpack.c.b16 %v3828, %v3827
        %v3841 = vpack.c.b16 %v3830, %v3829
        %v3842 = vpack.c.b16 %v3832, %v3831
        %v3843 = vpack.c.b16 %v3834, %v3833
        %v3844 = vpack.c.b16 %v3836, %v3835
        %3853 = vmatprep.subr.bf16.mxu0 0
        %3854 = vmatpush1.bf16.msra.mxu0 %v3837
        %3855 = vmatprep.subr.bf16.mxu0 0
        %3856 = vmatpush1.bf16.msra.mxu0 %v3838
        %3857 = vmatprep.subr.bf16.mxu0 0
        %3858 = vmatpush1.bf16.msra.mxu0 %v3839
        %3859 = vmatprep.subr.bf16.mxu0 0
        %3860 = vmatpush1.bf16.msra.mxu0 %v3840
        %3861 = vmatprep.subr.bf16.mxu0 0
        %3862 = vmatpush1.bf16.msra.mxu0 %v3841
        %3863 = vmatprep.subr.bf16.mxu0 0
        %3864 = vmatpush1.bf16.msra.mxu0 %v3842
        %3865 = vmatprep.subr.bf16.mxu0 0
        %3866 = vmatpush1.bf16.msra.mxu0 %v3843
        %3867 = vmatprep.subr.bf16.mxu0 0
        %3868 = vmatpush1.bf16.msra.mxu0 %v3844
        %3869 = vmatprep.subr.bf16.mxu0 0
        %3870 = vmatpush1.bf16.msra.mxu0 0
        %3871 = vmatprep.subr.bf16.mxu0 0
        %3872 = vmatpush1.bf16.msra.mxu0 0
        %3873 = vmatprep.subr.bf16.mxu0 0
        %3874 = vmatpush1.bf16.msra.mxu0 0
        %3875 = vmatprep.subr.bf16.mxu0 0
        %3876 = vmatpush1.bf16.msra.mxu0 0
        %3877 = vmatprep.subr.bf16.mxu0 0
        %3878 = vmatpush1.bf16.msra.mxu0 0
        %3879 = vmatprep.subr.bf16.mxu0 0
        %3880 = vmatpush1.bf16.msra.mxu0 0
        %3881 = vmatprep.subr.bf16.mxu0 0
        %3882 = vmatpush1.bf16.msra.mxu0 0
        %3883 = vmatprep.subr.bf16.mxu0 0
        %3884 = vmatpush1.bf16.msra.mxu0 0
        %3885 = vmatprep.mubr.bf16.mxu0 0
        %3886 = vmatmul.mubr.bf16.gmra.mrb[0].mxu0 %v3773
        %v3887 = vpop.f32.mrb[0].mxu0
        %v3888 = vadd.f32 0.0, %v3887
        %v3889 = vpop.f32.mrb[0].mxu0
        %v3890 = vpop.f32.mrb[0].mxu0
        %v3891 = vadd.f32 0.0, %v3890
        %v3892 = vpop.f32.mrb[0].mxu0
        %3893 = vmatprep.mubr.bf16.mxu0 0
        %3894 = vmatmul.mubr.bf16.gmra.mrb[0].mxu0 %v3774
        %v3895 = vpop.f32.mrb[0].mxu0
        %v3896 = vadd.f32 0.0, %v3895
        %v3897 = vpop.f32.mrb[0].mxu0
        %v3898 = vpop.f32.mrb[0].mxu0
        %v3899 = vadd.f32 0.0, %v3898
        %v3900 = vpop.f32.mrb[0].mxu0
        %3901 = vmatprep.mubr.bf16.mxu0 0
        %3902 = vmatmul.mubr.bf16.gmra.mrb[0].mxu0 %v3775
        %v3903 = vpop.f32.mrb[0].mxu0
        %v3904 = vadd.f32 0.0, %v3903
        %v3905 = vpop.f32.mrb[0].mxu0
        %v3906 = vpop.f32.mrb[0].mxu0
        %v3907 = vadd.f32 0.0, %v3906
        %v3908 = vpop.f32.mrb[0].mxu0
        %3909 = vmatprep.mubr.bf16.mxu0 0
        %3910 = vmatmul.mubr.bf16.gmra.mrb[0].mxu0 %v3776
        %v3911 = vpop.f32.mrb[0].mxu0
        %v3912 = vadd.f32 0.0, %v3911
        %v3913 = vpop.f32.mrb[0].mxu0
        %v3914 = vpop.f32.mrb[0].mxu0
        %v3915 = vadd.f32 0.0, %v3914
        %v3916 = vpop.f32.mrb[0].mxu0
        %3917 = vmatprep.mubr.bf16.mxu0 0
        %3918 = vmatmul.mubr.bf16.gmra.mrb[0].mxu0 %v3777
        %v3919 = vpop.f32.mrb[0].mxu0
        %v3920 = vadd.f32 0.0, %v3919
        %v3921 = vpop.f32.mrb[0].mxu0
        %v3922 = vpop.f32.mrb[0].mxu0
        %v3923 = vadd.f32 0.0, %v3922
        %v3924 = vpop.f32.mrb[0].mxu0
        %3925 = vmatprep.mubr.bf16.mxu0 0
        %3926 = vmatmul.mubr.bf16.gmra.mrb[0].mxu0 %v3778
        %v3927 = vpop.f32.mrb[0].mxu0
        %v3928 = vadd.f32 0.0, %v3927
        %v3929 = vpop.f32.mrb[0].mxu0
        %v3930 = vpop.f32.mrb[0].mxu0
        %v3931 = vadd.f32 0.0, %v3930
        %v3932 = vpop.f32.mrb[0].mxu0
        %3933 = vmatprep.mubr.bf16.mxu0 0
        %3934 = vmatmul.mubr.bf16.gmra.mrb[0].mxu0 %v3779
        %v3935 = vpop.f32.mrb[0].mxu0
        %v3936 = vadd.f32 0.0, %v3935
        %v3937 = vpop.f32.mrb[0].mxu0
        %v3938 = vpop.f32.mrb[0].mxu0
        %v3939 = vadd.f32 0.0, %v3938
        %v3940 = vpop.f32.mrb[0].mxu0
        %3941 = vmatprep.mubr.bf16.mxu0 0
        %3942 = vmatmul.mubr.bf16.gmra.mrb[0].mxu0 %v3780
        %v3943 = vpop.f32.mrb[0].mxu0
        %v3944 = vadd.f32 0.0, %v3943
        %v3945 = vpop.f32.mrb[0].mxu0
        %v3946 = vpop.f32.mrb[0].mxu0
        %v3947 = vadd.f32 0.0, %v3946
        %v3948 = vpop.f32.mrb[0].mxu0
        %3949 = vmatprep.mubr.bf16.mxu0 0
        %3950 = vmatmul.mubr.bf16.gmra.mrb[0].mxu0 %v3781
        %v3951 = vpop.f32.mrb[0].mxu0
        %v3952 = vadd.f32 0.0, %v3951
        %v3953 = vpop.f32.mrb[0].mxu0
        %v3954 = vpop.f32.mrb[0].mxu0
        %v3955 = vadd.f32 0.0, %v3954
        %v3956 = vpop.f32.mrb[0].mxu0
        %3957 = vmatprep.mubr.bf16.mxu0 0
        %3958 = vmatmul.mubr.bf16.gmra.mrb[0].mxu0 %v3782
        %v3959 = vpop.f32.mrb[0].mxu0
        %v3960 = vadd.f32 0.0, %v3959
        %v3961 = vpop.f32.mrb[0].mxu0
        %v3962 = vpop.f32.mrb[0].mxu0
        %v3963 = vadd.f32 0.0, %v3962
        %v3964 = vpop.f32.mrb[0].mxu0
        %3965 = vmatprep.mubr.bf16.mxu0 0
        %3966 = vmatmul.mubr.bf16.gmra.mrb[0].mxu0 %v3783
        %v3967 = vpop.f32.mrb[0].mxu0
        %v3968 = vadd.f32 0.0, %v3967
        %v3969 = vpop.f32.mrb[0].mxu0
        %v3970 = vpop.f32.mrb[0].mxu0
        %v3971 = vadd.f32 0.0, %v3970
        %v3972 = vpop.f32.mrb[0].mxu0
        %3973 = vmatprep.mubr.bf16.mxu0 0
        %3974 = vmatmul.mubr.bf16.gmra.mrb[0].mxu0 %v3784
        %v3975 = vpop.f32.mrb[0].mxu0
        %v3976 = vadd.f32 0.0, %v3975
        %v3977 = vpop.f32.mrb[0].mxu0
        %v3978 = vpop.f32.mrb[0].mxu0
        %v3979 = vadd.f32 0.0, %v3978
        %v3980 = vpop.f32.mrb[0].mxu0
        %3981 = vmatprep.mubr.bf16.mxu0 0
        %3982 = vmatmul.mubr.bf16.gmra.mrb[0].mxu0 %v3785
        %v3983 = vpop.f32.mrb[0].mxu0
        %v3984 = vadd.f32 0.0, %v3983
        %v3985 = vpop.f32.mrb[0].mxu0
        %v3986 = vpop.f32.mrb[0].mxu0
        %v3987 = vadd.f32 0.0, %v3986
        %v3988 = vpop.f32.mrb[0].mxu0
        %3989 = vmatprep.mubr.bf16.mxu0 0
        %3990 = vmatmul.mubr.bf16.gmra.mrb[0].mxu0 %v3786
        %v3991 = vpop.f32.mrb[0].mxu0
        %v3992 = vadd.f32 0.0, %v3991
        %v3993 = vpop.f32.mrb[0].mxu0
        %v3994 = vpop.f32.mrb[0].mxu0
        %v3995 = vadd.f32 0.0, %v3994
        %v3996 = vpop.f32.mrb[0].mxu0
        %3997 = vmatprep.mubr.bf16.mxu0 0
        %3998 = vmatmul.mubr.bf16.gmra.mrb[0].mxu0 %v3787
        %v3999 = vpop.f32.mrb[0].mxu0
        %v4000 = vadd.f32 0.0, %v3999
        %v4001 = vpop.f32.mrb[0].mxu0
        %v4002 = vpop.f32.mrb[0].mxu0
        %v4003 = vadd.f32 0.0, %v4002
        %v4004 = vpop.f32.mrb[0].mxu0
        %4005 = vmatprep.mubr.bf16.mxu0 0
        %4006 = vmatmul.mubr.bf16.gmra.mrb[0].mxu0 %v3788
        %v4007 = vpop.f32.mrb[0].mxu0
        %v4008 = vadd.f32 0.0, %v4007
        %v4009 = vpop.f32.mrb[0].mxu0
        %v4010 = vpop.f32.mrb[0].mxu0
        %v4011 = vadd.f32 0.0, %v4010
        %v4012 = vpop.f32.mrb[0].mxu0
        %4013 = vdwg.mxu0
        %v4014 = vadd.f32 %v3260, %v3888
        %v4015 = vadd.f32 %v3261, %v3891
        %v4016 = vadd.f32 %v3262, %v3896
        %v4017 = vadd.f32 %v3263, %v3899
        %v4018 = vadd.f32 %v3264, %v3904
        %v4019 = vadd.f32 %v3265, %v3907
        %v4020 = vadd.f32 %v3266, %v3912
        %v4021 = vadd.f32 %v3267, %v3915
        %v4022 = vadd.f32 %v3268, %v3920
        %v4023 = vadd.f32 %v3269, %v3923
        %v4024 = vadd.f32 %v3270, %v3928
        %v4025 = vadd.f32 %v3271, %v3931
        %v4026 = vadd.f32 %v3272, %v3936
        %v4027 = vadd.f32 %v3273, %v3939
        %v4028 = vadd.f32 %v3274, %v3944
        %v4029 = vadd.f32 %v3275, %v3947
        %v4030 = vadd.f32 %v3276, %v3952
        %v4031 = vadd.f32 %v3277, %v3955
        %v4032 = vadd.f32 %v3278, %v3960
        %v4033 = vadd.f32 %v3279, %v3963
        %v4034 = vadd.f32 %v3280, %v3968
        %v4035 = vadd.f32 %v3281, %v3971
        %v4036 = vadd.f32 %v3282, %v3976
        %v4037 = vadd.f32 %v3283, %v3979
        %v4038 = vadd.f32 %v3284, %v3984
        %v4039 = vadd.f32 %v3285, %v3987
        %v4040 = vadd.f32 %v3286, %v3992
        %v4041 = vadd.f32 %v3287, %v3995
        %v4042 = vadd.f32 %v3288, %v4000
        %v4043 = vadd.f32 %v3289, %v4003
        %v4044 = vadd.f32 %v3290, %v4008
        %v4045 = vadd.f32 %v3291, %v4011
        %v4046 = vld [vmem:[%s757] sm:$0xe]
        %v4047 = vld [vmem:[%s757 + $0xc] sm:$0xe]
        %v4048 = vld [vmem:[%s757 + $0x18] sm:$0xe]
        %v4049 = vld [vmem:[%s757 + $0x24] sm:$0xe]
        %v4050 = vld [vmem:[%s757 + $0x30] sm:$0xe]
        %v4051 = vld [vmem:[%s757 + $0x3c] sm:$0xe]
        %v4052 = vld [vmem:[%s757 + $0x48] sm:$0xe]
        %v4053 = vld [vmem:[%s757 + $0x54] sm:$0xe]
        %v4054 = vld [vmem:[%s757 + $0x60] sm:$0xe]
        %v4055 = vld [vmem:[%s757 + $0x6c] sm:$0xe]
        %v4056 = vld [vmem:[%s757 + $0x78] sm:$0xe]
        %v4057 = vld [vmem:[%s757 + $0x84] sm:$0xe]
        %v4058 = vld [vmem:[%s757 + $0x90] sm:$0xe]
        %v4059 = vld [vmem:[%s757 + $0x9c] sm:$0xe]
        %v4060 = vld [vmem:[%s757 + $0xa8] sm:$0xe]
        %v4061 = vld [vmem:[%s757 + $0xb4] sm:$0xe]
        %v4110 = vrot.slane %v4046, 5
        %v4111 = vrot.slane %v4110, 4
        %v4112 = vrot.slane %v3293, 5
        %v4113 = vsel %vm2471, %v4111, %v4112
        %v4114 = vrot.slane %v4112, 4
        %v4115 = vrot.slane %v3294, 5
        %v4116 = vsel %vm2471, %v4114, %v4115
        %v4117 = vrot.slane %v4047, 5
        %v4118 = vrot.slane %v4117, 4
        %v4119 = vrot.slane %v3296, 5
        %v4120 = vsel %vm2471, %v4118, %v4119
        %v4121 = vrot.slane %v4119, 4
        %v4122 = vrot.slane %v3297, 5
        %v4123 = vsel %vm2471, %v4121, %v4122
        %v4124 = vrot.slane %v4048, 5
        %v4125 = vrot.slane %v4124, 4
        %v4126 = vrot.slane %v3299, 5
        %v4127 = vsel %vm2471, %v4125, %v4126
        %v4128 = vrot.slane %v4126, 4
        %v4129 = vrot.slane %v3300, 5
        %v4130 = vsel %vm2471, %v4128, %v4129
        %v4131 = vrot.slane %v4049, 5
        %v4132 = vrot.slane %v4131, 4
        %v4133 = vrot.slane %v3302, 5
        %v4134 = vsel %vm2471, %v4132, %v4133
        %v4135 = vrot.slane %v4133, 4
        %v4136 = vrot.slane %v3303, 5
        %v4137 = vsel %vm2471, %v4135, %v4136
        %v4138 = vrot.slane %v4050, 5
        %v4139 = vrot.slane %v4138, 4
        %v4140 = vrot.slane %v3305, 5
        %v4141 = vsel %vm2471, %v4139, %v4140
        %v4142 = vrot.slane %v4140, 4
        %v4143 = vrot.slane %v3306, 5
        %v4144 = vsel %vm2471, %v4142, %v4143
        %v4145 = vrot.slane %v4051, 5
        %v4146 = vrot.slane %v4145, 4
        %v4147 = vrot.slane %v3308, 5
        %v4148 = vsel %vm2471, %v4146, %v4147
        %v4149 = vrot.slane %v4147, 4
        %v4150 = vrot.slane %v3309, 5
        %v4151 = vsel %vm2471, %v4149, %v4150
        %v4152 = vrot.slane %v4052, 5
        %v4153 = vrot.slane %v4152, 4
        %v4154 = vrot.slane %v3311, 5
        %v4155 = vsel %vm2471, %v4153, %v4154
        %v4156 = vrot.slane %v4154, 4
        %v4157 = vrot.slane %v3312, 5
        %v4158 = vsel %vm2471, %v4156, %v4157
        %v4159 = vrot.slane %v4053, 5
        %v4160 = vrot.slane %v4159, 4
        %v4161 = vrot.slane %v3314, 5
        %v4162 = vsel %vm2471, %v4160, %v4161
        %v4163 = vrot.slane %v4161, 4
        %v4164 = vrot.slane %v3315, 5
        %v4165 = vsel %vm2471, %v4163, %v4164
        %v4166 = vrot.slane %v4054, 5
        %v4167 = vrot.slane %v4166, 4
        %v4168 = vrot.slane %v3317, 5
        %v4169 = vsel %vm2471, %v4167, %v4168
        %v4170 = vrot.slane %v4168, 4
        %v4171 = vrot.slane %v3318, 5
        %v4172 = vsel %vm2471, %v4170, %v4171
        %v4173 = vrot.slane %v4055, 5
        %v4174 = vrot.slane %v4173, 4
        %v4175 = vrot.slane %v3320, 5
        %v4176 = vsel %vm2471, %v4174, %v4175
        %v4177 = vrot.slane %v4175, 4
        %v4178 = vrot.slane %v3321, 5
        %v4179 = vsel %vm2471, %v4177, %v4178
        %v4180 = vrot.slane %v4056, 5
        %v4181 = vrot.slane %v4180, 4
        %v4182 = vrot.slane %v3323, 5
        %v4183 = vsel %vm2471, %v4181, %v4182
        %v4184 = vrot.slane %v4182, 4
        %v4185 = vrot.slane %v3324, 5
        %v4186 = vsel %vm2471, %v4184, %v4185
        %v4187 = vrot.slane %v4057, 5
        %v4188 = vrot.slane %v4187, 4
        %v4189 = vrot.slane %v3326, 5
        %v4190 = vsel %vm2471, %v4188, %v4189
        %v4191 = vrot.slane %v4189, 4
        %v4192 = vrot.slane %v3327, 5
        %v4193 = vsel %vm2471, %v4191, %v4192
        %v4194 = vrot.slane %v4058, 5
        %v4195 = vrot.slane %v4194, 4
        %v4196 = vrot.slane %v3329, 5
        %v4197 = vsel %vm2471, %v4195, %v4196
        %v4198 = vrot.slane %v4196, 4
        %v4199 = vrot.slane %v3330, 5
        %v4200 = vsel %vm2471, %v4198, %v4199
        %v4201 = vrot.slane %v4059, 5
        %v4202 = vrot.slane %v4201, 4
        %v4203 = vrot.slane %v3332, 5
        %v4204 = vsel %vm2471, %v4202, %v4203
        %v4205 = vrot.slane %v4203, 4
        %v4206 = vrot.slane %v3333, 5
        %v4207 = vsel %vm2471, %v4205, %v4206
        %v4208 = vrot.slane %v4060, 5
        %v4209 = vrot.slane %v4208, 4
        %v4210 = vrot.slane %v3335, 5
        %v4211 = vsel %vm2471, %v4209, %v4210
        %v4212 = vrot.slane %v4210, 4
        %v4213 = vrot.slane %v3336, 5
        %v4214 = vsel %vm2471, %v4212, %v4213
        %v4215 = vrot.slane %v4061, 5
        %v4216 = vrot.slane %v4215, 4
        %v4217 = vrot.slane %v3338, 5
        %v4218 = vsel %vm2471, %v4216, %v4217
        %v4219 = vrot.slane %v4217, 4
        %v4220 = vrot.slane %v3339, 5
        %v4221 = vsel %vm2471, %v4219, %v4220
        %s4222 = scalar_lea.vmem [#allocation8], 320
        %v4223 = vld [vmem:[%s4222] sm:$0xf]
        %v4224 = vld [vmem:[%s4222 + $0x4] sm:$0xf]
        %v4225 = vld [vmem:[%s4222 + $0x8] sm:$0xf]
        %v4226 = vld [vmem:[%s4222 + $0xc] sm:$0xf]
        %v4227 = vld [vmem:[%s4222 + $0x10] sm:$0xf]
        %v4228 = vld [vmem:[%s4222 + $0x14] sm:$0xf]
        %v4229 = vld [vmem:[%s4222 + $0x18] sm:$0xf]
        %v4230 = vld [vmem:[%s4222 + $0x1c] sm:$0xf]
        %v4231 = vld [vmem:[%s4222 + $0x20] sm:$0xf]
        %v4232 = vld [vmem:[%s4222 + $0x24] sm:$0xf]
        %v4233 = vld [vmem:[%s4222 + $0x28] sm:$0xf]
        %v4234 = vld [vmem:[%s4222 + $0x2c] sm:$0xf]
        %v4235 = vld [vmem:[%s4222 + $0x30] sm:$0xf]
        %v4236 = vld [vmem:[%s4222 + $0x34] sm:$0xf]
        %v4237 = vld [vmem:[%s4222 + $0x38] sm:$0xf]
        %v4238 = vld [vmem:[%s4222 + $0x3c] sm:$0xf]
        %v4239 = vunpack.c.l.b16 %v4113
        %v4240 = vunpack.c.l.b16 %v4116
        %v4241 = vunpack.c.l.b16 %v4120
        %v4242 = vunpack.c.l.b16 %v4123
        %v4243 = vunpack.c.l.b16 %v4127
        %v4244 = vunpack.c.l.b16 %v4130
        %v4245 = vunpack.c.l.b16 %v4134
        %v4246 = vunpack.c.l.b16 %v4137
        %v4247 = vunpack.c.l.b16 %v4141
        %v4248 = vunpack.c.l.b16 %v4144
        %v4249 = vunpack.c.l.b16 %v4148
        %v4250 = vunpack.c.l.b16 %v4151
        %v4251 = vunpack.c.l.b16 %v4155
        %v4252 = vunpack.c.l.b16 %v4158
        %v4253 = vunpack.c.l.b16 %v4162
        %v4254 = vunpack.c.l.b16 %v4165
        %v4255 = vunpack.c.l.b16 %v4169
        %v4256 = vunpack.c.l.b16 %v4172
        %v4257 = vunpack.c.l.b16 %v4176
        %v4258 = vunpack.c.l.b16 %v4179
        %v4259 = vunpack.c.l.b16 %v4183
        %v4260 = vunpack.c.l.b16 %v4186
        %v4261 = vunpack.c.l.b16 %v4190
        %v4262 = vunpack.c.l.b16 %v4193
        %v4263 = vunpack.c.l.b16 %v4197
        %v4264 = vunpack.c.l.b16 %v4200
        %v4265 = vunpack.c.l.b16 %v4204
        %v4266 = vunpack.c.l.b16 %v4207
        %v4267 = vunpack.c.l.b16 %v4211
        %v4268 = vunpack.c.l.b16 %v4214
        %v4269 = vunpack.c.l.b16 %v4218
        %v4270 = vunpack.c.l.b16 %v4221
        %v4271 = vpack.c.b16 %v4240, %v4239
        %v4272 = vpack.c.b16 %v4242, %v4241
        %v4273 = vpack.c.b16 %v4244, %v4243
        %v4274 = vpack.c.b16 %v4246, %v4245
        %v4275 = vpack.c.b16 %v4248, %v4247
        %v4276 = vpack.c.b16 %v4250, %v4249
        %v4277 = vpack.c.b16 %v4252, %v4251
        %v4278 = vpack.c.b16 %v4254, %v4253
        %v4279 = vpack.c.b16 %v4256, %v4255
        %v4280 = vpack.c.b16 %v4258, %v4257
        %v4281 = vpack.c.b16 %v4260, %v4259
        %v4282 = vpack.c.b16 %v4262, %v4261
        %v4283 = vpack.c.b16 %v4264, %v4263
        %v4284 = vpack.c.b16 %v4266, %v4265
        %v4285 = vpack.c.b16 %v4268, %v4267
        %v4286 = vpack.c.b16 %v4270, %v4269
        %v4319 = vunpack.c.l.b16 %v4223
        %v4320 = vunpack.c.l.b16 %v4224
        %v4321 = vunpack.c.l.b16 %v4225
        %v4322 = vunpack.c.l.b16 %v4226
        %v4323 = vunpack.c.l.b16 %v4227
        %v4324 = vunpack.c.l.b16 %v4228
        %v4325 = vunpack.c.l.b16 %v4229
        %v4326 = vunpack.c.l.b16 %v4230
        %v4327 = vunpack.c.l.b16 %v4231
        %v4328 = vunpack.c.l.b16 %v4232
        %v4329 = vunpack.c.l.b16 %v4233
        %v4330 = vunpack.c.l.b16 %v4234
        %v4331 = vunpack.c.l.b16 %v4235
        %v4332 = vunpack.c.l.b16 %v4236
        %v4333 = vunpack.c.l.b16 %v4237
        %v4334 = vunpack.c.l.b16 %v4238
        %v4335 = vpack.c.b16 %v4320, %v4319
        %v4336 = vpack.c.b16 %v4322, %v4321
        %v4337 = vpack.c.b16 %v4324, %v4323
        %v4338 = vpack.c.b16 %v4326, %v4325
        %v4339 = vpack.c.b16 %v4328, %v4327
        %v4340 = vpack.c.b16 %v4330, %v4329
        %v4341 = vpack.c.b16 %v4332, %v4331
        %v4342 = vpack.c.b16 %v4334, %v4333
        %4351 = vmatprep.subr.bf16.mxu0 0
        %4352 = vmatpush1.bf16.msra.mxu0 %v4335
        %4353 = vmatprep.subr.bf16.mxu0 0
        %4354 = vmatpush1.bf16.msra.mxu0 %v4336
        %4355 = vmatprep.subr.bf16.mxu0 0
        %4356 = vmatpush1.bf16.msra.mxu0 %v4337
        %4357 = vmatprep.subr.bf16.mxu0 0
        %4358 = vmatpush1.bf16.msra.mxu0 %v4338
        %4359 = vmatprep.subr.bf16.mxu0 0
        %4360 = vmatpush1.bf16.msra.mxu0 %v4339
        %4361 = vmatprep.subr.bf16.mxu0 0
        %4362 = vmatpush1.bf16.msra.mxu0 %v4340
        %4363 = vmatprep.subr.bf16.mxu0 0
        %4364 = vmatpush1.bf16.msra.mxu0 %v4341
        %4365 = vmatprep.subr.bf16.mxu0 0
        %4366 = vmatpush1.bf16.msra.mxu0 %v4342
        %4367 = vmatprep.subr.bf16.mxu0 0
        %4368 = vmatpush1.bf16.msra.mxu0 0
        %4369 = vmatprep.subr.bf16.mxu0 0
        %4370 = vmatpush1.bf16.msra.mxu0 0
        %4371 = vmatprep.subr.bf16.mxu0 0
        %4372 = vmatpush1.bf16.msra.mxu0 0
        %4373 = vmatprep.subr.bf16.mxu0 0
        %4374 = vmatpush1.bf16.msra.mxu0 0
        %4375 = vmatprep.subr.bf16.mxu0 0
        %4376 = vmatpush1.bf16.msra.mxu0 0
        %4377 = vmatprep.subr.bf16.mxu0 0
        %4378 = vmatpush1.bf16.msra.mxu0 0
        %4379 = vmatprep.subr.bf16.mxu0 0
        %4380 = vmatpush1.bf16.msra.mxu0 0
        %4381 = vmatprep.subr.bf16.mxu0 0
        %4382 = vmatpush1.bf16.msra.mxu0 0
        %4383 = vmatprep.mubr.bf16.mxu0 0
        %4384 = vmatmul.mubr.bf16.gmra.mrb[0].mxu0 %v4271
        %v4385 = vpop.f32.mrb[0].mxu0
        %v4386 = vadd.f32 0.0, %v4385
        %v4387 = vpop.f32.mrb[0].mxu0
        %v4388 = vpop.f32.mrb[0].mxu0
        %v4389 = vadd.f32 0.0, %v4388
        %v4390 = vpop.f32.mrb[0].mxu0
        %4391 = vmatprep.mubr.bf16.mxu0 0
        %4392 = vmatmul.mubr.bf16.gmra.mrb[0].mxu0 %v4272
        %v4393 = vpop.f32.mrb[0].mxu0
        %v4394 = vadd.f32 0.0, %v4393
        %v4395 = vpop.f32.mrb[0].mxu0
        %v4396 = vpop.f32.mrb[0].mxu0
        %v4397 = vadd.f32 0.0, %v4396
        %v4398 = vpop.f32.mrb[0].mxu0
        %4399 = vmatprep.mubr.bf16.mxu0 0
        %4400 = vmatmul.mubr.bf16.gmra.mrb[0].mxu0 %v4273
        %v4401 = vpop.f32.mrb[0].mxu0
        %v4402 = vadd.f32 0.0, %v4401
        %v4403 = vpop.f32.mrb[0].mxu0
        %v4404 = vpop.f32.mrb[0].mxu0
        %v4405 = vadd.f32 0.0, %v4404
        %v4406 = vpop.f32.mrb[0].mxu0
        %4407 = vmatprep.mubr.bf16.mxu0 0
        %4408 = vmatmul.mubr.bf16.gmra.mrb[0].mxu0 %v4274
        %v4409 = vpop.f32.mrb[0].mxu0
        %v4410 = vadd.f32 0.0, %v4409
        %v4411 = vpop.f32.mrb[0].mxu0
        %v4412 = vpop.f32.mrb[0].mxu0
        %v4413 = vadd.f32 0.0, %v4412
        %v4414 = vpop.f32.mrb[0].mxu0
        %4415 = vmatprep.mubr.bf16.mxu0 0
        %4416 = vmatmul.mubr.bf16.gmra.mrb[0].mxu0 %v4275
        %v4417 = vpop.f32.mrb[0].mxu0
        %v4418 = vadd.f32 0.0, %v4417
        %v4419 = vpop.f32.mrb[0].mxu0
        %v4420 = vpop.f32.mrb[0].mxu0
        %v4421 = vadd.f32 0.0, %v4420
        %v4422 = vpop.f32.mrb[0].mxu0
        %4423 = vmatprep.mubr.bf16.mxu0 0
        %4424 = vmatmul.mubr.bf16.gmra.mrb[0].mxu0 %v4276
        %v4425 = vpop.f32.mrb[0].mxu0
        %v4426 = vadd.f32 0.0, %v4425
        %v4427 = vpop.f32.mrb[0].mxu0
        %v4428 = vpop.f32.mrb[0].mxu0
        %v4429 = vadd.f32 0.0, %v4428
        %v4430 = vpop.f32.mrb[0].mxu0
        %4431 = vmatprep.mubr.bf16.mxu0 0
        %4432 = vmatmul.mubr.bf16.gmra.mrb[0].mxu0 %v4277
        %v4433 = vpop.f32.mrb[0].mxu0
        %v4434 = vadd.f32 0.0, %v4433
        %v4435 = vpop.f32.mrb[0].mxu0
        %v4436 = vpop.f32.mrb[0].mxu0
        %v4437 = vadd.f32 0.0, %v4436
        %v4438 = vpop.f32.mrb[0].mxu0
        %4439 = vmatprep.mubr.bf16.mxu0 0
        %4440 = vmatmul.mubr.bf16.gmra.mrb[0].mxu0 %v4278
        %v4441 = vpop.f32.mrb[0].mxu0
        %v4442 = vadd.f32 0.0, %v4441
        %v4443 = vpop.f32.mrb[0].mxu0
        %v4444 = vpop.f32.mrb[0].mxu0
        %v4445 = vadd.f32 0.0, %v4444
        %v4446 = vpop.f32.mrb[0].mxu0
        %4447 = vmatprep.mubr.bf16.mxu0 0
        %4448 = vmatmul.mubr.bf16.gmra.mrb[0].mxu0 %v4279
        %v4449 = vpop.f32.mrb[0].mxu0
        %v4450 = vadd.f32 0.0, %v4449
        %v4451 = vpop.f32.mrb[0].mxu0
        %v4452 = vpop.f32.mrb[0].mxu0
        %v4453 = vadd.f32 0.0, %v4452
        %v4454 = vpop.f32.mrb[0].mxu0
        %4455 = vmatprep.mubr.bf16.mxu0 0
        %4456 = vmatmul.mubr.bf16.gmra.mrb[0].mxu0 %v4280
        %v4457 = vpop.f32.mrb[0].mxu0
        %v4458 = vadd.f32 0.0, %v4457
        %v4459 = vpop.f32.mrb[0].mxu0
        %v4460 = vpop.f32.mrb[0].mxu0
        %v4461 = vadd.f32 0.0, %v4460
        %v4462 = vpop.f32.mrb[0].mxu0
        %4463 = vmatprep.mubr.bf16.mxu0 0
        %4464 = vmatmul.mubr.bf16.gmra.mrb[0].mxu0 %v4281
        %v4465 = vpop.f32.mrb[0].mxu0
        %v4466 = vadd.f32 0.0, %v4465
        %v4467 = vpop.f32.mrb[0].mxu0
        %v4468 = vpop.f32.mrb[0].mxu0
        %v4469 = vadd.f32 0.0, %v4468
        %v4470 = vpop.f32.mrb[0].mxu0
        %4471 = vmatprep.mubr.bf16.mxu0 0
        %4472 = vmatmul.mubr.bf16.gmra.mrb[0].mxu0 %v4282
        %v4473 = vpop.f32.mrb[0].mxu0
        %v4474 = vadd.f32 0.0, %v4473
        %v4475 = vpop.f32.mrb[0].mxu0
        %v4476 = vpop.f32.mrb[0].mxu0
        %v4477 = vadd.f32 0.0, %v4476
        %v4478 = vpop.f32.mrb[0].mxu0
        %4479 = vmatprep.mubr.bf16.mxu0 0
        %4480 = vmatmul.mubr.bf16.gmra.mrb[0].mxu0 %v4283
        %v4481 = vpop.f32.mrb[0].mxu0
        %v4482 = vadd.f32 0.0, %v4481
        %v4483 = vpop.f32.mrb[0].mxu0
        %v4484 = vpop.f32.mrb[0].mxu0
        %v4485 = vadd.f32 0.0, %v4484
        %v4486 = vpop.f32.mrb[0].mxu0
        %4487 = vmatprep.mubr.bf16.mxu0 0
        %4488 = vmatmul.mubr.bf16.gmra.mrb[0].mxu0 %v4284
        %v4489 = vpop.f32.mrb[0].mxu0
        %v4490 = vadd.f32 0.0, %v4489
        %v4491 = vpop.f32.mrb[0].mxu0
        %v4492 = vpop.f32.mrb[0].mxu0
        %v4493 = vadd.f32 0.0, %v4492
        %v4494 = vpop.f32.mrb[0].mxu0
        %4495 = vmatprep.mubr.bf16.mxu0 0
        %4496 = vmatmul.mubr.bf16.gmra.mrb[0].mxu0 %v4285
        %v4497 = vpop.f32.mrb[0].mxu0
        %v4498 = vadd.f32 0.0, %v4497
        %v4499 = vpop.f32.mrb[0].mxu0
        %v4500 = vpop.f32.mrb[0].mxu0
        %v4501 = vadd.f32 0.0, %v4500
        %v4502 = vpop.f32.mrb[0].mxu0
        %4503 = vmatprep.mubr.bf16.mxu0 0
        %4504 = vmatmul.mubr.bf16.gmra.mrb[0].mxu0 %v4286
        %v4505 = vpop.f32.mrb[0].mxu0
        %v4506 = vadd.f32 0.0, %v4505
        %v4507 = vpop.f32.mrb[0].mxu0
        %v4508 = vpop.f32.mrb[0].mxu0
        %v4509 = vadd.f32 0.0, %v4508
        %v4510 = vpop.f32.mrb[0].mxu0
        %4511 = vdwg.mxu0
        %v4512 = vadd.f32 %v4014, %v4386
        %v4513 = vadd.f32 %v4015, %v4389
        %v4514 = vadd.f32 %v4016, %v4394
        %v4515 = vadd.f32 %v4017, %v4397
        %v4516 = vadd.f32 %v4018, %v4402
        %v4517 = vadd.f32 %v4019, %v4405
        %v4518 = vadd.f32 %v4020, %v4410
        %v4519 = vadd.f32 %v4021, %v4413
        %v4520 = vadd.f32 %v4022, %v4418
        %v4521 = vadd.f32 %v4023, %v4421
        %v4522 = vadd.f32 %v4024, %v4426
        %v4523 = vadd.f32 %v4025, %v4429
        %v4524 = vadd.f32 %v4026, %v4434
        %v4525 = vadd.f32 %v4027, %v4437
        %v4526 = vadd.f32 %v4028, %v4442
        %v4527 = vadd.f32 %v4029, %v4445
        %v4528 = vadd.f32 %v4030, %v4450
        %v4529 = vadd.f32 %v4031, %v4453
        %v4530 = vadd.f32 %v4032, %v4458
        %v4531 = vadd.f32 %v4033, %v4461
        %v4532 = vadd.f32 %v4034, %v4466
        %v4533 = vadd.f32 %v4035, %v4469
        %v4534 = vadd.f32 %v4036, %v4474
        %v4535 = vadd.f32 %v4037, %v4477
        %v4536 = vadd.f32 %v4038, %v4482
        %v4537 = vadd.f32 %v4039, %v4485
        %v4538 = vadd.f32 %v4040, %v4490
        %v4539 = vadd.f32 %v4041, %v4493
        %v4540 = vadd.f32 %v4042, %v4498
        %v4541 = vadd.f32 %v4043, %v4501
        %v4542 = vadd.f32 %v4044, %v4506
        %v4543 = vadd.f32 %v4045, %v4509
        %s4544 = scalar_lea.vmem [#allocation2], 24
        %v4545 = vld [vmem:[%s4544] sm:$0xf]
        %v4546 = vld [vmem:[%s4544 + $0x4] sm:$0xf]
        %v4547 = vld [vmem:[%s4544 + $0xc] sm:$0xf]
        %v4548 = vld [vmem:[%s4544 + $0x10] sm:$0xf]
        %v4549 = vld [vmem:[%s4544 + $0x18] sm:$0xf]
        %v4550 = vld [vmem:[%s4544 + $0x1c] sm:$0xf]
        %v4551 = vld [vmem:[%s4544 + $0x24] sm:$0xf]
        %v4552 = vld [vmem:[%s4544 + $0x28] sm:$0xf]
        %v4553 = vld [vmem:[%s4544 + $0x30] sm:$0xf]
        %v4554 = vld [vmem:[%s4544 + $0x34] sm:$0xf]
        %v4555 = vld [vmem:[%s4544 + $0x3c] sm:$0xf]
        %v4556 = vld [vmem:[%s4544 + $0x40] sm:$0xf]
        %v4557 = vld [vmem:[%s4544 + $0x48] sm:$0xf]
        %v4558 = vld [vmem:[%s4544 + $0x4c] sm:$0xf]
        %v4559 = vld [vmem:[%s4544 + $0x54] sm:$0xf]
        %v4560 = vld [vmem:[%s4544 + $0x58] sm:$0xf]
        %v4561 = vld [vmem:[%s4544 + $0x60] sm:$0xf]
        %v4562 = vld [vmem:[%s4544 + $0x64] sm:$0xf]
        %v4563 = vld [vmem:[%s4544 + $0x6c] sm:$0xf]
        %v4564 = vld [vmem:[%s4544 + $0x70] sm:$0xf]
        %v4565 = vld [vmem:[%s4544 + $0x78] sm:$0xf]
        %v4566 = vld [vmem:[%s4544 + $0x7c] sm:$0xf]
        %v4567 = vld [vmem:[%s4544 + $0x84] sm:$0xf]
        %v4568 = vld [vmem:[%s4544 + $0x88] sm:$0xf]
        %v4569 = vld [vmem:[%s4544 + $0x90] sm:$0xf]
        %v4570 = vld [vmem:[%s4544 + $0x94] sm:$0xf]
        %v4571 = vld [vmem:[%s4544 + $0x9c] sm:$0xf]
        %v4572 = vld [vmem:[%s4544 + $0xa0] sm:$0xf]
        %v4573 = vld [vmem:[%s4544 + $0xa8] sm:$0xf]
        %v4574 = vld [vmem:[%s4544 + $0xac] sm:$0xf]
        %v4575 = vld [vmem:[%s4544 + $0xb4] sm:$0xf]
        %v4576 = vld [vmem:[%s4544 + $0xb8] sm:$0xf]
        %s4577 = scalar_lea.vmem [#allocation8], 384
        %v4578 = vld [vmem:[%s4577] sm:$0xf]
        %v4579 = vld [vmem:[%s4577 + $0x4] sm:$0xf]
        %v4580 = vld [vmem:[%s4577 + $0x8] sm:$0xf]
        %v4581 = vld [vmem:[%s4577 + $0xc] sm:$0xf]
        %v4582 = vld [vmem:[%s4577 + $0x10] sm:$0xf]
        %v4583 = vld [vmem:[%s4577 + $0x14] sm:$0xf]
        %v4584 = vld [vmem:[%s4577 + $0x18] sm:$0xf]
        %v4585 = vld [vmem:[%s4577 + $0x1c] sm:$0xf]
        %v4586 = vld [vmem:[%s4577 + $0x20] sm:$0xf]
        %v4587 = vld [vmem:[%s4577 + $0x24] sm:$0xf]
        %v4588 = vld [vmem:[%s4577 + $0x28] sm:$0xf]
        %v4589 = vld [vmem:[%s4577 + $0x2c] sm:$0xf]
        %v4590 = vld [vmem:[%s4577 + $0x30] sm:$0xf]
        %v4591 = vld [vmem:[%s4577 + $0x34] sm:$0xf]
        %v4592 = vld [vmem:[%s4577 + $0x38] sm:$0xf]
        %v4593 = vld [vmem:[%s4577 + $0x3c] sm:$0xf]
        %v4626 = vunpack.c.l.b16 %v4545
        %v4627 = vunpack.c.l.b16 %v4546
        %v4628 = vunpack.c.l.b16 %v4547
        %v4629 = vunpack.c.l.b16 %v4548
        %v4630 = vunpack.c.l.b16 %v4549
        %v4631 = vunpack.c.l.b16 %v4550
        %v4632 = vunpack.c.l.b16 %v4551
        %v4633 = vunpack.c.l.b16 %v4552
        %v4634 = vunpack.c.l.b16 %v4553
        %v4635 = vunpack.c.l.b16 %v4554
        %v4636 = vunpack.c.l.b16 %v4555
        %v4637 = vunpack.c.l.b16 %v4556
        %v4638 = vunpack.c.l.b16 %v4557
        %v4639 = vunpack.c.l.b16 %v4558
        %v4640 = vunpack.c.l.b16 %v4559
        %v4641 = vunpack.c.l.b16 %v4560
        %v4642 = vunpack.c.l.b16 %v4561
        %v4643 = vunpack.c.l.b16 %v4562
        %v4644 = vunpack.c.l.b16 %v4563
        %v4645 = vunpack.c.l.b16 %v4564
        %v4646 = vunpack.c.l.b16 %v4565
        %v4647 = vunpack.c.l.b16 %v4566
        %v4648 = vunpack.c.l.b16 %v4567
        %v4649 = vunpack.c.l.b16 %v4568
        %v4650 = vunpack.c.l.b16 %v4569
        %v4651 = vunpack.c.l.b16 %v4570
        %v4652 = vunpack.c.l.b16 %v4571
        %v4653 = vunpack.c.l.b16 %v4572
        %v4654 = vunpack.c.l.b16 %v4573
        %v4655 = vunpack.c.l.b16 %v4574
        %v4656 = vunpack.c.l.b16 %v4575
        %v4657 = vunpack.c.l.b16 %v4576
        %v4658 = vpack.c.b16 %v4627, %v4626
        %v4659 = vpack.c.b16 %v4629, %v4628
        %v4660 = vpack.c.b16 %v4631, %v4630
        %v4661 = vpack.c.b16 %v4633, %v4632
        %v4662 = vpack.c.b16 %v4635, %v4634
        %v4663 = vpack.c.b16 %v4637, %v4636
        %v4664 = vpack.c.b16 %v4639, %v4638
        %v4665 = vpack.c.b16 %v4641, %v4640
        %v4666 = vpack.c.b16 %v4643, %v4642
        %v4667 = vpack.c.b16 %v4645, %v4644
        %v4668 = vpack.c.b16 %v4647, %v4646
        %v4669 = vpack.c.b16 %v4649, %v4648
        %v4670 = vpack.c.b16 %v4651, %v4650
        %v4671 = vpack.c.b16 %v4653, %v4652
        %v4672 = vpack.c.b16 %v4655, %v4654
        %v4673 = vpack.c.b16 %v4657, %v4656
        %v4706 = vunpack.c.l.b16 %v4578
        %v4707 = vunpack.c.l.b16 %v4579
        %v4708 = vunpack.c.l.b16 %v4580
        %v4709 = vunpack.c.l.b16 %v4581
        %v4710 = vunpack.c.l.b16 %v4582
        %v4711 = vunpack.c.l.b16 %v4583
        %v4712 = vunpack.c.l.b16 %v4584
        %v4713 = vunpack.c.l.b16 %v4585
        %v4714 = vunpack.c.l.b16 %v4586
        %v4715 = vunpack.c.l.b16 %v4587
        %v4716 = vunpack.c.l.b16 %v4588
        %v4717 = vunpack.c.l.b16 %v4589
        %v4718 = vunpack.c.l.b16 %v4590
        %v4719 = vunpack.c.l.b16 %v4591
        %v4720 = vunpack.c.l.b16 %v4592
        %v4721 = vunpack.c.l.b16 %v4593
        %v4722 = vpack.c.b16 %v4707, %v4706
        %v4723 = vpack.c.b16 %v4709, %v4708
        %v4724 = vpack.c.b16 %v4711, %v4710
        %v4725 = vpack.c.b16 %v4713, %v4712
        %v4726 = vpack.c.b16 %v4715, %v4714
        %v4727 = vpack.c.b16 %v4717, %v4716
        %v4728 = vpack.c.b16 %v4719, %v4718
        %v4729 = vpack.c.b16 %v4721, %v4720
        %4738 = vmatprep.subr.bf16.mxu0 0
        %4739 = vmatpush1.bf16.msra.mxu0 %v4722
        %4740 = vmatprep.subr.bf16.mxu0 0
        %4741 = vmatpush1.bf16.msra.mxu0 %v4723
        %4742 = vmatprep.subr.bf16.mxu0 0
        %4743 = vmatpush1.bf16.msra.mxu0 %v4724
        %4744 = vmatprep.subr.bf16.mxu0 0
        %4745 = vmatpush1.bf16.msra.mxu0 %v4725
        %4746 = vmatprep.subr.bf16.mxu0 0
        %4747 = vmatpush1.bf16.msra.mxu0 %v4726
        %4748 = vmatprep.subr.bf16.mxu0 0
        %4749 = vmatpush1.bf16.msra.mxu0 %v4727
        %4750 = vmatprep.subr.bf16.mxu0 0
        %4751 = vmatpush1.bf16.msra.mxu0 %v4728
        %4752 = vmatprep.subr.bf16.mxu0 0
        %4753 = vmatpush1.bf16.msra.mxu0 %v4729
        %4754 = vmatprep.subr.bf16.mxu0 0
        %4755 = vmatpush1.bf16.msra.mxu0 0
        %4756 = vmatprep.subr.bf16.mxu0 0
        %4757 = vmatpush1.bf16.msra.mxu0 0
        %4758 = vmatprep.subr.bf16.mxu0 0
        %4759 = vmatpush1.bf16.msra.mxu0 0
        %4760 = vmatprep.subr.bf16.mxu0 0
        %4761 = vmatpush1.bf16.msra.mxu0 0
        %4762 = vmatprep.subr.bf16.mxu0 0
        %4763 = vmatpush1.bf16.msra.mxu0 0
        %4764 = vmatprep.subr.bf16.mxu0 0
        %4765 = vmatpush1.bf16.msra.mxu0 0
        %4766 = vmatprep.subr.bf16.mxu0 0
        %4767 = vmatpush1.bf16.msra.mxu0 0
        %4768 = vmatprep.subr.bf16.mxu0 0
        %4769 = vmatpush1.bf16.msra.mxu0 0
        %4770 = vmatprep.mubr.bf16.mxu0 0
        %4771 = vmatmul.mubr.bf16.gmra.mrb[0].mxu0 %v4658
        %v4772 = vpop.f32.mrb[0].mxu0
        %v4773 = vadd.f32 0.0, %v4772
        %v4774 = vpop.f32.mrb[0].mxu0
        %v4775 = vpop.f32.mrb[0].mxu0
        %v4776 = vadd.f32 0.0, %v4775
        %v4777 = vpop.f32.mrb[0].mxu0
        %4778 = vmatprep.mubr.bf16.mxu0 0
        %4779 = vmatmul.mubr.bf16.gmra.mrb[0].mxu0 %v4659
        %v4780 = vpop.f32.mrb[0].mxu0
        %v4781 = vadd.f32 0.0, %v4780
        %v4782 = vpop.f32.mrb[0].mxu0
        %v4783 = vpop.f32.mrb[0].mxu0
        %v4784 = vadd.f32 0.0, %v4783
        %v4785 = vpop.f32.mrb[0].mxu0
        %4786 = vmatprep.mubr.bf16.mxu0 0
        %4787 = vmatmul.mubr.bf16.gmra.mrb[0].mxu0 %v4660
        %v4788 = vpop.f32.mrb[0].mxu0
        %v4789 = vadd.f32 0.0, %v4788
        %v4790 = vpop.f32.mrb[0].mxu0
        %v4791 = vpop.f32.mrb[0].mxu0
        %v4792 = vadd.f32 0.0, %v4791
        %v4793 = vpop.f32.mrb[0].mxu0
        %4794 = vmatprep.mubr.bf16.mxu0 0
        %4795 = vmatmul.mubr.bf16.gmra.mrb[0].mxu0 %v4661
        %v4796 = vpop.f32.mrb[0].mxu0
        %v4797 = vadd.f32 0.0, %v4796
        %v4798 = vpop.f32.mrb[0].mxu0
        %v4799 = vpop.f32.mrb[0].mxu0
        %v4800 = vadd.f32 0.0, %v4799
        %v4801 = vpop.f32.mrb[0].mxu0
        %4802 = vmatprep.mubr.bf16.mxu0 0
        %4803 = vmatmul.mubr.bf16.gmra.mrb[0].mxu0 %v4662
        %v4804 = vpop.f32.mrb[0].mxu0
        %v4805 = vadd.f32 0.0, %v4804
        %v4806 = vpop.f32.mrb[0].mxu0
        %v4807 = vpop.f32.mrb[0].mxu0
        %v4808 = vadd.f32 0.0, %v4807
        %v4809 = vpop.f32.mrb[0].mxu0
        %4810 = vmatprep.mubr.bf16.mxu0 0
        %4811 = vmatmul.mubr.bf16.gmra.mrb[0].mxu0 %v4663
        %v4812 = vpop.f32.mrb[0].mxu0
        %v4813 = vadd.f32 0.0, %v4812
        %v4814 = vpop.f32.mrb[0].mxu0
        %v4815 = vpop.f32.mrb[0].mxu0
        %v4816 = vadd.f32 0.0, %v4815
        %v4817 = vpop.f32.mrb[0].mxu0
        %4818 = vmatprep.mubr.bf16.mxu0 0
        %4819 = vmatmul.mubr.bf16.gmra.mrb[0].mxu0 %v4664
        %v4820 = vpop.f32.mrb[0].mxu0
        %v4821 = vadd.f32 0.0, %v4820
        %v4822 = vpop.f32.mrb[0].mxu0
        %v4823 = vpop.f32.mrb[0].mxu0
        %v4824 = vadd.f32 0.0, %v4823
        %v4825 = vpop.f32.mrb[0].mxu0
        %4826 = vmatprep.mubr.bf16.mxu0 0
        %4827 = vmatmul.mubr.bf16.gmra.mrb[0].mxu0 %v4665
        %v4828 = vpop.f32.mrb[0].mxu0
        %v4829 = vadd.f32 0.0, %v4828
        %v4830 = vpop.f32.mrb[0].mxu0
        %v4831 = vpop.f32.mrb[0].mxu0
        %v4832 = vadd.f32 0.0, %v4831
        %v4833 = vpop.f32.mrb[0].mxu0
        %4834 = vmatprep.mubr.bf16.mxu0 0
        %4835 = vmatmul.mubr.bf16.gmra.mrb[0].mxu0 %v4666
        %v4836 = vpop.f32.mrb[0].mxu0
        %v4837 = vadd.f32 0.0, %v4836
        %v4838 = vpop.f32.mrb[0].mxu0
        %v4839 = vpop.f32.mrb[0].mxu0
        %v4840 = vadd.f32 0.0, %v4839
        %v4841 = vpop.f32.mrb[0].mxu0
        %4842 = vmatprep.mubr.bf16.mxu0 0
        %4843 = vmatmul.mubr.bf16.gmra.mrb[0].mxu0 %v4667
        %v4844 = vpop.f32.mrb[0].mxu0
        %v4845 = vadd.f32 0.0, %v4844
        %v4846 = vpop.f32.mrb[0].mxu0
        %v4847 = vpop.f32.mrb[0].mxu0
        %v4848 = vadd.f32 0.0, %v4847
        %v4849 = vpop.f32.mrb[0].mxu0
        %4850 = vmatprep.mubr.bf16.mxu0 0
        %4851 = vmatmul.mubr.bf16.gmra.mrb[0].mxu0 %v4668
        %v4852 = vpop.f32.mrb[0].mxu0
        %v4853 = vadd.f32 0.0, %v4852
        %v4854 = vpop.f32.mrb[0].mxu0
        %v4855 = vpop.f32.mrb[0].mxu0
        %v4856 = vadd.f32 0.0, %v4855
        %v4857 = vpop.f32.mrb[0].mxu0
        %4858 = vmatprep.mubr.bf16.mxu0 0
        %4859 = vmatmul.mubr.bf16.gmra.mrb[0].mxu0 %v4669
        %v4860 = vpop.f32.mrb[0].mxu0
        %v4861 = vadd.f32 0.0, %v4860
        %v4862 = vpop.f32.mrb[0].mxu0
        %v4863 = vpop.f32.mrb[0].mxu0
        %v4864 = vadd.f32 0.0, %v4863
        %v4865 = vpop.f32.mrb[0].mxu0
        %4866 = vmatprep.mubr.bf16.mxu0 0
        %4867 = vmatmul.mubr.bf16.gmra.mrb[0].mxu0 %v4670
        %v4868 = vpop.f32.mrb[0].mxu0
        %v4869 = vadd.f32 0.0, %v4868
        %v4870 = vpop.f32.mrb[0].mxu0
        %v4871 = vpop.f32.mrb[0].mxu0
        %v4872 = vadd.f32 0.0, %v4871
        %v4873 = vpop.f32.mrb[0].mxu0
        %4874 = vmatprep.mubr.bf16.mxu0 0
        %4875 = vmatmul.mubr.bf16.gmra.mrb[0].mxu0 %v4671
        %v4876 = vpop.f32.mrb[0].mxu0
        %v4877 = vadd.f32 0.0, %v4876
        %v4878 = vpop.f32.mrb[0].mxu0
        %v4879 = vpop.f32.mrb[0].mxu0
        %v4880 = vadd.f32 0.0, %v4879
        %v4881 = vpop.f32.mrb[0].mxu0
        %4882 = vmatprep.mubr.bf16.mxu0 0
        %4883 = vmatmul.mubr.bf16.gmra.mrb[0].mxu0 %v4672
        %v4884 = vpop.f32.mrb[0].mxu0
        %v4885 = vadd.f32 0.0, %v4884
        %v4886 = vpop.f32.mrb[0].mxu0
        %v4887 = vpop.f32.mrb[0].mxu0
        %v4888 = vadd.f32 0.0, %v4887
        %v4889 = vpop.f32.mrb[0].mxu0
        %4890 = vmatprep.mubr.bf16.mxu0 0
        %4891 = vmatmul.mubr.bf16.gmra.mrb[0].mxu0 %v4673
        %v4892 = vpop.f32.mrb[0].mxu0
        %v4893 = vadd.f32 0.0, %v4892
        %v4894 = vpop.f32.mrb[0].mxu0
        %v4895 = vpop.f32.mrb[0].mxu0
        %v4896 = vadd.f32 0.0, %v4895
        %v4897 = vpop.f32.mrb[0].mxu0
        %4898 = vdwg.mxu0
        %v4899 = vadd.f32 %v4512, %v4773
        %v4900 = vadd.f32 %v4513, %v4776
        %v4901 = vadd.f32 %v4514, %v4781
        %v4902 = vadd.f32 %v4515, %v4784
        %v4903 = vadd.f32 %v4516, %v4789
        %v4904 = vadd.f32 %v4517, %v4792
        %v4905 = vadd.f32 %v4518, %v4797
        %v4906 = vadd.f32 %v4519, %v4800
        %v4907 = vadd.f32 %v4520, %v4805
        %v4908 = vadd.f32 %v4521, %v4808
        %v4909 = vadd.f32 %v4522, %v4813
        %v4910 = vadd.f32 %v4523, %v4816
        %v4911 = vadd.f32 %v4524, %v4821
        %v4912 = vadd.f32 %v4525, %v4824
        %v4913 = vadd.f32 %v4526, %v4829
        %v4914 = vadd.f32 %v4527, %v4832
        %v4915 = vadd.f32 %v4528, %v4837
        %v4916 = vadd.f32 %v4529, %v4840
        %v4917 = vadd.f32 %v4530, %v4845
        %v4918 = vadd.f32 %v4531, %v4848
        %v4919 = vadd.f32 %v4532, %v4853
        %v4920 = vadd.f32 %v4533, %v4856
        %v4921 = vadd.f32 %v4534, %v4861
        %v4922 = vadd.f32 %v4535, %v4864
        %v4923 = vadd.f32 %v4536, %v4869
        %v4924 = vadd.f32 %v4537, %v4872
        %v4925 = vadd.f32 %v4538, %v4877
        %v4926 = vadd.f32 %v4539, %v4880
        %v4927 = vadd.f32 %v4540, %v4885
        %v4928 = vadd.f32 %v4541, %v4888
        %v4929 = vadd.f32 %v4542, %v4893
        %v4930 = vadd.f32 %v4543, %v4896
        %v4931 = vld [vmem:[%s4544] sm:$0xf]
        %v4932 = vld [vmem:[%s4544 + $0x4] sm:$0xf]
        %v4933 = vld [vmem:[%s4544 + $0x8] sm:$0x1]
        %v4934 = vld [vmem:[%s4544 + $0xc] sm:$0xf]
        %v4935 = vld [vmem:[%s4544 + $0x10] sm:$0xf]
        %v4936 = vld [vmem:[%s4544 + $0x14] sm:$0x1]
        %v4937 = vld [vmem:[%s4544 + $0x18] sm:$0xf]
        %v4938 = vld [vmem:[%s4544 + $0x1c] sm:$0xf]
        %v4939 = vld [vmem:[%s4544 + $0x20] sm:$0x1]
        %v4940 = vld [vmem:[%s4544 + $0x24] sm:$0xf]
        %v4941 = vld [vmem:[%s4544 + $0x28] sm:$0xf]
        %v4942 = vld [vmem:[%s4544 + $0x2c] sm:$0x1]
        %v4943 = vld [vmem:[%s4544 + $0x30] sm:$0xf]
        %v4944 = vld [vmem:[%s4544 + $0x34] sm:$0xf]
        %v4945 = vld [vmem:[%s4544 + $0x38] sm:$0x1]
        %v4946 = vld [vmem:[%s4544 + $0x3c] sm:$0xf]
        %v4947 = vld [vmem:[%s4544 + $0x40] sm:$0xf]
        %v4948 = vld [vmem:[%s4544 + $0x44] sm:$0x1]
        %v4949 = vld [vmem:[%s4544 + $0x48] sm:$0xf]
        %v4950 = vld [vmem:[%s4544 + $0x4c] sm:$0xf]
        %v4951 = vld [vmem:[%s4544 + $0x50] sm:$0x1]
        %v4952 = vld [vmem:[%s4544 + $0x54] sm:$0xf]
        %v4953 = vld [vmem:[%s4544 + $0x58] sm:$0xf]
        %v4954 = vld [vmem:[%s4544 + $0x5c] sm:$0x1]
        %v4955 = vld [vmem:[%s4544 + $0x60] sm:$0xf]
        %v4956 = vld [vmem:[%s4544 + $0x64] sm:$0xf]
        %v4957 = vld [vmem:[%s4544 + $0x68] sm:$0x1]
        %v4958 = vld [vmem:[%s4544 + $0x6c] sm:$0xf]
        %v4959 = vld [vmem:[%s4544 + $0x70] sm:$0xf]
        %v4960 = vld [vmem:[%s4544 + $0x74] sm:$0x1]
        %v4961 = vld [vmem:[%s4544 + $0x78] sm:$0xf]
        %v4962 = vld [vmem:[%s4544 + $0x7c] sm:$0xf]
        %v4963 = vld [vmem:[%s4544 + $0x80] sm:$0x1]
        %v4964 = vld [vmem:[%s4544 + $0x84] sm:$0xf]
        %v4965 = vld [vmem:[%s4544 + $0x88] sm:$0xf]
        %v4966 = vld [vmem:[%s4544 + $0x8c] sm:$0x1]
        %v4967 = vld [vmem:[%s4544 + $0x90] sm:$0xf]
        %v4968 = vld [vmem:[%s4544 + $0x94] sm:$0xf]
        %v4969 = vld [vmem:[%s4544 + $0x98] sm:$0x1]
        %v4970 = vld [vmem:[%s4544 + $0x9c] sm:$0xf]
        %v4971 = vld [vmem:[%s4544 + $0xa0] sm:$0xf]
        %v4972 = vld [vmem:[%s4544 + $0xa4] sm:$0x1]
        %v4973 = vld [vmem:[%s4544 + $0xa8] sm:$0xf]
        %v4974 = vld [vmem:[%s4544 + $0xac] sm:$0xf]
        %v4975 = vld [vmem:[%s4544 + $0xb0] sm:$0x1]
        %v4976 = vld [vmem:[%s4544 + $0xb4] sm:$0xf]
        %v4977 = vld [vmem:[%s4544 + $0xb8] sm:$0xf]
        %v4978 = vld [vmem:[%s4544 + $0xbc] sm:$0x1]
        %v4980 = vshrl.u32 %v4931, 16
        %v4982 = vrot.slane %v4980, 4
        %v4983 = vshll.u32 %v4931, 16
        %v4985 = vrot.slane %v4983, 5
        %v4986 = vor.u32 %v4982, %v4985
        %v4987 = vrot.slane %v4986, 4
        %v4989 = vshll.u32 %v4932, 16
        %v4991 = vrot.slane %v4989, 5
        %v4992 = vsel %vm1441, %v4987, %v4991
        %v4993 = vshrl.u32 %v4932, 16
        %v4995 = vrot.slane %v4993, 4
        %v4996 = vor.u32 %v4995, %v4991
        %v4997 = vrot.slane %v4996, 4
        %v4999 = vshll.u32 %v4933, 16
        %v5001 = vrot.slane %v4999, 5
        %v5002 = vsel %vm1441, %v4997, %v5001
        %v5004 = vshrl.u32 %v4934, 16
        %v5006 = vrot.slane %v5004, 4
        %v5007 = vshll.u32 %v4934, 16
        %v5009 = vrot.slane %v5007, 5
        %v5010 = vor.u32 %v5006, %v5009
        %v5011 = vrot.slane %v5010, 4
        %v5013 = vshll.u32 %v4935, 16
        %v5015 = vrot.slane %v5013, 5
        %v5016 = vsel %vm1441, %v5011, %v5015
        %v5017 = vshrl.u32 %v4935, 16
        %v5019 = vrot.slane %v5017, 4
        %v5020 = vor.u32 %v5019, %v5015
        %v5021 = vrot.slane %v5020, 4
        %v5023 = vshll.u32 %v4936, 16
        %v5025 = vrot.slane %v5023, 5
        %v5026 = vsel %vm1441, %v5021, %v5025
        %v5028 = vshrl.u32 %v4937, 16
        %v5030 = vrot.slane %v5028, 4
        %v5031 = vshll.u32 %v4937, 16
        %v5033 = vrot.slane %v5031, 5
        %v5034 = vor.u32 %v5030, %v5033
        %v5035 = vrot.slane %v5034, 4
        %v5037 = vshll.u32 %v4938, 16
        %v5039 = vrot.slane %v5037, 5
        %v5040 = vsel %vm1441, %v5035, %v5039
        %v5041 = vshrl.u32 %v4938, 16
        %v5043 = vrot.slane %v5041, 4
        %v5044 = vor.u32 %v5043, %v5039
        %v5045 = vrot.slane %v5044, 4
        %v5047 = vshll.u32 %v4939, 16
        %v5049 = vrot.slane %v5047, 5
        %v5050 = vsel %vm1441, %v5045, %v5049
        %v5052 = vshrl.u32 %v4940, 16
        %v5054 = vrot.slane %v5052, 4
        %v5055 = vshll.u32 %v4940, 16
        %v5057 = vrot.slane %v5055, 5
        %v5058 = vor.u32 %v5054, %v5057
        %v5059 = vrot.slane %v5058, 4
        %v5061 = vshll.u32 %v4941, 16
        %v5063 = vrot.slane %v5061, 5
        %v5064 = vsel %vm1441, %v5059, %v5063
        %v5065 = vshrl.u32 %v4941, 16
        %v5067 = vrot.slane %v5065, 4
        %v5068 = vor.u32 %v5067, %v5063
        %v5069 = vrot.slane %v5068, 4
        %v5071 = vshll.u32 %v4942, 16
        %v5073 = vrot.slane %v5071, 5
        %v5074 = vsel %vm1441, %v5069, %v5073
        %v5076 = vshrl.u32 %v4943, 16
        %v5078 = vrot.slane %v5076, 4
        %v5079 = vshll.u32 %v4943, 16
        %v5081 = vrot.slane %v5079, 5
        %v5082 = vor.u32 %v5078, %v5081
        %v5083 = vrot.slane %v5082, 4
        %v5085 = vshll.u32 %v4944, 16
        %v5087 = vrot.slane %v5085, 5
        %v5088 = vsel %vm1441, %v5083, %v5087
        %v5089 = vshrl.u32 %v4944, 16
        %v5091 = vrot.slane %v5089, 4
        %v5092 = vor.u32 %v5091, %v5087
        %v5093 = vrot.slane %v5092, 4
        %v5095 = vshll.u32 %v4945, 16
        %v5097 = vrot.slane %v5095, 5
        %v5098 = vsel %vm1441, %v5093, %v5097
        %v5100 = vshrl.u32 %v4946, 16
        %v5102 = vrot.slane %v5100, 4
        %v5103 = vshll.u32 %v4946, 16
        %v5105 = vrot.slane %v5103, 5
        %v5106 = vor.u32 %v5102, %v5105
        %v5107 = vrot.slane %v5106, 4
        %v5109 = vshll.u32 %v4947, 16
        %v5111 = vrot.slane %v5109, 5
        %v5112 = vsel %vm1441, %v5107, %v5111
        %v5113 = vshrl.u32 %v4947, 16
        %v5115 = vrot.slane %v5113, 4
        %v5116 = vor.u32 %v5115, %v5111
        %v5117 = vrot.slane %v5116, 4
        %v5119 = vshll.u32 %v4948, 16
        %v5121 = vrot.slane %v5119, 5
        %v5122 = vsel %vm1441, %v5117, %v5121
        %v5124 = vshrl.u32 %v4949, 16
        %v5126 = vrot.slane %v5124, 4
        %v5127 = vshll.u32 %v4949, 16
        %v5129 = vrot.slane %v5127, 5
        %v5130 = vor.u32 %v5126, %v5129
        %v5131 = vrot.slane %v5130, 4
        %v5133 = vshll.u32 %v4950, 16
        %v5135 = vrot.slane %v5133, 5
        %v5136 = vsel %vm1441, %v5131, %v5135
        %v5137 = vshrl.u32 %v4950, 16
        %v5139 = vrot.slane %v5137, 4
        %v5140 = vor.u32 %v5139, %v5135
        %v5141 = vrot.slane %v5140, 4
        %v5143 = vshll.u32 %v4951, 16
        %v5145 = vrot.slane %v5143, 5
        %v5146 = vsel %vm1441, %v5141, %v5145
        %v5148 = vshrl.u32 %v4952, 16
        %v5150 = vrot.slane %v5148, 4
        %v5151 = vshll.u32 %v4952, 16
        %v5153 = vrot.slane %v5151, 5
        %v5154 = vor.u32 %v5150, %v5153
        %v5155 = vrot.slane %v5154, 4
        %v5157 = vshll.u32 %v4953, 16
        %v5159 = vrot.slane %v5157, 5
        %v5160 = vsel %vm1441, %v5155, %v5159
        %v5161 = vshrl.u32 %v4953, 16
        %v5163 = vrot.slane %v5161, 4
        %v5164 = vor.u32 %v5163, %v5159
        %v5165 = vrot.slane %v5164, 4
        %v5167 = vshll.u32 %v4954, 16
        %v5169 = vrot.slane %v5167, 5
        %v5170 = vsel %vm1441, %v5165, %v5169
        %v5172 = vshrl.u32 %v4955, 16
        %v5174 = vrot.slane %v5172, 4
        %v5175 = vshll.u32 %v4955, 16
        %v5177 = vrot.slane %v5175, 5
        %v5178 = vor.u32 %v5174, %v5177
        %v5179 = vrot.slane %v5178, 4
        %v5181 = vshll.u32 %v4956, 16
        %v5183 = vrot.slane %v5181, 5
        %v5184 = vsel %vm1441, %v5179, %v5183
        %v5185 = vshrl.u32 %v4956, 16
        %v5187 = vrot.slane %v5185, 4
        %v5188 = vor.u32 %v5187, %v5183
        %v5189 = vrot.slane %v5188, 4
        %v5191 = vshll.u32 %v4957, 16
        %v5193 = vrot.slane %v5191, 5
        %v5194 = vsel %vm1441, %v5189, %v5193
        %v5196 = vshrl.u32 %v4958, 16
        %v5198 = vrot.slane %v5196, 4
        %v5199 = vshll.u32 %v4958, 16
        %v5201 = vrot.slane %v5199, 5
        %v5202 = vor.u32 %v5198, %v5201
        %v5203 = vrot.slane %v5202, 4
        %v5205 = vshll.u32 %v4959, 16
        %v5207 = vrot.slane %v5205, 5
        %v5208 = vsel %vm1441, %v5203, %v5207
        %v5209 = vshrl.u32 %v4959, 16
        %v5211 = vrot.slane %v5209, 4
        %v5212 = vor.u32 %v5211, %v5207
        %v5213 = vrot.slane %v5212, 4
        %v5215 = vshll.u32 %v4960, 16
        %v5217 = vrot.slane %v5215, 5
        %v5218 = vsel %vm1441, %v5213, %v5217
        %v5220 = vshrl.u32 %v4961, 16
        %v5222 = vrot.slane %v5220, 4
        %v5223 = vshll.u32 %v4961, 16
        %v5225 = vrot.slane %v5223, 5
        %v5226 = vor.u32 %v5222, %v5225
        %v5227 = vrot.slane %v5226, 4
        %v5229 = vshll.u32 %v4962, 16
        %v5231 = vrot.slane %v5229, 5
        %v5232 = vsel %vm1441, %v5227, %v5231
        %v5233 = vshrl.u32 %v4962, 16
        %v5235 = vrot.slane %v5233, 4
        %v5236 = vor.u32 %v5235, %v5231
        %v5237 = vrot.slane %v5236, 4
        %v5239 = vshll.u32 %v4963, 16
        %v5241 = vrot.slane %v5239, 5
        %v5242 = vsel %vm1441, %v5237, %v5241
        %v5244 = vshrl.u32 %v4964, 16
        %v5246 = vrot.slane %v5244, 4
        %v5247 = vshll.u32 %v4964, 16
        %v5249 = vrot.slane %v5247, 5
        %v5250 = vor.u32 %v5246, %v5249
        %v5251 = vrot.slane %v5250, 4
        %v5253 = vshll.u32 %v4965, 16
        %v5255 = vrot.slane %v5253, 5
        %v5256 = vsel %vm1441, %v5251, %v5255
        %v5257 = vshrl.u32 %v4965, 16
        %v5259 = vrot.slane %v5257, 4
        %v5260 = vor.u32 %v5259, %v5255
        %v5261 = vrot.slane %v5260, 4
        %v5263 = vshll.u32 %v4966, 16
        %v5265 = vrot.slane %v5263, 5
        %v5266 = vsel %vm1441, %v5261, %v5265
        %v5268 = vshrl.u32 %v4967, 16
        %v5270 = vrot.slane %v5268, 4
        %v5271 = vshll.u32 %v4967, 16
        %v5273 = vrot.slane %v5271, 5
        %v5274 = vor.u32 %v5270, %v5273
        %v5275 = vrot.slane %v5274, 4
        %v5277 = vshll.u32 %v4968, 16
        %v5279 = vrot.slane %v5277, 5
        %v5280 = vsel %vm1441, %v5275, %v5279
        %v5281 = vshrl.u32 %v4968, 16
        %v5283 = vrot.slane %v5281, 4
        %v5284 = vor.u32 %v5283, %v5279
        %v5285 = vrot.slane %v5284, 4
        %v5287 = vshll.u32 %v4969, 16
        %v5289 = vrot.slane %v5287, 5
        %v5290 = vsel %vm1441, %v5285, %v5289
        %v5292 = vshrl.u32 %v4970, 16
        %v5294 = vrot.slane %v5292, 4
        %v5295 = vshll.u32 %v4970, 16
        %v5297 = vrot.slane %v5295, 5
        %v5298 = vor.u32 %v5294, %v5297
        %v5299 = vrot.slane %v5298, 4
        %v5301 = vshll.u32 %v4971, 16
        %v5303 = vrot.slane %v5301, 5
        %v5304 = vsel %vm1441, %v5299, %v5303
        %v5305 = vshrl.u32 %v4971, 16
        %v5307 = vrot.slane %v5305, 4
        %v5308 = vor.u32 %v5307, %v5303
        %v5309 = vrot.slane %v5308, 4
        %v5311 = vshll.u32 %v4972, 16
        %v5313 = vrot.slane %v5311, 5
        %v5314 = vsel %vm1441, %v5309, %v5313
        %v5316 = vshrl.u32 %v4973, 16
        %v5318 = vrot.slane %v5316, 4
        %v5319 = vshll.u32 %v4973, 16
        %v5321 = vrot.slane %v5319, 5
        %v5322 = vor.u32 %v5318, %v5321
        %v5323 = vrot.slane %v5322, 4
        %v5325 = vshll.u32 %v4974, 16
        %v5327 = vrot.slane %v5325, 5
        %v5328 = vsel %vm1441, %v5323, %v5327
        %v5329 = vshrl.u32 %v4974, 16
        %v5331 = vrot.slane %v5329, 4
        %v5332 = vor.u32 %v5331, %v5327
        %v5333 = vrot.slane %v5332, 4
        %v5335 = vshll.u32 %v4975, 16
        %v5337 = vrot.slane %v5335, 5
        %v5338 = vsel %vm1441, %v5333, %v5337
        %v5340 = vshrl.u32 %v4976, 16
        %v5342 = vrot.slane %v5340, 4
        %v5343 = vshll.u32 %v4976, 16
        %v5345 = vrot.slane %v5343, 5
        %v5346 = vor.u32 %v5342, %v5345
        %v5347 = vrot.slane %v5346, 4
        %v5349 = vshll.u32 %v4977, 16
        %v5351 = vrot.slane %v5349, 5
        %v5352 = vsel %vm1441, %v5347, %v5351
        %v5353 = vshrl.u32 %v4977, 16
        %v5355 = vrot.slane %v5353, 4
        %v5356 = vor.u32 %v5355, %v5351
        %v5357 = vrot.slane %v5356, 4
        %v5359 = vshll.u32 %v4978, 16
        %v5361 = vrot.slane %v5359, 5
        %v5362 = vsel %vm1441, %v5357, %v5361
        %s5363 = scalar_lea.vmem [#allocation8], 448
        %v5364 = vld [vmem:[%s5363] sm:$0xf]
        %v5365 = vld [vmem:[%s5363 + $0x4] sm:$0xf]
        %v5366 = vld [vmem:[%s5363 + $0x8] sm:$0xf]
        %v5367 = vld [vmem:[%s5363 + $0xc] sm:$0xf]
        %v5368 = vld [vmem:[%s5363 + $0x10] sm:$0xf]
        %v5369 = vld [vmem:[%s5363 + $0x14] sm:$0xf]
        %v5370 = vld [vmem:[%s5363 + $0x18] sm:$0xf]
        %v5371 = vld [vmem:[%s5363 + $0x1c] sm:$0xf]
        %v5372 = vld [vmem:[%s5363 + $0x20] sm:$0xf]
        %v5373 = vld [vmem:[%s5363 + $0x24] sm:$0xf]
        %v5374 = vld [vmem:[%s5363 + $0x28] sm:$0xf]
        %v5375 = vld [vmem:[%s5363 + $0x2c] sm:$0xf]
        %v5376 = vld [vmem:[%s5363 + $0x30] sm:$0xf]
        %v5377 = vld [vmem:[%s5363 + $0x34] sm:$0xf]
        %v5378 = vld [vmem:[%s5363 + $0x38] sm:$0xf]
        %v5379 = vld [vmem:[%s5363 + $0x3c] sm:$0xf]
        %v5380 = vunpack.c.l.b16 %v4992
        %v5381 = vunpack.c.l.b16 %v5002
        %v5382 = vunpack.c.l.b16 %v5016
        %v5383 = vunpack.c.l.b16 %v5026
        %v5384 = vunpack.c.l.b16 %v5040
        %v5385 = vunpack.c.l.b16 %v5050
        %v5386 = vunpack.c.l.b16 %v5064
        %v5387 = vunpack.c.l.b16 %v5074
        %v5388 = vunpack.c.l.b16 %v5088
        %v5389 = vunpack.c.l.b16 %v5098
        %v5390 = vunpack.c.l.b16 %v5112
        %v5391 = vunpack.c.l.b16 %v5122
        %v5392 = vunpack.c.l.b16 %v5136
        %v5393 = vunpack.c.l.b16 %v5146
        %v5394 = vunpack.c.l.b16 %v5160
        %v5395 = vunpack.c.l.b16 %v5170
        %v5396 = vunpack.c.l.b16 %v5184
        %v5397 = vunpack.c.l.b16 %v5194
        %v5398 = vunpack.c.l.b16 %v5208
        %v5399 = vunpack.c.l.b16 %v5218
        %v5400 = vunpack.c.l.b16 %v5232
        %v5401 = vunpack.c.l.b16 %v5242
        %v5402 = vunpack.c.l.b16 %v5256
        %v5403 = vunpack.c.l.b16 %v5266
        %v5404 = vunpack.c.l.b16 %v5280
        %v5405 = vunpack.c.l.b16 %v5290
        %v5406 = vunpack.c.l.b16 %v5304
        %v5407 = vunpack.c.l.b16 %v5314
        %v5408 = vunpack.c.l.b16 %v5328
        %v5409 = vunpack.c.l.b16 %v5338
        %v5410 = vunpack.c.l.b16 %v5352
        %v5411 = vunpack.c.l.b16 %v5362
        %v5412 = vpack.c.b16 %v5381, %v5380
        %v5413 = vpack.c.b16 %v5383, %v5382
        %v5414 = vpack.c.b16 %v5385, %v5384
        %v5415 = vpack.c.b16 %v5387, %v5386
        %v5416 = vpack.c.b16 %v5389, %v5388
        %v5417 = vpack.c.b16 %v5391, %v5390
        %v5418 = vpack.c.b16 %v5393, %v5392
        %v5419 = vpack.c.b16 %v5395, %v5394
        %v5420 = vpack.c.b16 %v5397, %v5396
        %v5421 = vpack.c.b16 %v5399, %v5398
        %v5422 = vpack.c.b16 %v5401, %v5400
        %v5423 = vpack.c.b16 %v5403, %v5402
        %v5424 = vpack.c.b16 %v5405, %v5404
        %v5425 = vpack.c.b16 %v5407, %v5406
        %v5426 = vpack.c.b16 %v5409, %v5408
        %v5427 = vpack.c.b16 %v5411, %v5410
        %v5460 = vunpack.c.l.b16 %v5364
        %v5461 = vunpack.c.l.b16 %v5365
        %v5462 = vunpack.c.l.b16 %v5366
        %v5463 = vunpack.c.l.b16 %v5367
        %v5464 = vunpack.c.l.b16 %v5368
        %v5465 = vunpack.c.l.b16 %v5369
        %v5466 = vunpack.c.l.b16 %v5370
        %v5467 = vunpack.c.l.b16 %v5371
        %v5468 = vunpack.c.l.b16 %v5372
        %v5469 = vunpack.c.l.b16 %v5373
        %v5470 = vunpack.c.l.b16 %v5374
        %v5471 = vunpack.c.l.b16 %v5375
        %v5472 = vunpack.c.l.b16 %v5376
        %v5473 = vunpack.c.l.b16 %v5377
        %v5474 = vunpack.c.l.b16 %v5378
        %v5475 = vunpack.c.l.b16 %v5379
        %v5476 = vpack.c.b16 %v5461, %v5460
        %v5477 = vpack.c.b16 %v5463, %v5462
        %v5478 = vpack.c.b16 %v5465, %v5464
        %v5479 = vpack.c.b16 %v5467, %v5466
        %v5480 = vpack.c.b16 %v5469, %v5468
        %v5481 = vpack.c.b16 %v5471, %v5470
        %v5482 = vpack.c.b16 %v5473, %v5472
        %v5483 = vpack.c.b16 %v5475, %v5474
        %5492 = vmatprep.subr.bf16.mxu0 0
        %5493 = vmatpush1.bf16.msra.mxu0 %v5476
        %5494 = vmatprep.subr.bf16.mxu0 0
        %5495 = vmatpush1.bf16.msra.mxu0 %v5477
        %5496 = vmatprep.subr.bf16.mxu0 0
        %5497 = vmatpush1.bf16.msra.mxu0 %v5478
        %5498 = vmatprep.subr.bf16.mxu0 0
        %5499 = vmatpush1.bf16.msra.mxu0 %v5479
        %5500 = vmatprep.subr.bf16.mxu0 0
        %5501 = vmatpush1.bf16.msra.mxu0 %v5480
        %5502 = vmatprep.subr.bf16.mxu0 0
        %5503 = vmatpush1.bf16.msra.mxu0 %v5481
        %5504 = vmatprep.subr.bf16.mxu0 0
        %5505 = vmatpush1.bf16.msra.mxu0 %v5482
        %5506 = vmatprep.subr.bf16.mxu0 0
        %5507 = vmatpush1.bf16.msra.mxu0 %v5483
        %5508 = vmatprep.subr.bf16.mxu0 0
        %5509 = vmatpush1.bf16.msra.mxu0 0
        %5510 = vmatprep.subr.bf16.mxu0 0
        %5511 = vmatpush1.bf16.msra.mxu0 0
        %5512 = vmatprep.subr.bf16.mxu0 0
        %5513 = vmatpush1.bf16.msra.mxu0 0
        %5514 = vmatprep.subr.bf16.mxu0 0
        %5515 = vmatpush1.bf16.msra.mxu0 0
        %5516 = vmatprep.subr.bf16.mxu0 0
        %5517 = vmatpush1.bf16.msra.mxu0 0
        %5518 = vmatprep.subr.bf16.mxu0 0
        %5519 = vmatpush1.bf16.msra.mxu0 0
        %5520 = vmatprep.subr.bf16.mxu0 0
        %5521 = vmatpush1.bf16.msra.mxu0 0
        %5522 = vmatprep.subr.bf16.mxu0 0
        %5523 = vmatpush1.bf16.msra.mxu0 0
        %5524 = vmatprep.mubr.bf16.mxu0 0
        %5525 = vmatmul.mubr.bf16.gmra.mrb[0].mxu0 %v5412
        %v5526 = vpop.f32.mrb[0].mxu0
        %v5527 = vadd.f32 0.0, %v5526
        %v5528 = vpop.f32.mrb[0].mxu0
        %v5529 = vpop.f32.mrb[0].mxu0
        %v5530 = vadd.f32 0.0, %v5529
        %v5531 = vpop.f32.mrb[0].mxu0
        %5532 = vmatprep.mubr.bf16.mxu0 0
        %5533 = vmatmul.mubr.bf16.gmra.mrb[0].mxu0 %v5413
        %v5534 = vpop.f32.mrb[0].mxu0
        %v5535 = vadd.f32 0.0, %v5534
        %v5536 = vpop.f32.mrb[0].mxu0
        %v5537 = vpop.f32.mrb[0].mxu0
        %v5538 = vadd.f32 0.0, %v5537
        %v5539 = vpop.f32.mrb[0].mxu0
        %5540 = vmatprep.mubr.bf16.mxu0 0
        %5541 = vmatmul.mubr.bf16.gmra.mrb[0].mxu0 %v5414
        %v5542 = vpop.f32.mrb[0].mxu0
        %v5543 = vadd.f32 0.0, %v5542
        %v5544 = vpop.f32.mrb[0].mxu0
        %v5545 = vpop.f32.mrb[0].mxu0
        %v5546 = vadd.f32 0.0, %v5545
        %v5547 = vpop.f32.mrb[0].mxu0
        %5548 = vmatprep.mubr.bf16.mxu0 0
        %5549 = vmatmul.mubr.bf16.gmra.mrb[0].mxu0 %v5415
        %v5550 = vpop.f32.mrb[0].mxu0
        %v5551 = vadd.f32 0.0, %v5550
        %v5552 = vpop.f32.mrb[0].mxu0
        %v5553 = vpop.f32.mrb[0].mxu0
        %v5554 = vadd.f32 0.0, %v5553
        %v5555 = vpop.f32.mrb[0].mxu0
        %5556 = vmatprep.mubr.bf16.mxu0 0
        %5557 = vmatmul.mubr.bf16.gmra.mrb[0].mxu0 %v5416
        %v5558 = vpop.f32.mrb[0].mxu0
        %v5559 = vadd.f32 0.0, %v5558
        %v5560 = vpop.f32.mrb[0].mxu0
        %v5561 = vpop.f32.mrb[0].mxu0
        %v5562 = vadd.f32 0.0, %v5561
        %v5563 = vpop.f32.mrb[0].mxu0
        %5564 = vmatprep.mubr.bf16.mxu0 0
        %5565 = vmatmul.mubr.bf16.gmra.mrb[0].mxu0 %v5417
        %v5566 = vpop.f32.mrb[0].mxu0
        %v5567 = vadd.f32 0.0, %v5566
        %v5568 = vpop.f32.mrb[0].mxu0
        %v5569 = vpop.f32.mrb[0].mxu0
        %v5570 = vadd.f32 0.0, %v5569
        %v5571 = vpop.f32.mrb[0].mxu0
        %5572 = vmatprep.mubr.bf16.mxu0 0
        %5573 = vmatmul.mubr.bf16.gmra.mrb[0].mxu0 %v5418
        %v5574 = vpop.f32.mrb[0].mxu0
        %v5575 = vadd.f32 0.0, %v5574
        %v5576 = vpop.f32.mrb[0].mxu0
        %v5577 = vpop.f32.mrb[0].mxu0
        %v5578 = vadd.f32 0.0, %v5577
        %v5579 = vpop.f32.mrb[0].mxu0
        %5580 = vmatprep.mubr.bf16.mxu0 0
        %5581 = vmatmul.mubr.bf16.gmra.mrb[0].mxu0 %v5419
        %v5582 = vpop.f32.mrb[0].mxu0
        %v5583 = vadd.f32 0.0, %v5582
        %v5584 = vpop.f32.mrb[0].mxu0
        %v5585 = vpop.f32.mrb[0].mxu0
        %v5586 = vadd.f32 0.0, %v5585
        %v5587 = vpop.f32.mrb[0].mxu0
        %5588 = vmatprep.mubr.bf16.mxu0 0
        %5589 = vmatmul.mubr.bf16.gmra.mrb[0].mxu0 %v5420
        %v5590 = vpop.f32.mrb[0].mxu0
        %v5591 = vadd.f32 0.0, %v5590
        %v5592 = vpop.f32.mrb[0].mxu0
        %v5593 = vpop.f32.mrb[0].mxu0
        %v5594 = vadd.f32 0.0, %v5593
        %v5595 = vpop.f32.mrb[0].mxu0
        %5596 = vmatprep.mubr.bf16.mxu0 0
        %5597 = vmatmul.mubr.bf16.gmra.mrb[0].mxu0 %v5421
        %v5598 = vpop.f32.mrb[0].mxu0
        %v5599 = vadd.f32 0.0, %v5598
        %v5600 = vpop.f32.mrb[0].mxu0
        %v5601 = vpop.f32.mrb[0].mxu0
        %v5602 = vadd.f32 0.0, %v5601
        %v5603 = vpop.f32.mrb[0].mxu0
        %5604 = vmatprep.mubr.bf16.mxu0 0
        %5605 = vmatmul.mubr.bf16.gmra.mrb[0].mxu0 %v5422
        %v5606 = vpop.f32.mrb[0].mxu0
        %v5607 = vadd.f32 0.0, %v5606
        %v5608 = vpop.f32.mrb[0].mxu0
        %v5609 = vpop.f32.mrb[0].mxu0
        %v5610 = vadd.f32 0.0, %v5609
        %v5611 = vpop.f32.mrb[0].mxu0
        %5612 = vmatprep.mubr.bf16.mxu0 0
        %5613 = vmatmul.mubr.bf16.gmra.mrb[0].mxu0 %v5423
        %v5614 = vpop.f32.mrb[0].mxu0
        %v5615 = vadd.f32 0.0, %v5614
        %v5616 = vpop.f32.mrb[0].mxu0
        %v5617 = vpop.f32.mrb[0].mxu0
        %v5618 = vadd.f32 0.0, %v5617
        %v5619 = vpop.f32.mrb[0].mxu0
        %5620 = vmatprep.mubr.bf16.mxu0 0
        %5621 = vmatmul.mubr.bf16.gmra.mrb[0].mxu0 %v5424
        %v5622 = vpop.f32.mrb[0].mxu0
        %v5623 = vadd.f32 0.0, %v5622
        %v5624 = vpop.f32.mrb[0].mxu0
        %v5625 = vpop.f32.mrb[0].mxu0
        %v5626 = vadd.f32 0.0, %v5625
        %v5627 = vpop.f32.mrb[0].mxu0
        %5628 = vmatprep.mubr.bf16.mxu0 0
        %5629 = vmatmul.mubr.bf16.gmra.mrb[0].mxu0 %v5425
        %v5630 = vpop.f32.mrb[0].mxu0
        %v5631 = vadd.f32 0.0, %v5630
        %v5632 = vpop.f32.mrb[0].mxu0
        %v5633 = vpop.f32.mrb[0].mxu0
        %v5634 = vadd.f32 0.0, %v5633
        %v5635 = vpop.f32.mrb[0].mxu0
        %5636 = vmatprep.mubr.bf16.mxu0 0
        %5637 = vmatmul.mubr.bf16.gmra.mrb[0].mxu0 %v5426
        %v5638 = vpop.f32.mrb[0].mxu0
        %v5639 = vadd.f32 0.0, %v5638
        %v5640 = vpop.f32.mrb[0].mxu0
        %v5641 = vpop.f32.mrb[0].mxu0
        %v5642 = vadd.f32 0.0, %v5641
        %v5643 = vpop.f32.mrb[0].mxu0
        %5644 = vmatprep.mubr.bf16.mxu0 0
        %5645 = vmatmul.mubr.bf16.gmra.mrb[0].mxu0 %v5427
        %v5646 = vpop.f32.mrb[0].mxu0
        %v5647 = vadd.f32 0.0, %v5646
        %v5648 = vpop.f32.mrb[0].mxu0
        %v5649 = vpop.f32.mrb[0].mxu0
        %v5650 = vadd.f32 0.0, %v5649
        %v5651 = vpop.f32.mrb[0].mxu0
        %5652 = vdwg.mxu0
        %v5653 = vadd.f32 %v4899, %v5527
        %v5654 = vadd.f32 %v4900, %v5530
        %v5655 = vadd.f32 %v4901, %v5535
        %v5656 = vadd.f32 %v4902, %v5538
        %v5657 = vadd.f32 %v4903, %v5543
        %v5658 = vadd.f32 %v4904, %v5546
        %v5659 = vadd.f32 %v4905, %v5551
        %v5660 = vadd.f32 %v4906, %v5554
        %v5661 = vadd.f32 %v4907, %v5559
        %v5662 = vadd.f32 %v4908, %v5562
        %v5663 = vadd.f32 %v4909, %v5567
        %v5664 = vadd.f32 %v4910, %v5570
        %v5665 = vadd.f32 %v4911, %v5575
        %v5666 = vadd.f32 %v4912, %v5578
        %v5667 = vadd.f32 %v4913, %v5583
        %v5668 = vadd.f32 %v4914, %v5586
        %v5669 = vadd.f32 %v4915, %v5591
        %v5670 = vadd.f32 %v4916, %v5594
        %v5671 = vadd.f32 %v4917, %v5599
        %v5672 = vadd.f32 %v4918, %v5602
        %v5673 = vadd.f32 %v4919, %v5607
        %v5674 = vadd.f32 %v4920, %v5610
        %v5675 = vadd.f32 %v4921, %v5615
        %v5676 = vadd.f32 %v4922, %v5618
        %v5677 = vadd.f32 %v4923, %v5623
        %v5678 = vadd.f32 %v4924, %v5626
        %v5679 = vadd.f32 %v4925, %v5631
        %v5680 = vadd.f32 %v4926, %v5634
        %v5681 = vadd.f32 %v4927, %v5639
        %v5682 = vadd.f32 %v4928, %v5642
        %v5683 = vadd.f32 %v4929, %v5647
        %v5684 = vadd.f32 %v4930, %v5650
        %v5685 = vld [vmem:[%s4544] sm:$0xe]
        %v5686 = vld [vmem:[%s4544 + $0xc] sm:$0xe]
        %v5687 = vld [vmem:[%s4544 + $0x18] sm:$0xe]
        %v5688 = vld [vmem:[%s4544 + $0x24] sm:$0xe]
        %v5689 = vld [vmem:[%s4544 + $0x30] sm:$0xe]
        %v5690 = vld [vmem:[%s4544 + $0x3c] sm:$0xe]
        %v5691 = vld [vmem:[%s4544 + $0x48] sm:$0xe]
        %v5692 = vld [vmem:[%s4544 + $0x54] sm:$0xe]
        %v5693 = vld [vmem:[%s4544 + $0x60] sm:$0xe]
        %v5694 = vld [vmem:[%s4544 + $0x6c] sm:$0xe]
        %v5695 = vld [vmem:[%s4544 + $0x78] sm:$0xe]
        %v5696 = vld [vmem:[%s4544 + $0x84] sm:$0xe]
        %v5697 = vld [vmem:[%s4544 + $0x90] sm:$0xe]
        %v5698 = vld [vmem:[%s4544 + $0x9c] sm:$0xe]
        %v5699 = vld [vmem:[%s4544 + $0xa8] sm:$0xe]
        %v5700 = vld [vmem:[%s4544 + $0xb4] sm:$0xe]
        %v5749 = vrot.slane %v5685, 5
        %v5750 = vrot.slane %v5749, 4
        %v5751 = vrot.slane %v4932, 5
        %v5752 = vsel %vm2471, %v5750, %v5751
        %v5753 = vrot.slane %v5751, 4
        %v5754 = vrot.slane %v4933, 5
        %v5755 = vsel %vm2471, %v5753, %v5754
        %v5756 = vrot.slane %v5686, 5
        %v5757 = vrot.slane %v5756, 4
        %v5758 = vrot.slane %v4935, 5
        %v5759 = vsel %vm2471, %v5757, %v5758
        %v5760 = vrot.slane %v5758, 4
        %v5761 = vrot.slane %v4936, 5
        %v5762 = vsel %vm2471, %v5760, %v5761
        %v5763 = vrot.slane %v5687, 5
        %v5764 = vrot.slane %v5763, 4
        %v5765 = vrot.slane %v4938, 5
        %v5766 = vsel %vm2471, %v5764, %v5765
        %v5767 = vrot.slane %v5765, 4
        %v5768 = vrot.slane %v4939, 5
        %v5769 = vsel %vm2471, %v5767, %v5768
        %v5770 = vrot.slane %v5688, 5
        %v5771 = vrot.slane %v5770, 4
        %v5772 = vrot.slane %v4941, 5
        %v5773 = vsel %vm2471, %v5771, %v5772
        %v5774 = vrot.slane %v5772, 4
        %v5775 = vrot.slane %v4942, 5
        %v5776 = vsel %vm2471, %v5774, %v5775
        %v5777 = vrot.slane %v5689, 5
        %v5778 = vrot.slane %v5777, 4
        %v5779 = vrot.slane %v4944, 5
        %v5780 = vsel %vm2471, %v5778, %v5779
        %v5781 = vrot.slane %v5779, 4
        %v5782 = vrot.slane %v4945, 5
        %v5783 = vsel %vm2471, %v5781, %v5782
        %v5784 = vrot.slane %v5690, 5
        %v5785 = vrot.slane %v5784, 4
        %v5786 = vrot.slane %v4947, 5
        %v5787 = vsel %vm2471, %v5785, %v5786
        %v5788 = vrot.slane %v5786, 4
        %v5789 = vrot.slane %v4948, 5
        %v5790 = vsel %vm2471, %v5788, %v5789
        %v5791 = vrot.slane %v5691, 5
        %v5792 = vrot.slane %v5791, 4
        %v5793 = vrot.slane %v4950, 5
        %v5794 = vsel %vm2471, %v5792, %v5793
        %v5795 = vrot.slane %v5793, 4
        %v5796 = vrot.slane %v4951, 5
        %v5797 = vsel %vm2471, %v5795, %v5796
        %v5798 = vrot.slane %v5692, 5
        %v5799 = vrot.slane %v5798, 4
        %v5800 = vrot.slane %v4953, 5
        %v5801 = vsel %vm2471, %v5799, %v5800
        %v5802 = vrot.slane %v5800, 4
        %v5803 = vrot.slane %v4954, 5
        %v5804 = vsel %vm2471, %v5802, %v5803
        %v5805 = vrot.slane %v5693, 5
        %v5806 = vrot.slane %v5805, 4
        %v5807 = vrot.slane %v4956, 5
        %v5808 = vsel %vm2471, %v5806, %v5807
        %v5809 = vrot.slane %v5807, 4
        %v5810 = vrot.slane %v4957, 5
        %v5811 = vsel %vm2471, %v5809, %v5810
        %v5812 = vrot.slane %v5694, 5
        %v5813 = vrot.slane %v5812, 4
        %v5814 = vrot.slane %v4959, 5
        %v5815 = vsel %vm2471, %v5813, %v5814
        %v5816 = vrot.slane %v5814, 4
        %v5817 = vrot.slane %v4960, 5
        %v5818 = vsel %vm2471, %v5816, %v5817
        %v5819 = vrot.slane %v5695, 5
        %v5820 = vrot.slane %v5819, 4
        %v5821 = vrot.slane %v4962, 5
        %v5822 = vsel %vm2471, %v5820, %v5821
        %v5823 = vrot.slane %v5821, 4
        %v5824 = vrot.slane %v4963, 5
        %v5825 = vsel %vm2471, %v5823, %v5824
        %v5826 = vrot.slane %v5696, 5
        %v5827 = vrot.slane %v5826, 4
        %v5828 = vrot.slane %v4965, 5
        %v5829 = vsel %vm2471, %v5827, %v5828
        %v5830 = vrot.slane %v5828, 4
        %v5831 = vrot.slane %v4966, 5
        %v5832 = vsel %vm2471, %v5830, %v5831
        %v5833 = vrot.slane %v5697, 5
        %v5834 = vrot.slane %v5833, 4
        %v5835 = vrot.slane %v4968, 5
        %v5836 = vsel %vm2471, %v5834, %v5835
        %v5837 = vrot.slane %v5835, 4
        %v5838 = vrot.slane %v4969, 5
        %v5839 = vsel %vm2471, %v5837, %v5838
        %v5840 = vrot.slane %v5698, 5
        %v5841 = vrot.slane %v5840, 4
        %v5842 = vrot.slane %v4971, 5
        %v5843 = vsel %vm2471, %v5841, %v5842
        %v5844 = vrot.slane %v5842, 4
        %v5845 = vrot.slane %v4972, 5
        %v5846 = vsel %vm2471, %v5844, %v5845
        %v5847 = vrot.slane %v5699, 5
        %v5848 = vrot.slane %v5847, 4
        %v5849 = vrot.slane %v4974, 5
        %v5850 = vsel %vm2471, %v5848, %v5849
        %v5851 = vrot.slane %v5849, 4
        %v5852 = vrot.slane %v4975, 5
        %v5853 = vsel %vm2471, %v5851, %v5852
        %v5854 = vrot.slane %v5700, 5
        %v5855 = vrot.slane %v5854, 4
        %v5856 = vrot.slane %v4977, 5
        %v5857 = vsel %vm2471, %v5855, %v5856
        %v5858 = vrot.slane %v5856, 4
        %v5859 = vrot.slane %v4978, 5
        %v5860 = vsel %vm2471, %v5858, %v5859
        %s5861 = scalar_lea.vmem [#allocation8], 512
        %v5862 = vld [vmem:[%s5861] sm:$0xf]
        %v5863 = vld [vmem:[%s5861 + $0x4] sm:$0xf]
        %v5864 = vld [vmem:[%s5861 + $0x8] sm:$0xf]
        %v5865 = vld [vmem:[%s5861 + $0xc] sm:$0xf]
        %v5866 = vld [vmem:[%s5861 + $0x10] sm:$0xf]
        %v5867 = vld [vmem:[%s5861 + $0x14] sm:$0xf]
        %v5868 = vld [vmem:[%s5861 + $0x18] sm:$0xf]
        %v5869 = vld [vmem:[%s5861 + $0x1c] sm:$0xf]
        %v5870 = vld [vmem:[%s5861 + $0x20] sm:$0xf]
        %v5871 = vld [vmem:[%s5861 + $0x24] sm:$0xf]
        %v5872 = vld [vmem:[%s5861 + $0x28] sm:$0xf]
        %v5873 = vld [vmem:[%s5861 + $0x2c] sm:$0xf]
        %v5874 = vld [vmem:[%s5861 + $0x30] sm:$0xf]
        %v5875 = vld [vmem:[%s5861 + $0x34] sm:$0xf]
        %v5876 = vld [vmem:[%s5861 + $0x38] sm:$0xf]
        %v5877 = vld [vmem:[%s5861 + $0x3c] sm:$0xf]
        %v5878 = vunpack.c.l.b16 %v5752
        %v5879 = vunpack.c.l.b16 %v5755
        %v5880 = vunpack.c.l.b16 %v5759
        %v5881 = vunpack.c.l.b16 %v5762
        %v5882 = vunpack.c.l.b16 %v5766
        %v5883 = vunpack.c.l.b16 %v5769
        %v5884 = vunpack.c.l.b16 %v5773
        %v5885 = vunpack.c.l.b16 %v5776
        %v5886 = vunpack.c.l.b16 %v5780
        %v5887 = vunpack.c.l.b16 %v5783
        %v5888 = vunpack.c.l.b16 %v5787
        %v5889 = vunpack.c.l.b16 %v5790
        %v5890 = vunpack.c.l.b16 %v5794
        %v5891 = vunpack.c.l.b16 %v5797
        %v5892 = vunpack.c.l.b16 %v5801
        %v5893 = vunpack.c.l.b16 %v5804
        %v5894 = vunpack.c.l.b16 %v5808
        %v5895 = vunpack.c.l.b16 %v5811
        %v5896 = vunpack.c.l.b16 %v5815
        %v5897 = vunpack.c.l.b16 %v5818
        %v5898 = vunpack.c.l.b16 %v5822
        %v5899 = vunpack.c.l.b16 %v5825
        %v5900 = vunpack.c.l.b16 %v5829
        %v5901 = vunpack.c.l.b16 %v5832
        %v5902 = vunpack.c.l.b16 %v5836
        %v5903 = vunpack.c.l.b16 %v5839
        %v5904 = vunpack.c.l.b16 %v5843
        %v5905 = vunpack.c.l.b16 %v5846
        %v5906 = vunpack.c.l.b16 %v5850
        %v5907 = vunpack.c.l.b16 %v5853
        %v5908 = vunpack.c.l.b16 %v5857
        %v5909 = vunpack.c.l.b16 %v5860
        %v5910 = vpack.c.b16 %v5879, %v5878
        %v5911 = vpack.c.b16 %v5881, %v5880
        %v5912 = vpack.c.b16 %v5883, %v5882
        %v5913 = vpack.c.b16 %v5885, %v5884
        %v5914 = vpack.c.b16 %v5887, %v5886
        %v5915 = vpack.c.b16 %v5889, %v5888
        %v5916 = vpack.c.b16 %v5891, %v5890
        %v5917 = vpack.c.b16 %v5893, %v5892
        %v5918 = vpack.c.b16 %v5895, %v5894
        %v5919 = vpack.c.b16 %v5897, %v5896
        %v5920 = vpack.c.b16 %v5899, %v5898
        %v5921 = vpack.c.b16 %v5901, %v5900
        %v5922 = vpack.c.b16 %v5903, %v5902
        %v5923 = vpack.c.b16 %v5905, %v5904
        %v5924 = vpack.c.b16 %v5907, %v5906
        %v5925 = vpack.c.b16 %v5909, %v5908
        %v5958 = vunpack.c.l.b16 %v5862
        %v5959 = vunpack.c.l.b16 %v5863
        %v5960 = vunpack.c.l.b16 %v5864
        %v5961 = vunpack.c.l.b16 %v5865
        %v5962 = vunpack.c.l.b16 %v5866
        %v5963 = vunpack.c.l.b16 %v5867
        %v5964 = vunpack.c.l.b16 %v5868
        %v5965 = vunpack.c.l.b16 %v5869
        %v5966 = vunpack.c.l.b16 %v5870
        %v5967 = vunpack.c.l.b16 %v5871
        %v5968 = vunpack.c.l.b16 %v5872
        %v5969 = vunpack.c.l.b16 %v5873
        %v5970 = vunpack.c.l.b16 %v5874
        %v5971 = vunpack.c.l.b16 %v5875
        %v5972 = vunpack.c.l.b16 %v5876
        %v5973 = vunpack.c.l.b16 %v5877
        %v5974 = vpack.c.b16 %v5959, %v5958
        %v5975 = vpack.c.b16 %v5961, %v5960
        %v5976 = vpack.c.b16 %v5963, %v5962
        %v5977 = vpack.c.b16 %v5965, %v5964
        %v5978 = vpack.c.b16 %v5967, %v5966
        %v5979 = vpack.c.b16 %v5969, %v5968
        %v5980 = vpack.c.b16 %v5971, %v5970
        %v5981 = vpack.c.b16 %v5973, %v5972
        %5990 = vmatprep.subr.bf16.mxu0 0
        %5991 = vmatpush1.bf16.msra.mxu0 %v5974
        %5992 = vmatprep.subr.bf16.mxu0 0
        %5993 = vmatpush1.bf16.msra.mxu0 %v5975
        %5994 = vmatprep.subr.bf16.mxu0 0
        %5995 = vmatpush1.bf16.msra.mxu0 %v5976
        %5996 = vmatprep.subr.bf16.mxu0 0
        %5997 = vmatpush1.bf16.msra.mxu0 %v5977
        %5998 = vmatprep.subr.bf16.mxu0 0
        %5999 = vmatpush1.bf16.msra.mxu0 %v5978
        %6000 = vmatprep.subr.bf16.mxu0 0
        %6001 = vmatpush1.bf16.msra.mxu0 %v5979
        %6002 = vmatprep.subr.bf16.mxu0 0
        %6003 = vmatpush1.bf16.msra.mxu0 %v5980
        %6004 = vmatprep.subr.bf16.mxu0 0
        %6005 = vmatpush1.bf16.msra.mxu0 %v5981
        %6006 = vmatprep.subr.bf16.mxu0 0
        %6007 = vmatpush1.bf16.msra.mxu0 0
        %6008 = vmatprep.subr.bf16.mxu0 0
        %6009 = vmatpush1.bf16.msra.mxu0 0
        %6010 = vmatprep.subr.bf16.mxu0 0
        %6011 = vmatpush1.bf16.msra.mxu0 0
        %6012 = vmatprep.subr.bf16.mxu0 0
        %6013 = vmatpush1.bf16.msra.mxu0 0
        %6014 = vmatprep.subr.bf16.mxu0 0
        %6015 = vmatpush1.bf16.msra.mxu0 0
        %6016 = vmatprep.subr.bf16.mxu0 0
        %6017 = vmatpush1.bf16.msra.mxu0 0
        %6018 = vmatprep.subr.bf16.mxu0 0
        %6019 = vmatpush1.bf16.msra.mxu0 0
        %6020 = vmatprep.subr.bf16.mxu0 0
        %6021 = vmatpush1.bf16.msra.mxu0 0
        %6022 = vmatprep.mubr.bf16.mxu0 0
        %6023 = vmatmul.mubr.bf16.gmra.mrb[0].mxu0 %v5910
        %v6024 = vpop.f32.mrb[0].mxu0
        %v6025 = vadd.f32 0.0, %v6024
        %v6026 = vpop.f32.mrb[0].mxu0
        %v6027 = vpop.f32.mrb[0].mxu0
        %v6028 = vadd.f32 0.0, %v6027
        %v6029 = vpop.f32.mrb[0].mxu0
        %6030 = vmatprep.mubr.bf16.mxu0 0
        %6031 = vmatmul.mubr.bf16.gmra.mrb[0].mxu0 %v5911
        %v6032 = vpop.f32.mrb[0].mxu0
        %v6033 = vadd.f32 0.0, %v6032
        %v6034 = vpop.f32.mrb[0].mxu0
        %v6035 = vpop.f32.mrb[0].mxu0
        %v6036 = vadd.f32 0.0, %v6035
        %v6037 = vpop.f32.mrb[0].mxu0
        %6038 = vmatprep.mubr.bf16.mxu0 0
        %6039 = vmatmul.mubr.bf16.gmra.mrb[0].mxu0 %v5912
        %v6040 = vpop.f32.mrb[0].mxu0
        %v6041 = vadd.f32 0.0, %v6040
        %v6042 = vpop.f32.mrb[0].mxu0
        %v6043 = vpop.f32.mrb[0].mxu0
        %v6044 = vadd.f32 0.0, %v6043
        %v6045 = vpop.f32.mrb[0].mxu0
        %6046 = vmatprep.mubr.bf16.mxu0 0
        %6047 = vmatmul.mubr.bf16.gmra.mrb[0].mxu0 %v5913
        %v6048 = vpop.f32.mrb[0].mxu0
        %v6049 = vadd.f32 0.0, %v6048
        %v6050 = vpop.f32.mrb[0].mxu0
        %v6051 = vpop.f32.mrb[0].mxu0
        %v6052 = vadd.f32 0.0, %v6051
        %v6053 = vpop.f32.mrb[0].mxu0
        %6054 = vmatprep.mubr.bf16.mxu0 0
        %6055 = vmatmul.mubr.bf16.gmra.mrb[0].mxu0 %v5914
        %v6056 = vpop.f32.mrb[0].mxu0
        %v6057 = vadd.f32 0.0, %v6056
        %v6058 = vpop.f32.mrb[0].mxu0
        %v6059 = vpop.f32.mrb[0].mxu0
        %v6060 = vadd.f32 0.0, %v6059
        %v6061 = vpop.f32.mrb[0].mxu0
        %6062 = vmatprep.mubr.bf16.mxu0 0
        %6063 = vmatmul.mubr.bf16.gmra.mrb[0].mxu0 %v5915
        %v6064 = vpop.f32.mrb[0].mxu0
        %v6065 = vadd.f32 0.0, %v6064
        %v6066 = vpop.f32.mrb[0].mxu0
        %v6067 = vpop.f32.mrb[0].mxu0
        %v6068 = vadd.f32 0.0, %v6067
        %v6069 = vpop.f32.mrb[0].mxu0
        %6070 = vmatprep.mubr.bf16.mxu0 0
        %6071 = vmatmul.mubr.bf16.gmra.mrb[0].mxu0 %v5916
        %v6072 = vpop.f32.mrb[0].mxu0
        %v6073 = vadd.f32 0.0, %v6072
        %v6074 = vpop.f32.mrb[0].mxu0
        %v6075 = vpop.f32.mrb[0].mxu0
        %v6076 = vadd.f32 0.0, %v6075
        %v6077 = vpop.f32.mrb[0].mxu0
        %6078 = vmatprep.mubr.bf16.mxu0 0
        %6079 = vmatmul.mubr.bf16.gmra.mrb[0].mxu0 %v5917
        %v6080 = vpop.f32.mrb[0].mxu0
        %v6081 = vadd.f32 0.0, %v6080
        %v6082 = vpop.f32.mrb[0].mxu0
        %v6083 = vpop.f32.mrb[0].mxu0
        %v6084 = vadd.f32 0.0, %v6083
        %v6085 = vpop.f32.mrb[0].mxu0
        %6086 = vmatprep.mubr.bf16.mxu0 0
        %6087 = vmatmul.mubr.bf16.gmra.mrb[0].mxu0 %v5918
        %v6088 = vpop.f32.mrb[0].mxu0
        %v6089 = vadd.f32 0.0, %v6088
        %v6090 = vpop.f32.mrb[0].mxu0
        %v6091 = vpop.f32.mrb[0].mxu0
        %v6092 = vadd.f32 0.0, %v6091
        %v6093 = vpop.f32.mrb[0].mxu0
        %6094 = vmatprep.mubr.bf16.mxu0 0
        %6095 = vmatmul.mubr.bf16.gmra.mrb[0].mxu0 %v5919
        %v6096 = vpop.f32.mrb[0].mxu0
        %v6097 = vadd.f32 0.0, %v6096
        %v6098 = vpop.f32.mrb[0].mxu0
        %v6099 = vpop.f32.mrb[0].mxu0
        %v6100 = vadd.f32 0.0, %v6099
        %v6101 = vpop.f32.mrb[0].mxu0
        %6102 = vmatprep.mubr.bf16.mxu0 0
        %6103 = vmatmul.mubr.bf16.gmra.mrb[0].mxu0 %v5920
        %v6104 = vpop.f32.mrb[0].mxu0
        %v6105 = vadd.f32 0.0, %v6104
        %v6106 = vpop.f32.mrb[0].mxu0
        %v6107 = vpop.f32.mrb[0].mxu0
        %v6108 = vadd.f32 0.0, %v6107
        %v6109 = vpop.f32.mrb[0].mxu0
        %6110 = vmatprep.mubr.bf16.mxu0 0
        %6111 = vmatmul.mubr.bf16.gmra.mrb[0].mxu0 %v5921
        %v6112 = vpop.f32.mrb[0].mxu0
        %v6113 = vadd.f32 0.0, %v6112
        %v6114 = vpop.f32.mrb[0].mxu0
        %v6115 = vpop.f32.mrb[0].mxu0
        %v6116 = vadd.f32 0.0, %v6115
        %v6117 = vpop.f32.mrb[0].mxu0
        %6118 = vmatprep.mubr.bf16.mxu0 0
        %6119 = vmatmul.mubr.bf16.gmra.mrb[0].mxu0 %v5922
        %v6120 = vpop.f32.mrb[0].mxu0
        %v6121 = vadd.f32 0.0, %v6120
        %v6122 = vpop.f32.mrb[0].mxu0
        %v6123 = vpop.f32.mrb[0].mxu0
        %v6124 = vadd.f32 0.0, %v6123
        %v6125 = vpop.f32.mrb[0].mxu0
        %6126 = vmatprep.mubr.bf16.mxu0 0
        %6127 = vmatmul.mubr.bf16.gmra.mrb[0].mxu0 %v5923
        %v6128 = vpop.f32.mrb[0].mxu0
        %v6129 = vadd.f32 0.0, %v6128
        %v6130 = vpop.f32.mrb[0].mxu0
        %v6131 = vpop.f32.mrb[0].mxu0
        %v6132 = vadd.f32 0.0, %v6131
        %v6133 = vpop.f32.mrb[0].mxu0
        %6134 = vmatprep.mubr.bf16.mxu0 0
        %6135 = vmatmul.mubr.bf16.gmra.mrb[0].mxu0 %v5924
        %v6136 = vpop.f32.mrb[0].mxu0
        %v6137 = vadd.f32 0.0, %v6136
        %v6138 = vpop.f32.mrb[0].mxu0
        %v6139 = vpop.f32.mrb[0].mxu0
        %v6140 = vadd.f32 0.0, %v6139
        %v6141 = vpop.f32.mrb[0].mxu0
        %6142 = vmatprep.mubr.bf16.mxu0 0
        %6143 = vmatmul.mubr.bf16.gmra.mrb[0].mxu0 %v5925
        %v6144 = vpop.f32.mrb[0].mxu0
        %v6145 = vadd.f32 0.0, %v6144
        %v6146 = vpop.f32.mrb[0].mxu0
        %v6147 = vpop.f32.mrb[0].mxu0
        %v6148 = vadd.f32 0.0, %v6147
        %v6149 = vpop.f32.mrb[0].mxu0
        %6150 = vdwg.mxu0
        %v6151 = vadd.f32 %v5653, %v6025
        %v6152 = vadd.f32 %v5654, %v6028
        %v6153 = vadd.f32 %v5655, %v6033
        %v6154 = vadd.f32 %v5656, %v6036
        %v6155 = vadd.f32 %v5657, %v6041
        %v6156 = vadd.f32 %v5658, %v6044
        %v6157 = vadd.f32 %v5659, %v6049
        %v6158 = vadd.f32 %v5660, %v6052
        %v6159 = vadd.f32 %v5661, %v6057
        %v6160 = vadd.f32 %v5662, %v6060
        %v6161 = vadd.f32 %v5663, %v6065
        %v6162 = vadd.f32 %v5664, %v6068
        %v6163 = vadd.f32 %v5665, %v6073
        %v6164 = vadd.f32 %v5666, %v6076
        %v6165 = vadd.f32 %v5667, %v6081
        %v6166 = vadd.f32 %v5668, %v6084
        %v6167 = vadd.f32 %v5669, %v6089
        %v6168 = vadd.f32 %v5670, %v6092
        %v6169 = vadd.f32 %v5671, %v6097
        %v6170 = vadd.f32 %v5672, %v6100
        %v6171 = vadd.f32 %v5673, %v6105
        %v6172 = vadd.f32 %v5674, %v6108
        %v6173 = vadd.f32 %v5675, %v6113
        %v6174 = vadd.f32 %v5676, %v6116
        %v6175 = vadd.f32 %v5677, %v6121
        %v6176 = vadd.f32 %v5678, %v6124
        %v6177 = vadd.f32 %v5679, %v6129
        %v6178 = vadd.f32 %v5680, %v6132
        %v6179 = vadd.f32 %v5681, %v6137
        %v6180 = vadd.f32 %v5682, %v6140
        %v6181 = vadd.f32 %v5683, %v6145
        %v6182 = vadd.f32 %v5684, %v6148
        %v6183 = vld [vmem:[%s4] sm:$0x1]
        %v6185 = vlaneseq
        %v6186 = vshrl.u32 %v6185, 7
        %v6187 = vsub.s32 0, %v6186
        %v6188 = vrot.slane %v6183, %v6187
        %v6190 = vadd.f32 %v6151, %v6188
        %v6191 = vadd.f32 %v6152, %v6188
        %v6192 = vadd.f32 %v6153, %v6188
        %v6193 = vadd.f32 %v6154, %v6188
        %v6194 = vadd.f32 %v6155, %v6188
        %v6195 = vadd.f32 %v6156, %v6188
        %v6196 = vadd.f32 %v6157, %v6188
        %v6197 = vadd.f32 %v6158, %v6188
        %v6198 = vadd.f32 %v6159, %v6188
        %v6199 = vadd.f32 %v6160, %v6188
        %v6200 = vadd.f32 %v6161, %v6188
        %v6201 = vadd.f32 %v6162, %v6188
        %v6202 = vadd.f32 %v6163, %v6188
        %v6203 = vadd.f32 %v6164, %v6188
        %v6204 = vadd.f32 %v6165, %v6188
        %v6205 = vadd.f32 %v6166, %v6188
        %v6206 = vadd.f32 %v6167, %v6188
        %v6207 = vadd.f32 %v6168, %v6188
        %v6208 = vadd.f32 %v6169, %v6188
        %v6209 = vadd.f32 %v6170, %v6188
        %v6210 = vadd.f32 %v6171, %v6188
        %v6211 = vadd.f32 %v6172, %v6188
        %v6212 = vadd.f32 %v6173, %v6188
        %v6213 = vadd.f32 %v6174, %v6188
        %v6214 = vadd.f32 %v6175, %v6188
        %v6215 = vadd.f32 %v6176, %v6188
        %v6216 = vadd.f32 %v6177, %v6188
        %v6217 = vadd.f32 %v6178, %v6188
        %v6218 = vadd.f32 %v6179, %v6188
        %v6219 = vadd.f32 %v6180, %v6188
        %v6220 = vadd.f32 %v6181, %v6188
        %v6221 = vadd.f32 %v6182, %v6188
        %v6222 = vmax.f32 %v6190, 0.0
        %v6223 = vmax.f32 %v6191, 0.0
        %v6224 = vmax.f32 %v6192, 0.0
        %v6225 = vmax.f32 %v6193, 0.0
        %v6226 = vmax.f32 %v6194, 0.0
        %v6227 = vmax.f32 %v6195, 0.0
        %v6228 = vmax.f32 %v6196, 0.0
        %v6229 = vmax.f32 %v6197, 0.0
        %v6230 = vmax.f32 %v6198, 0.0
        %v6231 = vmax.f32 %v6199, 0.0
        %v6232 = vmax.f32 %v6200, 0.0
        %v6233 = vmax.f32 %v6201, 0.0
        %v6234 = vmax.f32 %v6202, 0.0
        %v6235 = vmax.f32 %v6203, 0.0
        %v6236 = vmax.f32 %v6204, 0.0
        %v6237 = vmax.f32 %v6205, 0.0
        %v6238 = vmax.f32 %v6206, 0.0
        %v6239 = vmax.f32 %v6207, 0.0
        %v6240 = vmax.f32 %v6208, 0.0
        %v6241 = vmax.f32 %v6209, 0.0
        %v6242 = vmax.f32 %v6210, 0.0
        %v6243 = vmax.f32 %v6211, 0.0
        %v6244 = vmax.f32 %v6212, 0.0
        %v6245 = vmax.f32 %v6213, 0.0
        %v6246 = vmax.f32 %v6214, 0.0
        %v6247 = vmax.f32 %v6215, 0.0
        %v6248 = vmax.f32 %v6216, 0.0
        %v6249 = vmax.f32 %v6217, 0.0
        %v6250 = vmax.f32 %v6218, 0.0
        %v6251 = vmax.f32 %v6219, 0.0
        %v6252 = vmax.f32 %v6220, 0.0
        %v6253 = vmax.f32 %v6221, 0.0
        %v6254 = vpack.c.bf16 %v6223, %v6222
        %v6255 = vpack.c.bf16 %v6225, %v6224
        %v6256 = vpack.c.bf16 %v6227, %v6226
        %v6257 = vpack.c.bf16 %v6229, %v6228
        %v6258 = vpack.c.bf16 %v6231, %v6230
        %v6259 = vpack.c.bf16 %v6233, %v6232
        %v6260 = vpack.c.bf16 %v6235, %v6234
        %v6261 = vpack.c.bf16 %v6237, %v6236
        %v6262 = vpack.c.bf16 %v6239, %v6238
        %v6263 = vpack.c.bf16 %v6241, %v6240
        %v6264 = vpack.c.bf16 %v6243, %v6242
        %v6265 = vpack.c.bf16 %v6245, %v6244
        %v6266 = vpack.c.bf16 %v6247, %v6246
        %v6267 = vpack.c.bf16 %v6249, %v6248
        %v6268 = vpack.c.bf16 %v6251, %v6250
        %v6269 = vpack.c.bf16 %v6253, %v6252
        %v6270 = vld [vmem:[#allocation9] sm:$0xf]
        %v6271 = vld [vmem:[#allocation9 + $0x4] sm:$0xf]
        %v6272 = vld [vmem:[#allocation9 + $0x8] sm:$0xf]
        %v6273 = vld [vmem:[#allocation9 + $0xc] sm:$0xf]
        %v6274 = vld [vmem:[#allocation9 + $0x10] sm:$0xf]
        %v6275 = vld [vmem:[#allocation9 + $0x14] sm:$0xf]
        %v6276 = vld [vmem:[#allocation9 + $0x18] sm:$0xf]
        %v6277 = vld [vmem:[#allocation9 + $0x1c] sm:$0xf]
        %v6278 = vld [vmem:[#allocation9 + $0x20] sm:$0xf]
        %v6279 = vld [vmem:[#allocation9 + $0x24] sm:$0xf]
        %v6280 = vld [vmem:[#allocation9 + $0x28] sm:$0xf]
        %v6281 = vld [vmem:[#allocation9 + $0x2c] sm:$0xf]
        %v6282 = vld [vmem:[#allocation9 + $0x30] sm:$0xf]
        %v6283 = vld [vmem:[#allocation9 + $0x34] sm:$0xf]
        %v6284 = vld [vmem:[#allocation9 + $0x38] sm:$0xf]
        %v6285 = vld [vmem:[#allocation9 + $0x3c] sm:$0xf]
        %v6286 = vld [vmem:[%s6] sm:$0x1]
        %v6288 = vlaneseq
        %v6289 = vshrl.u32 %v6288, 7
        %v6290 = vsub.s32 0, %v6289
        %v6291 = vrot.slane %v6286, %v6290
        %v6309 = vunpack.c.l.b16 %v6270
        %v6310 = vunpack.c.l.b16 %v6271
        %v6311 = vunpack.c.l.b16 %v6272
        %v6312 = vunpack.c.l.b16 %v6273
        %v6313 = vunpack.c.l.b16 %v6274
        %v6314 = vunpack.c.l.b16 %v6275
        %v6315 = vunpack.c.l.b16 %v6276
        %v6316 = vunpack.c.l.b16 %v6277
        %v6317 = vunpack.c.l.b16 %v6278
        %v6318 = vunpack.c.l.b16 %v6279
        %v6319 = vunpack.c.l.b16 %v6280
        %v6320 = vunpack.c.l.b16 %v6281
        %v6321 = vunpack.c.l.b16 %v6282
        %v6322 = vunpack.c.l.b16 %v6283
        %v6323 = vunpack.c.l.b16 %v6284
        %v6324 = vunpack.c.l.b16 %v6285
        %v6325 = vpack.c.b16 %v6310, %v6309
        %v6326 = vpack.c.b16 %v6312, %v6311
        %v6327 = vpack.c.b16 %v6314, %v6313
        %v6328 = vpack.c.b16 %v6316, %v6315
        %v6329 = vpack.c.b16 %v6318, %v6317
        %v6330 = vpack.c.b16 %v6320, %v6319
        %v6331 = vpack.c.b16 %v6322, %v6321
        %v6332 = vpack.c.b16 %v6324, %v6323
        %6341 = vmatprep.subr.bf16.mxu0 0
        %6342 = vmatpush1.bf16.msra.mxu0 %v6325
        %6343 = vmatprep.subr.bf16.mxu0 0
        %6344 = vmatpush1.bf16.msra.mxu0 %v6326
        %6345 = vmatprep.subr.bf16.mxu0 0
        %6346 = vmatpush1.bf16.msra.mxu0 %v6327
        %6347 = vmatprep.subr.bf16.mxu0 0
        %6348 = vmatpush1.bf16.msra.mxu0 %v6328
        %6349 = vmatprep.subr.bf16.mxu0 0
        %6350 = vmatpush1.bf16.msra.mxu0 %v6329
        %6351 = vmatprep.subr.bf16.mxu0 0
        %6352 = vmatpush1.bf16.msra.mxu0 %v6330
        %6353 = vmatprep.subr.bf16.mxu0 0
        %6354 = vmatpush1.bf16.msra.mxu0 %v6331
        %6355 = vmatprep.subr.bf16.mxu0 0
        %6356 = vmatpush1.bf16.msra.mxu0 %v6332
        %6357 = vmatprep.subr.bf16.mxu0 0
        %6358 = vmatpush1.bf16.msra.mxu0 0
        %6359 = vmatprep.subr.bf16.mxu0 0
        %6360 = vmatpush1.bf16.msra.mxu0 0
        %6361 = vmatprep.subr.bf16.mxu0 0
        %6362 = vmatpush1.bf16.msra.mxu0 0
        %6363 = vmatprep.subr.bf16.mxu0 0
        %6364 = vmatpush1.bf16.msra.mxu0 0
        %6365 = vmatprep.subr.bf16.mxu0 0
        %6366 = vmatpush1.bf16.msra.mxu0 0
        %6367 = vmatprep.subr.bf16.mxu0 0
        %6368 = vmatpush1.bf16.msra.mxu0 0
        %6369 = vmatprep.subr.bf16.mxu0 0
        %6370 = vmatpush1.bf16.msra.mxu0 0
        %6371 = vmatprep.subr.bf16.mxu0 0
        %6372 = vmatpush1.bf16.msra.mxu0 0
        %6373 = vmatprep.mubr.bf16.mxu0 0
        %6374 = vmatmul.mubr.bf16.gmra.mrb[0].mxu0 %v6254
        %v6375 = vpop.f32.mrb[0].mxu0
        %v6376 = vadd.f32 %v6291, %v6375
        %v6377 = vpop.f32.mrb[0].mxu0
        %v6378 = vpop.f32.mrb[0].mxu0
        %v6379 = vadd.f32 %v6291, %v6378
        %v6380 = vpop.f32.mrb[0].mxu0
        %6381 = vmatprep.mubr.bf16.mxu0 0
        %6382 = vmatmul.mubr.bf16.gmra.mrb[0].mxu0 %v6255
        %v6383 = vpop.f32.mrb[0].mxu0
        %v6384 = vadd.f32 %v6291, %v6383
        %v6385 = vpop.f32.mrb[0].mxu0
        %v6386 = vpop.f32.mrb[0].mxu0
        %v6387 = vadd.f32 %v6291, %v6386
        %v6388 = vpop.f32.mrb[0].mxu0
        %6389 = vmatprep.mubr.bf16.mxu0 0
        %6390 = vmatmul.mubr.bf16.gmra.mrb[0].mxu0 %v6256
        %v6391 = vpop.f32.mrb[0].mxu0
        %v6392 = vadd.f32 %v6291, %v6391
        %v6393 = vpop.f32.mrb[0].mxu0
        %v6394 = vpop.f32.mrb[0].mxu0
        %v6395 = vadd.f32 %v6291, %v6394
        %v6396 = vpop.f32.mrb[0].mxu0
        %6397 = vmatprep.mubr.bf16.mxu0 0
        %6398 = vmatmul.mubr.bf16.gmra.mrb[0].mxu0 %v6257
        %v6399 = vpop.f32.mrb[0].mxu0
        %v6400 = vadd.f32 %v6291, %v6399
        %v6401 = vpop.f32.mrb[0].mxu0
        %v6402 = vpop.f32.mrb[0].mxu0
        %v6403 = vadd.f32 %v6291, %v6402
        %v6404 = vpop.f32.mrb[0].mxu0
        %6405 = vmatprep.mubr.bf16.mxu0 0
        %6406 = vmatmul.mubr.bf16.gmra.mrb[0].mxu0 %v6258
        %v6407 = vpop.f32.mrb[0].mxu0
        %v6408 = vadd.f32 %v6291, %v6407
        %v6409 = vpop.f32.mrb[0].mxu0
        %v6410 = vpop.f32.mrb[0].mxu0
        %v6411 = vadd.f32 %v6291, %v6410
        %v6412 = vpop.f32.mrb[0].mxu0
        %6413 = vmatprep.mubr.bf16.mxu0 0
        %6414 = vmatmul.mubr.bf16.gmra.mrb[0].mxu0 %v6259
        %v6415 = vpop.f32.mrb[0].mxu0
        %v6416 = vadd.f32 %v6291, %v6415
        %v6417 = vpop.f32.mrb[0].mxu0
        %v6418 = vpop.f32.mrb[0].mxu0
        %v6419 = vadd.f32 %v6291, %v6418
        %v6420 = vpop.f32.mrb[0].mxu0
        %6421 = vmatprep.mubr.bf16.mxu0 0
        %6422 = vmatmul.mubr.bf16.gmra.mrb[0].mxu0 %v6260
        %v6423 = vpop.f32.mrb[0].mxu0
        %v6424 = vadd.f32 %v6291, %v6423
        %v6425 = vpop.f32.mrb[0].mxu0
        %v6426 = vpop.f32.mrb[0].mxu0
        %v6427 = vadd.f32 %v6291, %v6426
        %v6428 = vpop.f32.mrb[0].mxu0
        %6429 = vmatprep.mubr.bf16.mxu0 0
        %6430 = vmatmul.mubr.bf16.gmra.mrb[0].mxu0 %v6261
        %v6431 = vpop.f32.mrb[0].mxu0
        %v6432 = vadd.f32 %v6291, %v6431
        %v6433 = vpop.f32.mrb[0].mxu0
        %v6434 = vpop.f32.mrb[0].mxu0
        %v6435 = vadd.f32 %v6291, %v6434
        %v6436 = vpop.f32.mrb[0].mxu0
        %6437 = vmatprep.mubr.bf16.mxu0 0
        %6438 = vmatmul.mubr.bf16.gmra.mrb[0].mxu0 %v6262
        %v6439 = vpop.f32.mrb[0].mxu0
        %v6440 = vadd.f32 %v6291, %v6439
        %v6441 = vpop.f32.mrb[0].mxu0
        %v6442 = vpop.f32.mrb[0].mxu0
        %v6443 = vadd.f32 %v6291, %v6442
        %v6444 = vpop.f32.mrb[0].mxu0
        %6445 = vmatprep.mubr.bf16.mxu0 0
        %6446 = vmatmul.mubr.bf16.gmra.mrb[0].mxu0 %v6263
        %v6447 = vpop.f32.mrb[0].mxu0
        %v6448 = vadd.f32 %v6291, %v6447
        %v6449 = vpop.f32.mrb[0].mxu0
        %v6450 = vpop.f32.mrb[0].mxu0
        %v6451 = vadd.f32 %v6291, %v6450
        %v6452 = vpop.f32.mrb[0].mxu0
        %6453 = vmatprep.mubr.bf16.mxu0 0
        %6454 = vmatmul.mubr.bf16.gmra.mrb[0].mxu0 %v6264
        %v6455 = vpop.f32.mrb[0].mxu0
        %v6456 = vadd.f32 %v6291, %v6455
        %v6457 = vpop.f32.mrb[0].mxu0
        %v6458 = vpop.f32.mrb[0].mxu0
        %v6459 = vadd.f32 %v6291, %v6458
        %v6460 = vpop.f32.mrb[0].mxu0
        %6461 = vmatprep.mubr.bf16.mxu0 0
        %6462 = vmatmul.mubr.bf16.gmra.mrb[0].mxu0 %v6265
        %v6463 = vpop.f32.mrb[0].mxu0
        %v6464 = vadd.f32 %v6291, %v6463
        %v6465 = vpop.f32.mrb[0].mxu0
        %v6466 = vpop.f32.mrb[0].mxu0
        %v6467 = vadd.f32 %v6291, %v6466
        %v6468 = vpop.f32.mrb[0].mxu0
        %6469 = vmatprep.mubr.bf16.mxu0 0
        %6470 = vmatmul.mubr.bf16.gmra.mrb[0].mxu0 %v6266
        %v6471 = vpop.f32.mrb[0].mxu0
        %v6472 = vadd.f32 %v6291, %v6471
        %v6473 = vpop.f32.mrb[0].mxu0
        %v6474 = vpop.f32.mrb[0].mxu0
        %v6475 = vadd.f32 %v6291, %v6474
        %v6476 = vpop.f32.mrb[0].mxu0
        %6477 = vmatprep.mubr.bf16.mxu0 0
        %6478 = vmatmul.mubr.bf16.gmra.mrb[0].mxu0 %v6267
        %v6479 = vpop.f32.mrb[0].mxu0
        %v6480 = vadd.f32 %v6291, %v6479
        %v6481 = vpop.f32.mrb[0].mxu0
        %v6482 = vpop.f32.mrb[0].mxu0
        %v6483 = vadd.f32 %v6291, %v6482
        %v6484 = vpop.f32.mrb[0].mxu0
        %6485 = vmatprep.mubr.bf16.mxu0 0
        %6486 = vmatmul.mubr.bf16.gmra.mrb[0].mxu0 %v6268
        %v6487 = vpop.f32.mrb[0].mxu0
        %v6488 = vadd.f32 %v6291, %v6487
        %v6489 = vpop.f32.mrb[0].mxu0
        %v6490 = vpop.f32.mrb[0].mxu0
        %v6491 = vadd.f32 %v6291, %v6490
        %v6492 = vpop.f32.mrb[0].mxu0
        %6493 = vmatprep.mubr.bf16.mxu0 0
        %6494 = vmatmul.mubr.bf16.gmra.mrb[0].mxu0 %v6269
        %v6495 = vpop.f32.mrb[0].mxu0
        %v6496 = vadd.f32 %v6291, %v6495
        %v6497 = vpop.f32.mrb[0].mxu0
        %v6498 = vpop.f32.mrb[0].mxu0
        %v6499 = vadd.f32 %v6291, %v6498
        %v6500 = vpop.f32.mrb[0].mxu0
        %6501 = vdwg.mxu0
        %v6502 = vunpack.c.l.bf16 %v342
        %v6503 = vunpack.c.l.bf16 %v343
        %v6504 = vunpack.c.l.bf16 %v344
        %v6505 = vunpack.c.l.bf16 %v345
        %v6506 = vunpack.c.l.bf16 %v346
        %v6507 = vunpack.c.l.bf16 %v347
        %v6508 = vunpack.c.l.bf16 %v348
        %v6509 = vunpack.c.l.bf16 %v349
        %v6510 = vunpack.c.l.bf16 %v350
        %v6511 = vunpack.c.l.bf16 %v351
        %v6512 = vunpack.c.l.bf16 %v352
        %v6513 = vunpack.c.l.bf16 %v353
        %v6514 = vunpack.c.l.bf16 %v354
        %v6515 = vunpack.c.l.bf16 %v355
        %v6516 = vunpack.c.l.bf16 %v356
        %v6517 = vunpack.c.l.bf16 %v357
        %v6518 = vunpack.c.l.bf16 %v358
        %v6519 = vunpack.c.l.bf16 %v359
        %v6520 = vunpack.c.l.bf16 %v360
        %v6521 = vunpack.c.l.bf16 %v361
        %v6522 = vunpack.c.l.bf16 %v362
        %v6523 = vunpack.c.l.bf16 %v363
        %v6524 = vunpack.c.l.bf16 %v364
        %v6525 = vunpack.c.l.bf16 %v365
        %v6526 = vunpack.c.l.bf16 %v366
        %v6527 = vunpack.c.l.bf16 %v367
        %v6528 = vunpack.c.l.bf16 %v368
        %v6529 = vunpack.c.l.bf16 %v369
        %v6530 = vunpack.c.l.bf16 %v370
        %v6531 = vunpack.c.l.bf16 %v371
        %v6532 = vunpack.c.l.bf16 %v372
        %v6533 = vunpack.c.l.bf16 %v373
        %v6534 = vadd.f32 %v6376, %v6502
        %v6535 = vadd.f32 %v6379, %v6503
        %v6536 = vadd.f32 %v6384, %v6504
        %v6537 = vadd.f32 %v6387, %v6505
        %v6538 = vadd.f32 %v6392, %v6506
        %v6539 = vadd.f32 %v6395, %v6507
        %v6540 = vadd.f32 %v6400, %v6508
        %v6541 = vadd.f32 %v6403, %v6509
        %v6542 = vadd.f32 %v6408, %v6510
        %v6543 = vadd.f32 %v6411, %v6511
        %v6544 = vadd.f32 %v6416, %v6512
        %v6545 = vadd.f32 %v6419, %v6513
        %v6546 = vadd.f32 %v6424, %v6514
        %v6547 = vadd.f32 %v6427, %v6515
        %v6548 = vadd.f32 %v6432, %v6516
        %v6549 = vadd.f32 %v6435, %v6517
        %v6550 = vadd.f32 %v6440, %v6518
        %v6551 = vadd.f32 %v6443, %v6519
        %v6552 = vadd.f32 %v6448, %v6520
        %v6553 = vadd.f32 %v6451, %v6521
        %v6554 = vadd.f32 %v6456, %v6522
        %v6555 = vadd.f32 %v6459, %v6523
        %v6556 = vadd.f32 %v6464, %v6524
        %v6557 = vadd.f32 %v6467, %v6525
        %v6558 = vadd.f32 %v6472, %v6526
        %v6559 = vadd.f32 %v6475, %v6527
        %v6560 = vadd.f32 %v6480, %v6528
        %v6561 = vadd.f32 %v6483, %v6529
        %v6562 = vadd.f32 %v6488, %v6530
        %v6563 = vadd.f32 %v6491, %v6531
        %v6564 = vadd.f32 %v6496, %v6532
        %v6565 = vadd.f32 %v6499, %v6533
        %v6566 = vmax.f32 %v6534, 0.0
        %v6567 = vmax.f32 %v6535, 0.0
        %v6568 = vmax.f32 %v6536, 0.0
        %v6569 = vmax.f32 %v6537, 0.0
        %v6570 = vmax.f32 %v6538, 0.0
        %v6571 = vmax.f32 %v6539, 0.0
        %v6572 = vmax.f32 %v6540, 0.0
        %v6573 = vmax.f32 %v6541, 0.0
        %v6574 = vmax.f32 %v6542, 0.0
        %v6575 = vmax.f32 %v6543, 0.0
        %v6576 = vmax.f32 %v6544, 0.0
        %v6577 = vmax.f32 %v6545, 0.0
        %v6578 = vmax.f32 %v6546, 0.0
        %v6579 = vmax.f32 %v6547, 0.0
        %v6580 = vmax.f32 %v6548, 0.0
        %v6581 = vmax.f32 %v6549, 0.0
        %v6582 = vmax.f32 %v6550, 0.0
        %v6583 = vmax.f32 %v6551, 0.0
        %v6584 = vmax.f32 %v6552, 0.0
        %v6585 = vmax.f32 %v6553, 0.0
        %v6586 = vmax.f32 %v6554, 0.0
        %v6587 = vmax.f32 %v6555, 0.0
        %v6588 = vmax.f32 %v6556, 0.0
        %v6589 = vmax.f32 %v6557, 0.0
        %v6590 = vmax.f32 %v6558, 0.0
        %v6591 = vmax.f32 %v6559, 0.0
        %v6592 = vmax.f32 %v6560, 0.0
        %v6593 = vmax.f32 %v6561, 0.0
        %v6594 = vmax.f32 %v6562, 0.0
        %v6595 = vmax.f32 %v6563, 0.0
        %v6596 = vmax.f32 %v6564, 0.0
        %v6597 = vmax.f32 %v6565, 0.0
        %v6598 = vpack.c.bf16 %v6567, %v6566
        %v6599 = vpack.c.bf16 %v6569, %v6568
        %v6600 = vpack.c.bf16 %v6571, %v6570
        %v6601 = vpack.c.bf16 %v6573, %v6572
        %v6602 = vpack.c.bf16 %v6575, %v6574
        %v6603 = vpack.c.bf16 %v6577, %v6576
        %v6604 = vpack.c.bf16 %v6579, %v6578
        %v6605 = vpack.c.bf16 %v6581, %v6580
        %v6606 = vpack.c.bf16 %v6583, %v6582
        %v6607 = vpack.c.bf16 %v6585, %v6584
        %v6608 = vpack.c.bf16 %v6587, %v6586
        %v6609 = vpack.c.bf16 %v6589, %v6588
        %v6610 = vpack.c.bf16 %v6591, %v6590
        %v6611 = vpack.c.bf16 %v6593, %v6592
        %v6612 = vpack.c.bf16 %v6595, %v6594
        %v6613 = vpack.c.bf16 %v6597, %v6596
        %v6630 = vunpack.c.l.b16 %v6598
        %v6631 = vunpack.c.h.b16 %v6598
        %v6632 = vunpack.c.l.b16 %v6599
        %v6633 = vunpack.c.h.b16 %v6599
        %v6634 = vunpack.c.l.b16 %v6600
        %v6635 = vunpack.c.h.b16 %v6600
        %v6636 = vunpack.c.l.b16 %v6601
        %v6637 = vunpack.c.h.b16 %v6601
        %v6638 = vunpack.c.l.b16 %v6602
        %v6639 = vunpack.c.h.b16 %v6602
        %v6640 = vunpack.c.l.b16 %v6603
        %v6641 = vunpack.c.h.b16 %v6603
        %v6642 = vunpack.c.l.b16 %v6604
        %v6643 = vunpack.c.h.b16 %v6604
        %v6644 = vunpack.c.l.b16 %v6605
        %v6645 = vunpack.c.h.b16 %v6605
        %v6646 = vunpack.c.l.b16 %v6606
        %v6647 = vunpack.c.h.b16 %v6606
        %v6648 = vunpack.c.l.b16 %v6607
        %v6649 = vunpack.c.h.b16 %v6607
        %v6650 = vunpack.c.l.b16 %v6608
        %v6651 = vunpack.c.h.b16 %v6608
        %v6652 = vunpack.c.l.b16 %v6609
        %v6653 = vunpack.c.h.b16 %v6609
        %v6654 = vunpack.c.l.b16 %v6610
        %v6655 = vunpack.c.h.b16 %v6610
        %v6656 = vunpack.c.l.b16 %v6611
        %v6657 = vunpack.c.h.b16 %v6611
        %v6658 = vunpack.c.l.b16 %v6612
        %v6659 = vunpack.c.h.b16 %v6612
        %v6660 = vunpack.c.l.b16 %v6613
        %v6661 = vunpack.c.h.b16 %v6613
        %v6662 = vpack.c.b16 %v6630, %v6630
        %v6663 = vpack.c.b16 %v6631, %v6631
        %v6664 = vpack.c.b16 %v6632, %v6632
        %v6665 = vpack.c.b16 %v6633, %v6633
        %v6666 = vpack.c.b16 %v6634, %v6634
        %v6667 = vpack.c.b16 %v6635, %v6635
        %v6668 = vpack.c.b16 %v6636, %v6636
        %v6669 = vpack.c.b16 %v6637, %v6637
        %v6670 = vpack.c.b16 %v6638, %v6638
        %v6671 = vpack.c.b16 %v6639, %v6639
        %v6672 = vpack.c.b16 %v6640, %v6640
        %v6673 = vpack.c.b16 %v6641, %v6641
        %v6674 = vpack.c.b16 %v6642, %v6642
        %v6675 = vpack.c.b16 %v6643, %v6643
        %v6676 = vpack.c.b16 %v6644, %v6644
        %v6677 = vpack.c.b16 %v6645, %v6645
        %v6678 = vpack.c.b16 %v6646, %v6646
        %v6679 = vpack.c.b16 %v6647, %v6647
        %v6680 = vpack.c.b16 %v6648, %v6648
        %v6681 = vpack.c.b16 %v6649, %v6649
        %v6682 = vpack.c.b16 %v6650, %v6650
        %v6683 = vpack.c.b16 %v6651, %v6651
        %v6684 = vpack.c.b16 %v6652, %v6652
        %v6685 = vpack.c.b16 %v6653, %v6653
        %v6686 = vpack.c.b16 %v6654, %v6654
        %v6687 = vpack.c.b16 %v6655, %v6655
        %v6688 = vpack.c.b16 %v6656, %v6656
        %v6689 = vpack.c.b16 %v6657, %v6657
        %v6690 = vpack.c.b16 %v6658, %v6658
        %v6691 = vpack.c.b16 %v6659, %v6659
        %v6692 = vpack.c.b16 %v6660, %v6660
        %v6693 = vpack.c.b16 %v6661, %v6661
        %6726 = vst [vmem:[%s340] sm:$0xf] %v6662
        %6727 = vst [vmem:[%s340 + $0x4] sm:$0xf] %v6663
        %6728 = vst [vmem:[%s340 + $0x8] sm:$0xf] %v6664
        %6729 = vst [vmem:[%s340 + $0xc] sm:$0xf] %v6665
        %6730 = vst [vmem:[%s340 + $0x10] sm:$0xf] %v6666
        %6731 = vst [vmem:[%s340 + $0x14] sm:$0xf] %v6667
        %6732 = vst [vmem:[%s340 + $0x18] sm:$0xf] %v6668
        %6733 = vst [vmem:[%s340 + $0x1c] sm:$0xf] %v6669
        %6734 = vst [vmem:[%s340 + $0x20] sm:$0xf] %v6670
        %6735 = vst [vmem:[%s340 + $0x24] sm:$0xf] %v6671
        %6736 = vst [vmem:[%s340 + $0x28] sm:$0xf] %v6672
        %6737 = vst [vmem:[%s340 + $0x2c] sm:$0xf] %v6673
        %6738 = vst [vmem:[%s340 + $0x30] sm:$0xf] %v6674
        %6739 = vst [vmem:[%s340 + $0x34] sm:$0xf] %v6675
        %6740 = vst [vmem:[%s340 + $0x38] sm:$0xf] %v6676
        %6741 = vst [vmem:[%s340 + $0x3c] sm:$0xf] %v6677
        %6742 = vst [vmem:[%s340 + $0x40] sm:$0xf] %v6678
        %6743 = vst [vmem:[%s340 + $0x44] sm:$0xf] %v6679
        %6744 = vst [vmem:[%s340 + $0x48] sm:$0xf] %v6680
        %6745 = vst [vmem:[%s340 + $0x4c] sm:$0xf] %v6681
        %6746 = vst [vmem:[%s340 + $0x50] sm:$0xf] %v6682
        %6747 = vst [vmem:[%s340 + $0x54] sm:$0xf] %v6683
        %6748 = vst [vmem:[%s340 + $0x58] sm:$0xf] %v6684
        %6749 = vst [vmem:[%s340 + $0x5c] sm:$0xf] %v6685
        %6750 = vst [vmem:[%s340 + $0x60] sm:$0xf] %v6686
        %6751 = vst [vmem:[%s340 + $0x64] sm:$0xf] %v6687
        %6752 = vst [vmem:[%s340 + $0x68] sm:$0xf] %v6688
        %6753 = vst [vmem:[%s340 + $0x6c] sm:$0xf] %v6689
        %6754 = vst [vmem:[%s340 + $0x70] sm:$0xf] %v6690
        %6755 = vst [vmem:[%s340 + $0x74] sm:$0xf] %v6691
        %6756 = vst [vmem:[%s340 + $0x78] sm:$0xf] %v6692
        %6757 = vst [vmem:[%s340 + $0x7c] sm:$0xf] %v6693
        %s6758 = sand.u32 %s186, 1
        %s6759 = scalar_lea.sflag [#allocation5], %s6758
        %s6760 = sand.u32 %s186, 1
        %s6761 = smul.addr %s6760, 128
        %s6762 = scalar_lea.vmem [#allocation11], %s6761
        // Predicated region
        $region65: #{tpu_custom_call.1} parent=47 // pred_check
          %p6763 = pneg %p196
        $region66: #{tpu_custom_call.1} parent=47 // pred_check_branch
          %6765 = sbr.rel (%p6763) target = $region68
        $region67: #{tpu_custom_call.1} parent=47 // pred_region
          %s6767 = ssub.s32 2048, 2048
          %6768 = vsyncadd %s6759, %s6767
          %s6769 = smul.addr %s26, 32
          %s6770 = smul.addr %s6769, 64
          %s6771 = scalar_lea.hbm %s7, %s6770
          %s6772 = sshll.u32 %s6762, 4
          %s6773 = int_to_ptr.vmem [resolvable:$true] %s6772
          %6778 = dma.vmem_to_hbm [thread:$0]  %s6773, 2048, %s6771, %s6759, 64, 64, 4
        $region68: #{tpu_custom_call.1} parent=47 // pred_fallthru
          _
      $region48: #{tpu_custom_call.1} parent=5 // pred_fallthru
        _
      %p6779 = scmp.le.s32.totalorder 2, %s21
      // Predicated region
      $region69: #{tpu_custom_call.1} parent=5 // pred_check
        %p6780 = pneg %p6779
      $region70: #{tpu_custom_call.1} parent=5 // pred_check_branch
        %6782 = sbr.rel (%p6780) target = $region72
      $region71: #{tpu_custom_call.1} parent=5 // pred_region
        %s6783 = ssub.s32 %s21, 2
        // Predicated region
        $region73: #{tpu_custom_call.1} parent=71 // pred_check
          %p6784 = pneg %p202
        $region74: #{tpu_custom_call.1} parent=71 // pred_check_branch
          %6786 = sbr.rel (%p6784) target = $region76
        $region75: #{tpu_custom_call.1} parent=71 // pred_region
          %s6787 = sand.u32 %s187, 1
          %s6788 = scalar_lea.sflag [#allocation5], %s6787
          %s6789 = sand.u32 %s187, 1
          %s6790 = smul.addr %s6789, 128
          %s6791 = scalar_lea.vmem [#allocation11], %s6790
          %6792 = dma.done %s6788, 2048
        $region76: #{tpu_custom_call.1} parent=71 // pred_fallthru
          _
      $region72: #{tpu_custom_call.1} parent=5 // pred_fallthru
        _
    $region6: #{tpu_custom_call.1} parent=1 // loop_footer
      %s25 = sadd.s32 1, %s21
    $region7: #{tpu_custom_call.1} parent=1 // loop_footer_branch
      %20 = sbr.rel target = $region3
    $region8: #{tpu_custom_call.1} parent=1 // loop_exit
      _
    %6793 = vsyncpa [#allocation4], 1
    %s6794 = scalar_lea.sflag [#allocation4], 1
    %6795 = vsyncpa %s6794, 1
    %6796 = vsyncpa [#allocation7], 1
    %6797 = vsyncpa [#allocation10], 1
    %6798 = vsyncpa [#allocation5], 1
    %s6799 = scalar_lea.sflag [#allocation5], 1
    %6800 = vsyncpa %s6799, 1

</llo_original>
